<compile_context>
chip_gen: v7x
topology: tpu7x:2x2x1
jax: 0.10.0
libtpu: 0.0.40
codegen_flags: <defaults>
</compile_context>

<pallas_src>
import functools

import numpy as np

import jax
import jax.numpy as jnp
from jax.experimental import pallas as pl
from jax.experimental.pallas import tpu as pltpu

NUM_CHANNELS = 32
FS = 44100
WLEN = 256
WSTEP = 128


# ---------------------------------------------------------------------------
# Kernel: DFT magnitude + frame pooling + NSIM mean, fully fused.
# ---------------------------------------------------------------------------
def _visqol_kernel(y_ref, dcos_ref, dsin_ref, out_ref, *, m_half, n_frames,
                   wlen, wstep):
    """Fused ViSQOLoss forward.

    y_ref    : (2*B*C, N) bf16  modulated signals; rows [0:m_half] are the
               predictions, rows [m_half:] the targets (same batch/channel
               ordering in both halves).
    dcos_ref : (N, Fp) bf16     cos DFT basis, zero-padded to Fp (mult of 128)
    dsin_ref : (N, Fp) bf16     sin DFT basis, zero-padded likewise
    out_ref  : (1, 1)  f32      mean NSIM (the loss value Q)
    """
    y = y_ref[...]

    # Real DFT as two big MXU matmuls, f32 accumulation.
    re = jnp.dot(y, dcos_ref[...], preferred_element_type=jnp.float32)
    im = jnp.dot(y, dsin_ref[...], preferred_element_type=jnp.float32)
    # Tiny eps for gradient safety at |rfft| == 0 (negligible in the forward).
    mag = jnp.sqrt(re * re + im * im + jnp.float32(1e-12))     # (2M, Fp) f32

    # unfold(-1, wlen, wstep).mean(-1): per-wstep-block lane sums, then each
    # frame is the mean of r = wlen // wstep consecutive blocks.
    r = wlen // wstep
    n_blocks = n_frames - 1 + r
    bsums = []
    for i in range(n_blocks):
        blk = mag[:, i * wstep:(i + 1) * wstep]                # static slice
        bsums.append(jnp.sum(blk, axis=1, keepdims=True))      # (2M, 1)

    c1 = jnp.float32(1e-8)
    total = jnp.zeros((1, 1), jnp.float32)
    for j in range(n_frames):
        fr = bsums[j]
        for s in range(1, r):
            fr = fr + bsums[j + s]
        fr = fr * jnp.float32(1.0 / wlen)                      # frame mean
        p = fr[:m_half]                                        # predictions
        t = fr[m_half:]                                        # targets
        sim = (2.0 * p * t + c1) / (p * p + t * t + c1)
        total = total + jnp.sum(sim, keepdims=True)            # (1, 1)

    out_ref[...] = total * (1.0 / (m_half * n_frames))


# ---------------------------------------------------------------------------
# Constant construction (built once per num_samples, cached).
# ---------------------------------------------------------------------------
@functools.lru_cache(maxsize=None)
def _gtone_constants(num_samples, num_channels=NUM_CHANNELS, fs=FS,
                     wlen=WLEN, wstep=WSTEP):
    num_freqs = num_samples // 2 + 1
    n_frames = (num_freqs - wlen) // wstep + 1
    assert n_frames >= 1, "num_samples too short for the wlen/wstep framing"
    assert wlen % wstep == 0, "pooling assumes wlen is a multiple of wstep"

    n = np.arange(num_samples, dtype=np.int64)
    freqs = np.linspace(100.0, fs // 2, num_channels)
    # cos(2*pi*f_c*n/fs) per channel -> (C, N), kept in f32 for the modulation.
    mod = np.cos(2.0 * np.pi * freqs[:, None] * n[None, :].astype(np.float64)
                 / fs)

    # Real DFT basis, padded on the frequency axis to a multiple of 128 lanes.
    f_pad = ((num_freqs + 127) // 128) * 128
    k = np.arange(f_pad, dtype=np.int64)
    ang = (2.0 * np.pi / num_samples) * ((n[:, None] * k[None, :])
                                         % num_samples).astype(np.float64)
    dcos = np.cos(ang)
    dsin = np.sin(ang)
    dcos[:, num_freqs:] = 0.0      # padded frequency columns contribute 0
    dsin[:, num_freqs:] = 0.0

    mod = jnp.asarray(mod, dtype=jnp.float32)
    dcos = jnp.asarray(dcos, dtype=jnp.bfloat16)
    dsin = jnp.asarray(dsin, dtype=jnp.bfloat16)
    return mod, dcos, dsin, n_frames


# ---------------------------------------------------------------------------
# Wrapper
# ---------------------------------------------------------------------------
def visqol_loss(predictions, targets):
    """Pallas equivalent of ViSQOLoss.forward. Inputs: (B, num_samples)."""
    predictions = predictions.astype(jnp.float32)
    targets = targets.astype(jnp.float32)
    assert predictions.shape == targets.shape
    b, num_samples = predictions.shape

    mod, dcos, dsin, n_frames = _gtone_constants(num_samples)

    # Stack pred + target along the batch axis, modulate by every channel, and
    # flatten to one (2*B*C, N) operand so the DFT is a single big matmul.
    x_both = jnp.concatenate([predictions, targets], axis=0)        # (2B, N)
    y = (x_both[:, None, :] * mod[None, :, :]).reshape(
        2 * b * NUM_CHANNELS, num_samples)
    y = y.astype(jnp.bfloat16)

    m_half = b * NUM_CHANNELS
    kernel = functools.partial(_visqol_kernel, m_half=m_half,
                               n_frames=n_frames, wlen=WLEN, wstep=WSTEP)

    vmem = pltpu.MemorySpace.VMEM
    out = pl.pallas_call(
        kernel,
        out_shape=jax.ShapeDtypeStruct((1, 1), jnp.float32),
        in_specs=[pl.BlockSpec(memory_space=vmem),     # y        (whole array)
                  pl.BlockSpec(memory_space=vmem),     # dcos     (whole array)
                  pl.BlockSpec(memory_space=vmem)],    # dsin     (whole array)
        out_specs=pl.BlockSpec(memory_space=vmem),
    )(y, dcos, dsin)
    return out[0, 0]


# ---------------------------------------------------------------------------
if __name__ == "__main__":
    key = jax.random.PRNGKey(0)
    kp, kt = jax.random.split(key)
    B, N = 2, 1024          # N >= 2*WLEN so the 256/128 framing yields frames
    predictions = jax.random.normal(kp, (B, N), dtype=jnp.float32)
    targets = jax.random.normal(kt, (B, N), dtype=jnp.float32)

    loss = visqol_loss(predictions, targets)
    jax.block_until_ready(loss)
    assert loss.shape == ()
    print("KERNEL_OK")
</pallas_src>

<mosaic_0001>
module attributes {stable_mosaic.version = 11 : i64} {
  func.func @_visqol_kernel(%arg0: memref<128x1024xbf16, #tpu.memory_space<vmem>>, %arg1: memref<1024x640xbf16, #tpu.memory_space<vmem>>, %arg2: memref<1024x640xbf16, #tpu.memory_space<vmem>>, %arg3: memref<1x1xf32, #tpu.memory_space<vmem>>) attributes {dimension_semantics = [], scalar_prefetch = 0 : i64, scratch_operands = 0 : i64, tpu.core_type = #tpu.core_type<tc>} {
    %c0 = arith.constant 0 : index
    %c0_0 = arith.constant 0 : index
    %0 = vector.load %arg0[%c0, %c0_0] : memref<128x1024xbf16, #tpu.memory_space<vmem>>, vector<128x1024xbf16>
    %c0_1 = arith.constant 0 : index
    %c0_2 = arith.constant 0 : index
    %1 = vector.load %arg1[%c0_1, %c0_2] : memref<1024x640xbf16, #tpu.memory_space<vmem>>, vector<1024x640xbf16>
    %cst = arith.constant dense<0.000000e+00> : vector<128x640xf32>
    %2 = tpu.matmul %0, %1, %cst {dimension_numbers = #tpu.dot_dimension_numbers<[1], [0], [0], [1], [0, 0, 1, 1], [], []>} : vector<128x1024xbf16>, vector<1024x640xbf16>, vector<128x640xf32> -> vector<128x640xf32>
    %c0_3 = arith.constant 0 : index
    %c0_4 = arith.constant 0 : index
    %3 = vector.load %arg2[%c0_3, %c0_4] : memref<1024x640xbf16, #tpu.memory_space<vmem>>, vector<1024x640xbf16>
    %cst_5 = arith.constant dense<0.000000e+00> : vector<128x640xf32>
    %4 = tpu.matmul %0, %3, %cst_5 {dimension_numbers = #tpu.dot_dimension_numbers<[1], [0], [0], [1], [0, 0, 1, 1], [], []>} : vector<128x1024xbf16>, vector<1024x640xbf16>, vector<128x640xf32> -> vector<128x640xf32>
    %5 = arith.mulf %2, %2 : vector<128x640xf32>
    %6 = arith.mulf %4, %4 : vector<128x640xf32>
    %7 = arith.addf %5, %6 : vector<128x640xf32>
    %cst_6 = arith.constant 9.99999996E-13 : f32
    %8 = vector.broadcast %cst_6 : f32 to vector<128x640xf32>
    %9 = arith.addf %7, %8 : vector<128x640xf32>
    %10 = math.sqrt %9 : vector<128x640xf32>
    %11 = vector.extract_strided_slice %10 {offsets = [0, 0], sizes = [128, 128], strides = [1, 1]} : vector<128x640xf32> to vector<128x128xf32>
    %cst_7 = arith.constant dense<0.000000e+00> : vector<128xf32>
    %12 = vector.multi_reduction <add>, %11, %cst_7 [1] : vector<128x128xf32> to vector<128xf32>
    %13 = vector.shape_cast %12 : vector<128xf32> to vector<128x1xf32>
    %14 = vector.extract_strided_slice %10 {offsets = [0, 128], sizes = [128, 128], strides = [1, 1]} : vector<128x640xf32> to vector<128x128xf32>
    %cst_8 = arith.constant dense<0.000000e+00> : vector<128xf32>
    %15 = vector.multi_reduction <add>, %14, %cst_8 [1] : vector<128x128xf32> to vector<128xf32>
    %16 = vector.shape_cast %15 : vector<128xf32> to vector<128x1xf32>
    %17 = vector.extract_strided_slice %10 {offsets = [0, 256], sizes = [128, 128], strides = [1, 1]} : vector<128x640xf32> to vector<128x128xf32>
    %cst_9 = arith.constant dense<0.000000e+00> : vector<128xf32>
    %18 = vector.multi_reduction <add>, %17, %cst_9 [1] : vector<128x128xf32> to vector<128xf32>
    %19 = vector.shape_cast %18 : vector<128xf32> to vector<128x1xf32>
    %20 = vector.extract_strided_slice %10 {offsets = [0, 384], sizes = [128, 128], strides = [1, 1]} : vector<128x640xf32> to vector<128x128xf32>
    %cst_10 = arith.constant dense<0.000000e+00> : vector<128xf32>
    %21 = vector.multi_reduction <add>, %20, %cst_10 [1] : vector<128x128xf32> to vector<128xf32>
    %22 = vector.shape_cast %21 : vector<128xf32> to vector<128x1xf32>
    %cst_11 = arith.constant 0.000000e+00 : f32
    %23 = vector.broadcast %cst_11 : f32 to vector<1x1xf32>
    %24 = arith.addf %13, %16 : vector<128x1xf32>
    %cst_12 = arith.constant 3.906250e-03 : f32
    %25 = vector.broadcast %cst_12 : f32 to vector<128x1xf32>
    %26 = arith.mulf %24, %25 : vector<128x1xf32>
    %27 = vector.extract_strided_slice %26 {offsets = [0, 0], sizes = [64, 1], strides = [1, 1]} : vector<128x1xf32> to vector<64x1xf32>
    %28 = vector.extract_strided_slice %26 {offsets = [64, 0], sizes = [64, 1], strides = [1, 1]} : vector<128x1xf32> to vector<64x1xf32>
    %cst_13 = arith.constant 2.000000e+00 : f32
    %29 = vector.broadcast %cst_13 : f32 to vector<64x1xf32>
    %30 = arith.mulf %29, %27 : vector<64x1xf32>
    %31 = arith.mulf %30, %28 : vector<64x1xf32>
    %cst_14 = arith.constant 9.99999993E-9 : f32
    %32 = vector.broadcast %cst_14 : f32 to vector<64x1xf32>
    %33 = arith.addf %31, %32 : vector<64x1xf32>
    %34 = arith.mulf %27, %27 : vector<64x1xf32>
    %35 = arith.mulf %28, %28 : vector<64x1xf32>
    %36 = arith.addf %34, %35 : vector<64x1xf32>
    %cst_15 = arith.constant 9.99999993E-9 : f32
    %37 = vector.broadcast %cst_15 : f32 to vector<64x1xf32>
    %38 = arith.addf %36, %37 : vector<64x1xf32>
    %39 = arith.divf %33, %38 : vector<64x1xf32>
    %40 = vector.shape_cast %39 : vector<64x1xf32> to vector<1x64x1xf32>
    %cst_16 = arith.constant dense<0.000000e+00> : vector<1xf32>
    %41 = vector.multi_reduction <add>, %40, %cst_16 [1, 2] : vector<1x64x1xf32> to vector<1xf32>
    %42 = vector.shape_cast %41 : vector<1xf32> to vector<1x1x1xf32>
    %43 = vector.extract %42[0, 0, 0] : f32 from vector<1x1x1xf32>
    %44 = vector.broadcast %43 : f32 to vector<1x1xf32>
    %45 = arith.addf %23, %44 : vector<1x1xf32>
    %46 = arith.addf %16, %19 : vector<128x1xf32>
    %cst_17 = arith.constant 3.906250e-03 : f32
    %47 = vector.broadcast %cst_17 : f32 to vector<128x1xf32>
    %48 = arith.mulf %46, %47 : vector<128x1xf32>
    %49 = vector.extract_strided_slice %48 {offsets = [0, 0], sizes = [64, 1], strides = [1, 1]} : vector<128x1xf32> to vector<64x1xf32>
    %50 = vector.extract_strided_slice %48 {offsets = [64, 0], sizes = [64, 1], strides = [1, 1]} : vector<128x1xf32> to vector<64x1xf32>
    %cst_18 = arith.constant 2.000000e+00 : f32
    %51 = vector.broadcast %cst_18 : f32 to vector<64x1xf32>
    %52 = arith.mulf %51, %49 : vector<64x1xf32>
    %53 = arith.mulf %52, %50 : vector<64x1xf32>
    %cst_19 = arith.constant 9.99999993E-9 : f32
    %54 = vector.broadcast %cst_19 : f32 to vector<64x1xf32>
    %55 = arith.addf %53, %54 : vector<64x1xf32>
    %56 = arith.mulf %49, %49 : vector<64x1xf32>
    %57 = arith.mulf %50, %50 : vector<64x1xf32>
    %58 = arith.addf %56, %57 : vector<64x1xf32>
    %cst_20 = arith.constant 9.99999993E-9 : f32
    %59 = vector.broadcast %cst_20 : f32 to vector<64x1xf32>
    %60 = arith.addf %58, %59 : vector<64x1xf32>
    %61 = arith.divf %55, %60 : vector<64x1xf32>
    %62 = vector.shape_cast %61 : vector<64x1xf32> to vector<1x64x1xf32>
    %cst_21 = arith.constant dense<0.000000e+00> : vector<1xf32>
    %63 = vector.multi_reduction <add>, %62, %cst_21 [1, 2] : vector<1x64x1xf32> to vector<1xf32>
    %64 = vector.shape_cast %63 : vector<1xf32> to vector<1x1x1xf32>
    %65 = vector.extract %64[0, 0, 0] : f32 from vector<1x1x1xf32>
    %66 = vector.broadcast %65 : f32 to vector<1x1xf32>
    %67 = arith.addf %45, %66 : vector<1x1xf32>
    %68 = arith.addf %19, %22 : vector<128x1xf32>
    %cst_22 = arith.constant 3.906250e-03 : f32
    %69 = vector.broadcast %cst_22 : f32 to vector<128x1xf32>
    %70 = arith.mulf %68, %69 : vector<128x1xf32>
    %71 = vector.extract_strided_slice %70 {offsets = [0, 0], sizes = [64, 1], strides = [1, 1]} : vector<128x1xf32> to vector<64x1xf32>
    %72 = vector.extract_strided_slice %70 {offsets = [64, 0], sizes = [64, 1], strides = [1, 1]} : vector<128x1xf32> to vector<64x1xf32>
    %cst_23 = arith.constant 2.000000e+00 : f32
    %73 = vector.broadcast %cst_23 : f32 to vector<64x1xf32>
    %74 = arith.mulf %73, %71 : vector<64x1xf32>
    %75 = arith.mulf %74, %72 : vector<64x1xf32>
    %cst_24 = arith.constant 9.99999993E-9 : f32
    %76 = vector.broadcast %cst_24 : f32 to vector<64x1xf32>
    %77 = arith.addf %75, %76 : vector<64x1xf32>
    %78 = arith.mulf %71, %71 : vector<64x1xf32>
    %79 = arith.mulf %72, %72 : vector<64x1xf32>
    %80 = arith.addf %78, %79 : vector<64x1xf32>
    %cst_25 = arith.constant 9.99999993E-9 : f32
    %81 = vector.broadcast %cst_25 : f32 to vector<64x1xf32>
    %82 = arith.addf %80, %81 : vector<64x1xf32>
    %83 = arith.divf %77, %82 : vector<64x1xf32>
    %84 = vector.shape_cast %83 : vector<64x1xf32> to vector<1x64x1xf32>
    %cst_26 = arith.constant dense<0.000000e+00> : vector<1xf32>
    %85 = vector.multi_reduction <add>, %84, %cst_26 [1, 2] : vector<1x64x1xf32> to vector<1xf32>
    %86 = vector.shape_cast %85 : vector<1xf32> to vector<1x1x1xf32>
    %87 = vector.extract %86[0, 0, 0] : f32 from vector<1x1x1xf32>
    %88 = vector.broadcast %87 : f32 to vector<1x1xf32>
    %89 = arith.addf %67, %88 : vector<1x1xf32>
    %cst_27 = arith.constant 0.00520833349 : f32
    %90 = vector.broadcast %cst_27 : f32 to vector<1x1xf32>
    %91 = arith.mulf %89, %90 : vector<1x1xf32>
    %c0_28 = arith.constant 0 : index
    %c0_29 = arith.constant 0 : index
    %92 = vector.load %arg3[%c0_28, %c0_29] : memref<1x1xf32, #tpu.memory_space<vmem>>, vector<1x1xf32>
    tpu.vector_store %arg3[%c0_28, %c0_29], %91 {strides = array<i32>} : memref<1x1xf32, #tpu.memory_space<vmem>>, vector<1x1xf32>,
    return
  }
}

</mosaic_0001>

<llo_original>
// kernel: tpu_custom_call.1
$region0: #{tpu_custom_call.1}
  #allocation0 [shape = 'u32[]', space=smem, size = 0x4, offset = 0x4, fixed_abs, tag = 'smem constant byte address 0x4 - core index']
  #allocation1 [shape = 'u32[144,128]{1,0:T(1,128)}', space=vmem, size = 0x12000, scoped, tag = 'internal scratch']
  %s0 = inlined_call_operand.hbm [shape: bf16[128,1024], index: 0, kind: input, shape index: {}]
  %s1 = inlined_call_operand.hbm [shape: bf16[1024,640], index: 1, kind: input, shape index: {}]
  %s2 = inlined_call_operand.hbm [shape: bf16[1024,640], index: 2, kind: input, shape index: {}]
  %s3 = inlined_call_operand.hbm [shape: f32[1,1], index: 3, kind: output, shape index: {}]
  %s4 = sld [smem:[#allocation0]]
  $region34: #{tpu_custom_call.1} parent=0
    _
  %s6 = ssub.s32 1, %s4
  %s7 = scalar_select 0, %s6, %s4
  $region1: #{tpu_custom_call.1} parent=0
    #allocation2 [shape = 'u8[262144]{0}', space=vmem, size = 0x40000, scoped, tag = 'input window, operand 0, single buffered']
    #allocation3 [shape = 's32[1]{0}', space=sflag, size = 0x4, scoped, tag = 'scoped memory for tpu_custom_call.1']
    #allocation4 [shape = 's32[1]{0}', space=sflag, size = 0x4, scoped, tag = 'scoped memory for tpu_custom_call.1']
    #allocation5 [shape = 'u8[1310720]{0}', space=vmem, size = 0x140000, scoped, tag = 'input window, operand 1, single buffered']
    #allocation6 [shape = 's32[1]{0}', space=sflag, size = 0x4, scoped, tag = 'scoped memory for tpu_custom_call.1']
    #allocation7 [shape = 'u8[1310720]{0}', space=vmem, size = 0x140000, scoped, tag = 'input window, operand 2, single buffered']
    #allocation8 [shape = 'u8[512]{0}', space=vmem, size = 0x400, scoped, tag = 'output window, operand 0, single buffered']
    %8 = vsyncpa [#allocation3], 0
    %9 = vsyncpa [#allocation6], 0
    %10 = vsyncpa [#allocation4], 0
    // Predicated region
    $region2: #{tpu_custom_call.1} parent=1 // pred_check
      _
    $region3: #{tpu_custom_call.1} parent=1 // pred_check_branch
      %12 = sbr.rel (0) target = $region5
    $region4: #{tpu_custom_call.1} parent=1 // pred_region
      %s14 = ssub.s32 8192, 8192
      %15 = vsyncadd [#allocation3], %s14
      %s16 = sshll.u32 [#allocation2], 4
      %s17 = int_to_ptr.vmem [resolvable:$true] %s16
      %22 = dma.hbm_to_vmem [thread:$0]  %s0, 8192, %s17, [#allocation3], 512, 512, 32
    $region5: #{tpu_custom_call.1} parent=1 // pred_fallthru
      _
    // Predicated region
    $region6: #{tpu_custom_call.1} parent=1 // pred_check
      _
    $region7: #{tpu_custom_call.1} parent=1 // pred_check_branch
      %24 = sbr.rel (0) target = $region9
    $region8: #{tpu_custom_call.1} parent=1 // pred_region
      %s26 = ssub.s32 40960, 40960
      %27 = vsyncadd [#allocation6], %s26
      %s28 = sshll.u32 [#allocation5], 4
      %s29 = int_to_ptr.vmem [resolvable:$true] %s28
      %34 = dma.hbm_to_vmem [thread:$0]  %s1, 40960, %s29, [#allocation6], 320, 320, 20
    $region9: #{tpu_custom_call.1} parent=1 // pred_fallthru
      _
    // Predicated region
    $region10: #{tpu_custom_call.1} parent=1 // pred_check
      _
    $region11: #{tpu_custom_call.1} parent=1 // pred_check_branch
      %36 = sbr.rel (0) target = $region13
    $region12: #{tpu_custom_call.1} parent=1 // pred_region
      %s38 = ssub.s32 40960, 40960
      %39 = vsyncadd [#allocation6], %s38
      %s40 = sshll.u32 [#allocation7], 4
      %s41 = int_to_ptr.vmem [resolvable:$true] %s40
      %46 = dma.hbm_to_vmem [thread:$0]  %s2, 40960, %s41, [#allocation6], 320, 320, 20
    $region13: #{tpu_custom_call.1} parent=1 // pred_fallthru
      _
    // Predicated region
    $region14: #{tpu_custom_call.1} parent=1 // pred_check
      _
    $region15: #{tpu_custom_call.1} parent=1 // pred_check_branch
      %48 = sbr.rel (0) target = $region17
    $region16: #{tpu_custom_call.1} parent=1 // pred_region
      %49 = dma.done [#allocation3], 8192
    $region17: #{tpu_custom_call.1} parent=1 // pred_fallthru
      _
    // Predicated region
    $region18: #{tpu_custom_call.1} parent=1 // pred_check
      _
    $region19: #{tpu_custom_call.1} parent=1 // pred_check_branch
      %51 = sbr.rel (0) target = $region21
    $region20: #{tpu_custom_call.1} parent=1 // pred_region
      %52 = dma.done [#allocation6], 40960
    $region21: #{tpu_custom_call.1} parent=1 // pred_fallthru
      _
    // Predicated region
    $region22: #{tpu_custom_call.1} parent=1 // pred_check
      _
    $region23: #{tpu_custom_call.1} parent=1 // pred_check_branch
      %54 = sbr.rel (0) target = $region25
    $region24: #{tpu_custom_call.1} parent=1 // pred_region
      %55 = dma.done [#allocation6], 40960
    $region25: #{tpu_custom_call.1} parent=1 // pred_fallthru
      _
    %v56 = vld [vmem:[#allocation2] sm:$0xff]
    %v57 = vld [vmem:[#allocation2 + $0x8] sm:$0xff]
    %v58 = vld [vmem:[#allocation2 + $0x10] sm:$0xff]
    %v59 = vld [vmem:[#allocation2 + $0x18] sm:$0xff]
    %v60 = vld [vmem:[#allocation2 + $0x20] sm:$0xff]
    %v61 = vld [vmem:[#allocation2 + $0x28] sm:$0xff]
    %v62 = vld [vmem:[#allocation2 + $0x30] sm:$0xff]
    %v63 = vld [vmem:[#allocation2 + $0x38] sm:$0xff]
    %v64 = vld [vmem:[#allocation2 + $0x40] sm:$0xff]
    %v65 = vld [vmem:[#allocation2 + $0x48] sm:$0xff]
    %v66 = vld [vmem:[#allocation2 + $0x50] sm:$0xff]
    %v67 = vld [vmem:[#allocation2 + $0x58] sm:$0xff]
    %v68 = vld [vmem:[#allocation2 + $0x60] sm:$0xff]
    %v69 = vld [vmem:[#allocation2 + $0x68] sm:$0xff]
    %v70 = vld [vmem:[#allocation2 + $0x70] sm:$0xff]
    %v71 = vld [vmem:[#allocation2 + $0x78] sm:$0xff]
    %v72 = vld [vmem:[#allocation2 + $0x80] sm:$0xff]
    %v73 = vld [vmem:[#allocation2 + $0x88] sm:$0xff]
    %v74 = vld [vmem:[#allocation2 + $0x90] sm:$0xff]
    %v75 = vld [vmem:[#allocation2 + $0x98] sm:$0xff]
    %v76 = vld [vmem:[#allocation2 + $0xa0] sm:$0xff]
    %v77 = vld [vmem:[#allocation2 + $0xa8] sm:$0xff]
    %v78 = vld [vmem:[#allocation2 + $0xb0] sm:$0xff]
    %v79 = vld [vmem:[#allocation2 + $0xb8] sm:$0xff]
    %v80 = vld [vmem:[#allocation2 + $0xc0] sm:$0xff]
    %v81 = vld [vmem:[#allocation2 + $0xc8] sm:$0xff]
    %v82 = vld [vmem:[#allocation2 + $0xd0] sm:$0xff]
    %v83 = vld [vmem:[#allocation2 + $0xd8] sm:$0xff]
    %v84 = vld [vmem:[#allocation2 + $0xe0] sm:$0xff]
    %v85 = vld [vmem:[#allocation2 + $0xe8] sm:$0xff]
    %v86 = vld [vmem:[#allocation2 + $0xf0] sm:$0xff]
    %v87 = vld [vmem:[#allocation2 + $0xf8] sm:$0xff]
    %v88 = vld [vmem:[#allocation2 + $0x100] sm:$0xff]
    %v89 = vld [vmem:[#allocation2 + $0x108] sm:$0xff]
    %v90 = vld [vmem:[#allocation2 + $0x110] sm:$0xff]
    %v91 = vld [vmem:[#allocation2 + $0x118] sm:$0xff]
    %v92 = vld [vmem:[#allocation2 + $0x120] sm:$0xff]
    %v93 = vld [vmem:[#allocation2 + $0x128] sm:$0xff]
    %v94 = vld [vmem:[#allocation2 + $0x130] sm:$0xff]
    %v95 = vld [vmem:[#allocation2 + $0x138] sm:$0xff]
    %v96 = vld [vmem:[#allocation2 + $0x140] sm:$0xff]
    %v97 = vld [vmem:[#allocation2 + $0x148] sm:$0xff]
    %v98 = vld [vmem:[#allocation2 + $0x150] sm:$0xff]
    %v99 = vld [vmem:[#allocation2 + $0x158] sm:$0xff]
    %v100 = vld [vmem:[#allocation2 + $0x160] sm:$0xff]
    %v101 = vld [vmem:[#allocation2 + $0x168] sm:$0xff]
    %v102 = vld [vmem:[#allocation2 + $0x170] sm:$0xff]
    %v103 = vld [vmem:[#allocation2 + $0x178] sm:$0xff]
    %v104 = vld [vmem:[#allocation2 + $0x180] sm:$0xff]
    %v105 = vld [vmem:[#allocation2 + $0x188] sm:$0xff]
    %v106 = vld [vmem:[#allocation2 + $0x190] sm:$0xff]
    %v107 = vld [vmem:[#allocation2 + $0x198] sm:$0xff]
    %v108 = vld [vmem:[#allocation2 + $0x1a0] sm:$0xff]
    %v109 = vld [vmem:[#allocation2 + $0x1a8] sm:$0xff]
    %v110 = vld [vmem:[#allocation2 + $0x1b0] sm:$0xff]
    %v111 = vld [vmem:[#allocation2 + $0x1b8] sm:$0xff]
    %v112 = vld [vmem:[#allocation2 + $0x1c0] sm:$0xff]
    %v113 = vld [vmem:[#allocation2 + $0x1c8] sm:$0xff]
    %v114 = vld [vmem:[#allocation2 + $0x1d0] sm:$0xff]
    %v115 = vld [vmem:[#allocation2 + $0x1d8] sm:$0xff]
    %v116 = vld [vmem:[#allocation2 + $0x1e0] sm:$0xff]
    %v117 = vld [vmem:[#allocation2 + $0x1e8] sm:$0xff]
    %v118 = vld [vmem:[#allocation2 + $0x1f0] sm:$0xff]
    %v119 = vld [vmem:[#allocation2 + $0x1f8] sm:$0xff]
    %v120 = vld [vmem:[#allocation5] sm:$0xff]
    %v121 = vld [vmem:[#allocation5 + $0x8] sm:$0xff]
    %v122 = vld [vmem:[#allocation5 + $0x14] sm:$0xff]
    %v123 = vld [vmem:[#allocation5 + $0x1c] sm:$0xff]
    %v124 = vld [vmem:[#allocation5 + $0x28] sm:$0xff]
    %v125 = vld [vmem:[#allocation5 + $0x30] sm:$0xff]
    %v126 = vld [vmem:[#allocation5 + $0x3c] sm:$0xff]
    %v127 = vld [vmem:[#allocation5 + $0x44] sm:$0xff]
    %v128 = vld [vmem:[#allocation5 + $0x50] sm:$0xff]
    %v129 = vld [vmem:[#allocation5 + $0x58] sm:$0xff]
    %v130 = vld [vmem:[#allocation5 + $0x64] sm:$0xff]
    %v131 = vld [vmem:[#allocation5 + $0x6c] sm:$0xff]
    %v132 = vld [vmem:[#allocation5 + $0x78] sm:$0xff]
    %v133 = vld [vmem:[#allocation5 + $0x80] sm:$0xff]
    %v134 = vld [vmem:[#allocation5 + $0x8c] sm:$0xff]
    %v135 = vld [vmem:[#allocation5 + $0x94] sm:$0xff]
    %v136 = vld [vmem:[#allocation5 + $0xa0] sm:$0xff]
    %v137 = vld [vmem:[#allocation5 + $0xa8] sm:$0xff]
    %v138 = vld [vmem:[#allocation5 + $0xb4] sm:$0xff]
    %v139 = vld [vmem:[#allocation5 + $0xbc] sm:$0xff]
    %v140 = vld [vmem:[#allocation5 + $0xc8] sm:$0xff]
    %v141 = vld [vmem:[#allocation5 + $0xd0] sm:$0xff]
    %v142 = vld [vmem:[#allocation5 + $0xdc] sm:$0xff]
    %v143 = vld [vmem:[#allocation5 + $0xe4] sm:$0xff]
    %v144 = vld [vmem:[#allocation5 + $0xf0] sm:$0xff]
    %v145 = vld [vmem:[#allocation5 + $0xf8] sm:$0xff]
    %v146 = vld [vmem:[#allocation5 + $0x104] sm:$0xff]
    %v147 = vld [vmem:[#allocation5 + $0x10c] sm:$0xff]
    %v148 = vld [vmem:[#allocation5 + $0x118] sm:$0xff]
    %v149 = vld [vmem:[#allocation5 + $0x120] sm:$0xff]
    %v150 = vld [vmem:[#allocation5 + $0x12c] sm:$0xff]
    %v151 = vld [vmem:[#allocation5 + $0x134] sm:$0xff]
    %v152 = vld [vmem:[#allocation5 + $0x140] sm:$0xff]
    %v153 = vld [vmem:[#allocation5 + $0x148] sm:$0xff]
    %v154 = vld [vmem:[#allocation5 + $0x154] sm:$0xff]
    %v155 = vld [vmem:[#allocation5 + $0x15c] sm:$0xff]
    %v156 = vld [vmem:[#allocation5 + $0x168] sm:$0xff]
    %v157 = vld [vmem:[#allocation5 + $0x170] sm:$0xff]
    %v158 = vld [vmem:[#allocation5 + $0x17c] sm:$0xff]
    %v159 = vld [vmem:[#allocation5 + $0x184] sm:$0xff]
    %v160 = vld [vmem:[#allocation5 + $0x190] sm:$0xff]
    %v161 = vld [vmem:[#allocation5 + $0x198] sm:$0xff]
    %v162 = vld [vmem:[#allocation5 + $0x1a4] sm:$0xff]
    %v163 = vld [vmem:[#allocation5 + $0x1ac] sm:$0xff]
    %v164 = vld [vmem:[#allocation5 + $0x1b8] sm:$0xff]
    %v165 = vld [vmem:[#allocation5 + $0x1c0] sm:$0xff]
    %v166 = vld [vmem:[#allocation5 + $0x1cc] sm:$0xff]
    %v167 = vld [vmem:[#allocation5 + $0x1d4] sm:$0xff]
    %v168 = vld [vmem:[#allocation5 + $0x1e0] sm:$0xff]
    %v169 = vld [vmem:[#allocation5 + $0x1e8] sm:$0xff]
    %v170 = vld [vmem:[#allocation5 + $0x1f4] sm:$0xff]
    %v171 = vld [vmem:[#allocation5 + $0x1fc] sm:$0xff]
    %v172 = vld [vmem:[#allocation5 + $0x208] sm:$0xff]
    %v173 = vld [vmem:[#allocation5 + $0x210] sm:$0xff]
    %v174 = vld [vmem:[#allocation5 + $0x21c] sm:$0xff]
    %v175 = vld [vmem:[#allocation5 + $0x224] sm:$0xff]
    %v176 = vld [vmem:[#allocation5 + $0x230] sm:$0xff]
    %v177 = vld [vmem:[#allocation5 + $0x238] sm:$0xff]
    %v178 = vld [vmem:[#allocation5 + $0x244] sm:$0xff]
    %v179 = vld [vmem:[#allocation5 + $0x24c] sm:$0xff]
    %v180 = vld [vmem:[#allocation5 + $0x258] sm:$0xff]
    %v181 = vld [vmem:[#allocation5 + $0x260] sm:$0xff]
    %v182 = vld [vmem:[#allocation5 + $0x26c] sm:$0xff]
    %v183 = vld [vmem:[#allocation5 + $0x274] sm:$0xff]
    %v184 = vld [vmem:[#allocation5 + $0x280] sm:$0xff]
    %v185 = vld [vmem:[#allocation5 + $0x288] sm:$0xff]
    %v186 = vld [vmem:[#allocation5 + $0x294] sm:$0xff]
    %v187 = vld [vmem:[#allocation5 + $0x29c] sm:$0xff]
    %v188 = vld [vmem:[#allocation5 + $0x2a8] sm:$0xff]
    %v189 = vld [vmem:[#allocation5 + $0x2b0] sm:$0xff]
    %v190 = vld [vmem:[#allocation5 + $0x2bc] sm:$0xff]
    %v191 = vld [vmem:[#allocation5 + $0x2c4] sm:$0xff]
    %v192 = vld [vmem:[#allocation5 + $0x2d0] sm:$0xff]
    %v193 = vld [vmem:[#allocation5 + $0x2d8] sm:$0xff]
    %v194 = vld [vmem:[#allocation5 + $0x2e4] sm:$0xff]
    %v195 = vld [vmem:[#allocation5 + $0x2ec] sm:$0xff]
    %v196 = vld [vmem:[#allocation5 + $0x2f8] sm:$0xff]
    %v197 = vld [vmem:[#allocation5 + $0x300] sm:$0xff]
    %v198 = vld [vmem:[#allocation5 + $0x30c] sm:$0xff]
    %v199 = vld [vmem:[#allocation5 + $0x314] sm:$0xff]
    %v200 = vld [vmem:[#allocation5 + $0x320] sm:$0xff]
    %v201 = vld [vmem:[#allocation5 + $0x328] sm:$0xff]
    %v202 = vld [vmem:[#allocation5 + $0x334] sm:$0xff]
    %v203 = vld [vmem:[#allocation5 + $0x33c] sm:$0xff]
    %v204 = vld [vmem:[#allocation5 + $0x348] sm:$0xff]
    %v205 = vld [vmem:[#allocation5 + $0x350] sm:$0xff]
    %v206 = vld [vmem:[#allocation5 + $0x35c] sm:$0xff]
    %v207 = vld [vmem:[#allocation5 + $0x364] sm:$0xff]
    %v208 = vld [vmem:[#allocation5 + $0x370] sm:$0xff]
    %v209 = vld [vmem:[#allocation5 + $0x378] sm:$0xff]
    %v210 = vld [vmem:[#allocation5 + $0x384] sm:$0xff]
    %v211 = vld [vmem:[#allocation5 + $0x38c] sm:$0xff]
    %v212 = vld [vmem:[#allocation5 + $0x398] sm:$0xff]
    %v213 = vld [vmem:[#allocation5 + $0x3a0] sm:$0xff]
    %v214 = vld [vmem:[#allocation5 + $0x3ac] sm:$0xff]
    %v215 = vld [vmem:[#allocation5 + $0x3b4] sm:$0xff]
    %v216 = vld [vmem:[#allocation5 + $0x3c0] sm:$0xff]
    %v217 = vld [vmem:[#allocation5 + $0x3c8] sm:$0xff]
    %v218 = vld [vmem:[#allocation5 + $0x3d4] sm:$0xff]
    %v219 = vld [vmem:[#allocation5 + $0x3dc] sm:$0xff]
    %v220 = vld [vmem:[#allocation5 + $0x3e8] sm:$0xff]
    %v221 = vld [vmem:[#allocation5 + $0x3f0] sm:$0xff]
    %v222 = vld [vmem:[#allocation5 + $0x3fc] sm:$0xff]
    %v223 = vld [vmem:[#allocation5 + $0x404] sm:$0xff]
    %v224 = vld [vmem:[#allocation5 + $0x410] sm:$0xff]
    %v225 = vld [vmem:[#allocation5 + $0x418] sm:$0xff]
    %v226 = vld [vmem:[#allocation5 + $0x424] sm:$0xff]
    %v227 = vld [vmem:[#allocation5 + $0x42c] sm:$0xff]
    %v228 = vld [vmem:[#allocation5 + $0x438] sm:$0xff]
    %v229 = vld [vmem:[#allocation5 + $0x440] sm:$0xff]
    %v230 = vld [vmem:[#allocation5 + $0x44c] sm:$0xff]
    %v231 = vld [vmem:[#allocation5 + $0x454] sm:$0xff]
    %v232 = vld [vmem:[#allocation5 + $0x460] sm:$0xff]
    %v233 = vld [vmem:[#allocation5 + $0x468] sm:$0xff]
    %v234 = vld [vmem:[#allocation5 + $0x474] sm:$0xff]
    %v235 = vld [vmem:[#allocation5 + $0x47c] sm:$0xff]
    %v236 = vld [vmem:[#allocation5 + $0x488] sm:$0xff]
    %v237 = vld [vmem:[#allocation5 + $0x490] sm:$0xff]
    %v238 = vld [vmem:[#allocation5 + $0x49c] sm:$0xff]
    %v239 = vld [vmem:[#allocation5 + $0x4a4] sm:$0xff]
    %v240 = vld [vmem:[#allocation5 + $0x4b0] sm:$0xff]
    %v241 = vld [vmem:[#allocation5 + $0x4b8] sm:$0xff]
    %v242 = vld [vmem:[#allocation5 + $0x4c4] sm:$0xff]
    %v243 = vld [vmem:[#allocation5 + $0x4cc] sm:$0xff]
    %v244 = vld [vmem:[#allocation5 + $0x4d8] sm:$0xff]
    %v245 = vld [vmem:[#allocation5 + $0x4e0] sm:$0xff]
    %v246 = vld [vmem:[#allocation5 + $0x4ec] sm:$0xff]
    %v247 = vld [vmem:[#allocation5 + $0x4f4] sm:$0xff]
    %v248 = vld [vmem:[#allocation5 + $0x500] sm:$0xff]
    %v249 = vld [vmem:[#allocation5 + $0x508] sm:$0xff]
    %v250 = vld [vmem:[#allocation5 + $0x514] sm:$0xff]
    %v251 = vld [vmem:[#allocation5 + $0x51c] sm:$0xff]
    %v252 = vld [vmem:[#allocation5 + $0x528] sm:$0xff]
    %v253 = vld [vmem:[#allocation5 + $0x530] sm:$0xff]
    %v254 = vld [vmem:[#allocation5 + $0x53c] sm:$0xff]
    %v255 = vld [vmem:[#allocation5 + $0x544] sm:$0xff]
    %v256 = vld [vmem:[#allocation5 + $0x550] sm:$0xff]
    %v257 = vld [vmem:[#allocation5 + $0x558] sm:$0xff]
    %v258 = vld [vmem:[#allocation5 + $0x564] sm:$0xff]
    %v259 = vld [vmem:[#allocation5 + $0x56c] sm:$0xff]
    %v260 = vld [vmem:[#allocation5 + $0x578] sm:$0xff]
    %v261 = vld [vmem:[#allocation5 + $0x580] sm:$0xff]
    %v262 = vld [vmem:[#allocation5 + $0x58c] sm:$0xff]
    %v263 = vld [vmem:[#allocation5 + $0x594] sm:$0xff]
    %v264 = vld [vmem:[#allocation5 + $0x5a0] sm:$0xff]
    %v265 = vld [vmem:[#allocation5 + $0x5a8] sm:$0xff]
    %v266 = vld [vmem:[#allocation5 + $0x5b4] sm:$0xff]
    %v267 = vld [vmem:[#allocation5 + $0x5bc] sm:$0xff]
    %v268 = vld [vmem:[#allocation5 + $0x5c8] sm:$0xff]
    %v269 = vld [vmem:[#allocation5 + $0x5d0] sm:$0xff]
    %v270 = vld [vmem:[#allocation5 + $0x5dc] sm:$0xff]
    %v271 = vld [vmem:[#allocation5 + $0x5e4] sm:$0xff]
    %v272 = vld [vmem:[#allocation5 + $0x5f0] sm:$0xff]
    %v273 = vld [vmem:[#allocation5 + $0x5f8] sm:$0xff]
    %v274 = vld [vmem:[#allocation5 + $0x604] sm:$0xff]
    %v275 = vld [vmem:[#allocation5 + $0x60c] sm:$0xff]
    %v276 = vld [vmem:[#allocation5 + $0x618] sm:$0xff]
    %v277 = vld [vmem:[#allocation5 + $0x620] sm:$0xff]
    %v278 = vld [vmem:[#allocation5 + $0x62c] sm:$0xff]
    %v279 = vld [vmem:[#allocation5 + $0x634] sm:$0xff]
    %v280 = vld [vmem:[#allocation5 + $0x640] sm:$0xff]
    %v281 = vld [vmem:[#allocation5 + $0x648] sm:$0xff]
    %v282 = vld [vmem:[#allocation5 + $0x654] sm:$0xff]
    %v283 = vld [vmem:[#allocation5 + $0x65c] sm:$0xff]
    %v284 = vld [vmem:[#allocation5 + $0x668] sm:$0xff]
    %v285 = vld [vmem:[#allocation5 + $0x670] sm:$0xff]
    %v286 = vld [vmem:[#allocation5 + $0x67c] sm:$0xff]
    %v287 = vld [vmem:[#allocation5 + $0x684] sm:$0xff]
    %v288 = vld [vmem:[#allocation5 + $0x690] sm:$0xff]
    %v289 = vld [vmem:[#allocation5 + $0x698] sm:$0xff]
    %v290 = vld [vmem:[#allocation5 + $0x6a4] sm:$0xff]
    %v291 = vld [vmem:[#allocation5 + $0x6ac] sm:$0xff]
    %v292 = vld [vmem:[#allocation5 + $0x6b8] sm:$0xff]
    %v293 = vld [vmem:[#allocation5 + $0x6c0] sm:$0xff]
    %v294 = vld [vmem:[#allocation5 + $0x6cc] sm:$0xff]
    %v295 = vld [vmem:[#allocation5 + $0x6d4] sm:$0xff]
    %v296 = vld [vmem:[#allocation5 + $0x6e0] sm:$0xff]
    %v297 = vld [vmem:[#allocation5 + $0x6e8] sm:$0xff]
    %v298 = vld [vmem:[#allocation5 + $0x6f4] sm:$0xff]
    %v299 = vld [vmem:[#allocation5 + $0x6fc] sm:$0xff]
    %v300 = vld [vmem:[#allocation5 + $0x708] sm:$0xff]
    %v301 = vld [vmem:[#allocation5 + $0x710] sm:$0xff]
    %v302 = vld [vmem:[#allocation5 + $0x71c] sm:$0xff]
    %v303 = vld [vmem:[#allocation5 + $0x724] sm:$0xff]
    %v304 = vld [vmem:[#allocation5 + $0x730] sm:$0xff]
    %v305 = vld [vmem:[#allocation5 + $0x738] sm:$0xff]
    %v306 = vld [vmem:[#allocation5 + $0x744] sm:$0xff]
    %v307 = vld [vmem:[#allocation5 + $0x74c] sm:$0xff]
    %v308 = vld [vmem:[#allocation5 + $0x758] sm:$0xff]
    %v309 = vld [vmem:[#allocation5 + $0x760] sm:$0xff]
    %v310 = vld [vmem:[#allocation5 + $0x76c] sm:$0xff]
    %v311 = vld [vmem:[#allocation5 + $0x774] sm:$0xff]
    %v312 = vld [vmem:[#allocation5 + $0x780] sm:$0xff]
    %v313 = vld [vmem:[#allocation5 + $0x788] sm:$0xff]
    %v314 = vld [vmem:[#allocation5 + $0x794] sm:$0xff]
    %v315 = vld [vmem:[#allocation5 + $0x79c] sm:$0xff]
    %v316 = vld [vmem:[#allocation5 + $0x7a8] sm:$0xff]
    %v317 = vld [vmem:[#allocation5 + $0x7b0] sm:$0xff]
    %v318 = vld [vmem:[#allocation5 + $0x7bc] sm:$0xff]
    %v319 = vld [vmem:[#allocation5 + $0x7c4] sm:$0xff]
    %v320 = vld [vmem:[#allocation5 + $0x7d0] sm:$0xff]
    %v321 = vld [vmem:[#allocation5 + $0x7d8] sm:$0xff]
    %v322 = vld [vmem:[#allocation5 + $0x7e4] sm:$0xff]
    %v323 = vld [vmem:[#allocation5 + $0x7ec] sm:$0xff]
    %v324 = vld [vmem:[#allocation5 + $0x7f8] sm:$0xff]
    %v325 = vld [vmem:[#allocation5 + $0x800] sm:$0xff]
    %v326 = vld [vmem:[#allocation5 + $0x80c] sm:$0xff]
    %v327 = vld [vmem:[#allocation5 + $0x814] sm:$0xff]
    %v328 = vld [vmem:[#allocation5 + $0x820] sm:$0xff]
    %v329 = vld [vmem:[#allocation5 + $0x828] sm:$0xff]
    %v330 = vld [vmem:[#allocation5 + $0x834] sm:$0xff]
    %v331 = vld [vmem:[#allocation5 + $0x83c] sm:$0xff]
    %v332 = vld [vmem:[#allocation5 + $0x848] sm:$0xff]
    %v333 = vld [vmem:[#allocation5 + $0x850] sm:$0xff]
    %v334 = vld [vmem:[#allocation5 + $0x85c] sm:$0xff]
    %v335 = vld [vmem:[#allocation5 + $0x864] sm:$0xff]
    %v336 = vld [vmem:[#allocation5 + $0x870] sm:$0xff]
    %v337 = vld [vmem:[#allocation5 + $0x878] sm:$0xff]
    %v338 = vld [vmem:[#allocation5 + $0x884] sm:$0xff]
    %v339 = vld [vmem:[#allocation5 + $0x88c] sm:$0xff]
    %v340 = vld [vmem:[#allocation5 + $0x898] sm:$0xff]
    %v341 = vld [vmem:[#allocation5 + $0x8a0] sm:$0xff]
    %v342 = vld [vmem:[#allocation5 + $0x8ac] sm:$0xff]
    %v343 = vld [vmem:[#allocation5 + $0x8b4] sm:$0xff]
    %v344 = vld [vmem:[#allocation5 + $0x8c0] sm:$0xff]
    %v345 = vld [vmem:[#allocation5 + $0x8c8] sm:$0xff]
    %v346 = vld [vmem:[#allocation5 + $0x8d4] sm:$0xff]
    %v347 = vld [vmem:[#allocation5 + $0x8dc] sm:$0xff]
    %v348 = vld [vmem:[#allocation5 + $0x8e8] sm:$0xff]
    %v349 = vld [vmem:[#allocation5 + $0x8f0] sm:$0xff]
    %v350 = vld [vmem:[#allocation5 + $0x8fc] sm:$0xff]
    %v351 = vld [vmem:[#allocation5 + $0x904] sm:$0xff]
    %v352 = vld [vmem:[#allocation5 + $0x910] sm:$0xff]
    %v353 = vld [vmem:[#allocation5 + $0x918] sm:$0xff]
    %v354 = vld [vmem:[#allocation5 + $0x924] sm:$0xff]
    %v355 = vld [vmem:[#allocation5 + $0x92c] sm:$0xff]
    %v356 = vld [vmem:[#allocation5 + $0x938] sm:$0xff]
    %v357 = vld [vmem:[#allocation5 + $0x940] sm:$0xff]
    %v358 = vld [vmem:[#allocation5 + $0x94c] sm:$0xff]
    %v359 = vld [vmem:[#allocation5 + $0x954] sm:$0xff]
    %v360 = vld [vmem:[#allocation5 + $0x960] sm:$0xff]
    %v361 = vld [vmem:[#allocation5 + $0x968] sm:$0xff]
    %v362 = vld [vmem:[#allocation5 + $0x974] sm:$0xff]
    %v363 = vld [vmem:[#allocation5 + $0x97c] sm:$0xff]
    %v364 = vld [vmem:[#allocation5 + $0x988] sm:$0xff]
    %v365 = vld [vmem:[#allocation5 + $0x990] sm:$0xff]
    %v366 = vld [vmem:[#allocation5 + $0x99c] sm:$0xff]
    %v367 = vld [vmem:[#allocation5 + $0x9a4] sm:$0xff]
    %v368 = vld [vmem:[#allocation5 + $0x9b0] sm:$0xff]
    %v369 = vld [vmem:[#allocation5 + $0x9b8] sm:$0xff]
    %v370 = vld [vmem:[#allocation5 + $0x9c4] sm:$0xff]
    %v371 = vld [vmem:[#allocation5 + $0x9cc] sm:$0xff]
    %v372 = vld [vmem:[#allocation5 + $0x9d8] sm:$0xff]
    %v373 = vld [vmem:[#allocation5 + $0x9e0] sm:$0xff]
    %v374 = vld [vmem:[#allocation5 + $0x9ec] sm:$0xff]
    %v375 = vld [vmem:[#allocation5 + $0x9f4] sm:$0xff]
    %v440 = vunpack.c.l.b16 %v56
    %v441 = vunpack.c.h.b16 %v56
    %v442 = vunpack.c.l.b16 %v57
    %v443 = vunpack.c.h.b16 %v57
    %v444 = vunpack.c.l.b16 %v58
    %v445 = vunpack.c.h.b16 %v58
    %v446 = vunpack.c.l.b16 %v59
    %v447 = vunpack.c.h.b16 %v59
    %v448 = vunpack.c.l.b16 %v60
    %v449 = vunpack.c.h.b16 %v60
    %v450 = vunpack.c.l.b16 %v61
    %v451 = vunpack.c.h.b16 %v61
    %v452 = vunpack.c.l.b16 %v62
    %v453 = vunpack.c.h.b16 %v62
    %v454 = vunpack.c.l.b16 %v63
    %v455 = vunpack.c.h.b16 %v63
    %v456 = vunpack.c.l.b16 %v64
    %v457 = vunpack.c.h.b16 %v64
    %v458 = vunpack.c.l.b16 %v65
    %v459 = vunpack.c.h.b16 %v65
    %v460 = vunpack.c.l.b16 %v66
    %v461 = vunpack.c.h.b16 %v66
    %v462 = vunpack.c.l.b16 %v67
    %v463 = vunpack.c.h.b16 %v67
    %v464 = vunpack.c.l.b16 %v68
    %v465 = vunpack.c.h.b16 %v68
    %v466 = vunpack.c.l.b16 %v69
    %v467 = vunpack.c.h.b16 %v69
    %v468 = vunpack.c.l.b16 %v70
    %v469 = vunpack.c.h.b16 %v70
    %v470 = vunpack.c.l.b16 %v71
    %v471 = vunpack.c.h.b16 %v71
    %v472 = vunpack.c.l.b16 %v72
    %v473 = vunpack.c.h.b16 %v72
    %v474 = vunpack.c.l.b16 %v73
    %v475 = vunpack.c.h.b16 %v73
    %v476 = vunpack.c.l.b16 %v74
    %v477 = vunpack.c.h.b16 %v74
    %v478 = vunpack.c.l.b16 %v75
    %v479 = vunpack.c.h.b16 %v75
    %v480 = vunpack.c.l.b16 %v76
    %v481 = vunpack.c.h.b16 %v76
    %v482 = vunpack.c.l.b16 %v77
    %v483 = vunpack.c.h.b16 %v77
    %v484 = vunpack.c.l.b16 %v78
    %v485 = vunpack.c.h.b16 %v78
    %v486 = vunpack.c.l.b16 %v79
    %v487 = vunpack.c.h.b16 %v79
    %v488 = vunpack.c.l.b16 %v80
    %v489 = vunpack.c.h.b16 %v80
    %v490 = vunpack.c.l.b16 %v81
    %v491 = vunpack.c.h.b16 %v81
    %v492 = vunpack.c.l.b16 %v82
    %v493 = vunpack.c.h.b16 %v82
    %v494 = vunpack.c.l.b16 %v83
    %v495 = vunpack.c.h.b16 %v83
    %v496 = vunpack.c.l.b16 %v84
    %v497 = vunpack.c.h.b16 %v84
    %v498 = vunpack.c.l.b16 %v85
    %v499 = vunpack.c.h.b16 %v85
    %v500 = vunpack.c.l.b16 %v86
    %v501 = vunpack.c.h.b16 %v86
    %v502 = vunpack.c.l.b16 %v87
    %v503 = vunpack.c.h.b16 %v87
    %v504 = vunpack.c.l.b16 %v88
    %v505 = vunpack.c.h.b16 %v88
    %v506 = vunpack.c.l.b16 %v89
    %v507 = vunpack.c.h.b16 %v89
    %v508 = vunpack.c.l.b16 %v90
    %v509 = vunpack.c.h.b16 %v90
    %v510 = vunpack.c.l.b16 %v91
    %v511 = vunpack.c.h.b16 %v91
    %v512 = vunpack.c.l.b16 %v92
    %v513 = vunpack.c.h.b16 %v92
    %v514 = vunpack.c.l.b16 %v93
    %v515 = vunpack.c.h.b16 %v93
    %v516 = vunpack.c.l.b16 %v94
    %v517 = vunpack.c.h.b16 %v94
    %v518 = vunpack.c.l.b16 %v95
    %v519 = vunpack.c.h.b16 %v95
    %v520 = vunpack.c.l.b16 %v96
    %v521 = vunpack.c.h.b16 %v96
    %v522 = vunpack.c.l.b16 %v97
    %v523 = vunpack.c.h.b16 %v97
    %v524 = vunpack.c.l.b16 %v98
    %v525 = vunpack.c.h.b16 %v98
    %v526 = vunpack.c.l.b16 %v99
    %v527 = vunpack.c.h.b16 %v99
    %v528 = vunpack.c.l.b16 %v100
    %v529 = vunpack.c.h.b16 %v100
    %v530 = vunpack.c.l.b16 %v101
    %v531 = vunpack.c.h.b16 %v101
    %v532 = vunpack.c.l.b16 %v102
    %v533 = vunpack.c.h.b16 %v102
    %v534 = vunpack.c.l.b16 %v103
    %v535 = vunpack.c.h.b16 %v103
    %v536 = vunpack.c.l.b16 %v104
    %v537 = vunpack.c.h.b16 %v104
    %v538 = vunpack.c.l.b16 %v105
    %v539 = vunpack.c.h.b16 %v105
    %v540 = vunpack.c.l.b16 %v106
    %v541 = vunpack.c.h.b16 %v106
    %v542 = vunpack.c.l.b16 %v107
    %v543 = vunpack.c.h.b16 %v107
    %v544 = vunpack.c.l.b16 %v108
    %v545 = vunpack.c.h.b16 %v108
    %v546 = vunpack.c.l.b16 %v109
    %v547 = vunpack.c.h.b16 %v109
    %v548 = vunpack.c.l.b16 %v110
    %v549 = vunpack.c.h.b16 %v110
    %v550 = vunpack.c.l.b16 %v111
    %v551 = vunpack.c.h.b16 %v111
    %v552 = vunpack.c.l.b16 %v112
    %v553 = vunpack.c.h.b16 %v112
    %v554 = vunpack.c.l.b16 %v113
    %v555 = vunpack.c.h.b16 %v113
    %v556 = vunpack.c.l.b16 %v114
    %v557 = vunpack.c.h.b16 %v114
    %v558 = vunpack.c.l.b16 %v115
    %v559 = vunpack.c.h.b16 %v115
    %v560 = vunpack.c.l.b16 %v116
    %v561 = vunpack.c.h.b16 %v116
    %v562 = vunpack.c.l.b16 %v117
    %v563 = vunpack.c.h.b16 %v117
    %v564 = vunpack.c.l.b16 %v118
    %v565 = vunpack.c.h.b16 %v118
    %v566 = vunpack.c.l.b16 %v119
    %v567 = vunpack.c.h.b16 %v119
    %v568 = vpack.c.b16 %v448, %v440
    %v569 = vpack.c.b16 %v449, %v441
    %v570 = vpack.c.b16 %v450, %v442
    %v571 = vpack.c.b16 %v451, %v443
    %v572 = vpack.c.b16 %v452, %v444
    %v573 = vpack.c.b16 %v453, %v445
    %v574 = vpack.c.b16 %v454, %v446
    %v575 = vpack.c.b16 %v455, %v447
    %v576 = vpack.c.b16 %v464, %v456
    %v577 = vpack.c.b16 %v465, %v457
    %v578 = vpack.c.b16 %v466, %v458
    %v579 = vpack.c.b16 %v467, %v459
    %v580 = vpack.c.b16 %v468, %v460
    %v581 = vpack.c.b16 %v469, %v461
    %v582 = vpack.c.b16 %v470, %v462
    %v583 = vpack.c.b16 %v471, %v463
    %v584 = vpack.c.b16 %v480, %v472
    %v585 = vpack.c.b16 %v481, %v473
    %v586 = vpack.c.b16 %v482, %v474
    %v587 = vpack.c.b16 %v483, %v475
    %v588 = vpack.c.b16 %v484, %v476
    %v589 = vpack.c.b16 %v485, %v477
    %v590 = vpack.c.b16 %v486, %v478
    %v591 = vpack.c.b16 %v487, %v479
    %v592 = vpack.c.b16 %v496, %v488
    %v593 = vpack.c.b16 %v497, %v489
    %v594 = vpack.c.b16 %v498, %v490
    %v595 = vpack.c.b16 %v499, %v491
    %v596 = vpack.c.b16 %v500, %v492
    %v597 = vpack.c.b16 %v501, %v493
    %v598 = vpack.c.b16 %v502, %v494
    %v599 = vpack.c.b16 %v503, %v495
    %v600 = vpack.c.b16 %v512, %v504
    %v601 = vpack.c.b16 %v513, %v505
    %v602 = vpack.c.b16 %v514, %v506
    %v603 = vpack.c.b16 %v515, %v507
    %v604 = vpack.c.b16 %v516, %v508
    %v605 = vpack.c.b16 %v517, %v509
    %v606 = vpack.c.b16 %v518, %v510
    %v607 = vpack.c.b16 %v519, %v511
    %v608 = vpack.c.b16 %v528, %v520
    %v609 = vpack.c.b16 %v529, %v521
    %v610 = vpack.c.b16 %v530, %v522
    %v611 = vpack.c.b16 %v531, %v523
    %v612 = vpack.c.b16 %v532, %v524
    %v613 = vpack.c.b16 %v533, %v525
    %v614 = vpack.c.b16 %v534, %v526
    %v615 = vpack.c.b16 %v535, %v527
    %v616 = vpack.c.b16 %v544, %v536
    %v617 = vpack.c.b16 %v545, %v537
    %v618 = vpack.c.b16 %v546, %v538
    %v619 = vpack.c.b16 %v547, %v539
    %v620 = vpack.c.b16 %v548, %v540
    %v621 = vpack.c.b16 %v549, %v541
    %v622 = vpack.c.b16 %v550, %v542
    %v623 = vpack.c.b16 %v551, %v543
    %v624 = vpack.c.b16 %v560, %v552
    %v625 = vpack.c.b16 %v561, %v553
    %v626 = vpack.c.b16 %v562, %v554
    %v627 = vpack.c.b16 %v563, %v555
    %v628 = vpack.c.b16 %v564, %v556
    %v629 = vpack.c.b16 %v565, %v557
    %v630 = vpack.c.b16 %v566, %v558
    %v631 = vpack.c.b16 %v567, %v559
    %v952 = vunpack.c.l.b16 %v120
    %v953 = vunpack.c.h.b16 %v120
    %v954 = vunpack.c.l.b16 %v121
    %v955 = vunpack.c.h.b16 %v121
    %v956 = vunpack.c.l.b16 %v122
    %v957 = vunpack.c.h.b16 %v122
    %v958 = vunpack.c.l.b16 %v123
    %v959 = vunpack.c.h.b16 %v123
    %v960 = vunpack.c.l.b16 %v124
    %v961 = vunpack.c.h.b16 %v124
    %v962 = vunpack.c.l.b16 %v125
    %v963 = vunpack.c.h.b16 %v125
    %v964 = vunpack.c.l.b16 %v126
    %v965 = vunpack.c.h.b16 %v126
    %v966 = vunpack.c.l.b16 %v127
    %v967 = vunpack.c.h.b16 %v127
    %v968 = vunpack.c.l.b16 %v128
    %v969 = vunpack.c.h.b16 %v128
    %v970 = vunpack.c.l.b16 %v129
    %v971 = vunpack.c.h.b16 %v129
    %v972 = vunpack.c.l.b16 %v130
    %v973 = vunpack.c.h.b16 %v130
    %v974 = vunpack.c.l.b16 %v131
    %v975 = vunpack.c.h.b16 %v131
    %v976 = vunpack.c.l.b16 %v132
    %v977 = vunpack.c.h.b16 %v132
    %v978 = vunpack.c.l.b16 %v133
    %v979 = vunpack.c.h.b16 %v133
    %v980 = vunpack.c.l.b16 %v134
    %v981 = vunpack.c.h.b16 %v134
    %v982 = vunpack.c.l.b16 %v135
    %v983 = vunpack.c.h.b16 %v135
    %v984 = vunpack.c.l.b16 %v136
    %v985 = vunpack.c.h.b16 %v136
    %v986 = vunpack.c.l.b16 %v137
    %v987 = vunpack.c.h.b16 %v137
    %v988 = vunpack.c.l.b16 %v138
    %v989 = vunpack.c.h.b16 %v138
    %v990 = vunpack.c.l.b16 %v139
    %v991 = vunpack.c.h.b16 %v139
    %v992 = vunpack.c.l.b16 %v140
    %v993 = vunpack.c.h.b16 %v140
    %v994 = vunpack.c.l.b16 %v141
    %v995 = vunpack.c.h.b16 %v141
    %v996 = vunpack.c.l.b16 %v142
    %v997 = vunpack.c.h.b16 %v142
    %v998 = vunpack.c.l.b16 %v143
    %v999 = vunpack.c.h.b16 %v143
    %v1000 = vunpack.c.l.b16 %v144
    %v1001 = vunpack.c.h.b16 %v144
    %v1002 = vunpack.c.l.b16 %v145
    %v1003 = vunpack.c.h.b16 %v145
    %v1004 = vunpack.c.l.b16 %v146
    %v1005 = vunpack.c.h.b16 %v146
    %v1006 = vunpack.c.l.b16 %v147
    %v1007 = vunpack.c.h.b16 %v147
    %v1008 = vunpack.c.l.b16 %v148
    %v1009 = vunpack.c.h.b16 %v148
    %v1010 = vunpack.c.l.b16 %v149
    %v1011 = vunpack.c.h.b16 %v149
    %v1012 = vunpack.c.l.b16 %v150
    %v1013 = vunpack.c.h.b16 %v150
    %v1014 = vunpack.c.l.b16 %v151
    %v1015 = vunpack.c.h.b16 %v151
    %v1016 = vunpack.c.l.b16 %v152
    %v1017 = vunpack.c.h.b16 %v152
    %v1018 = vunpack.c.l.b16 %v153
    %v1019 = vunpack.c.h.b16 %v153
    %v1020 = vunpack.c.l.b16 %v154
    %v1021 = vunpack.c.h.b16 %v154
    %v1022 = vunpack.c.l.b16 %v155
    %v1023 = vunpack.c.h.b16 %v155
    %v1024 = vunpack.c.l.b16 %v156
    %v1025 = vunpack.c.h.b16 %v156
    %v1026 = vunpack.c.l.b16 %v157
    %v1027 = vunpack.c.h.b16 %v157
    %v1028 = vunpack.c.l.b16 %v158
    %v1029 = vunpack.c.h.b16 %v158
    %v1030 = vunpack.c.l.b16 %v159
    %v1031 = vunpack.c.h.b16 %v159
    %v1032 = vunpack.c.l.b16 %v160
    %v1033 = vunpack.c.h.b16 %v160
    %v1034 = vunpack.c.l.b16 %v161
    %v1035 = vunpack.c.h.b16 %v161
    %v1036 = vunpack.c.l.b16 %v162
    %v1037 = vunpack.c.h.b16 %v162
    %v1038 = vunpack.c.l.b16 %v163
    %v1039 = vunpack.c.h.b16 %v163
    %v1040 = vunpack.c.l.b16 %v164
    %v1041 = vunpack.c.h.b16 %v164
    %v1042 = vunpack.c.l.b16 %v165
    %v1043 = vunpack.c.h.b16 %v165
    %v1044 = vunpack.c.l.b16 %v166
    %v1045 = vunpack.c.h.b16 %v166
    %v1046 = vunpack.c.l.b16 %v167
    %v1047 = vunpack.c.h.b16 %v167
    %v1048 = vunpack.c.l.b16 %v168
    %v1049 = vunpack.c.h.b16 %v168
    %v1050 = vunpack.c.l.b16 %v169
    %v1051 = vunpack.c.h.b16 %v169
    %v1052 = vunpack.c.l.b16 %v170
    %v1053 = vunpack.c.h.b16 %v170
    %v1054 = vunpack.c.l.b16 %v171
    %v1055 = vunpack.c.h.b16 %v171
    %v1056 = vunpack.c.l.b16 %v172
    %v1057 = vunpack.c.h.b16 %v172
    %v1058 = vunpack.c.l.b16 %v173
    %v1059 = vunpack.c.h.b16 %v173
    %v1060 = vunpack.c.l.b16 %v174
    %v1061 = vunpack.c.h.b16 %v174
    %v1062 = vunpack.c.l.b16 %v175
    %v1063 = vunpack.c.h.b16 %v175
    %v1064 = vunpack.c.l.b16 %v176
    %v1065 = vunpack.c.h.b16 %v176
    %v1066 = vunpack.c.l.b16 %v177
    %v1067 = vunpack.c.h.b16 %v177
    %v1068 = vunpack.c.l.b16 %v178
    %v1069 = vunpack.c.h.b16 %v178
    %v1070 = vunpack.c.l.b16 %v179
    %v1071 = vunpack.c.h.b16 %v179
    %v1072 = vunpack.c.l.b16 %v180
    %v1073 = vunpack.c.h.b16 %v180
    %v1074 = vunpack.c.l.b16 %v181
    %v1075 = vunpack.c.h.b16 %v181
    %v1076 = vunpack.c.l.b16 %v182
    %v1077 = vunpack.c.h.b16 %v182
    %v1078 = vunpack.c.l.b16 %v183
    %v1079 = vunpack.c.h.b16 %v183
    %v1080 = vunpack.c.l.b16 %v184
    %v1081 = vunpack.c.h.b16 %v184
    %v1082 = vunpack.c.l.b16 %v185
    %v1083 = vunpack.c.h.b16 %v185
    %v1084 = vunpack.c.l.b16 %v186
    %v1085 = vunpack.c.h.b16 %v186
    %v1086 = vunpack.c.l.b16 %v187
    %v1087 = vunpack.c.h.b16 %v187
    %v1088 = vunpack.c.l.b16 %v188
    %v1089 = vunpack.c.h.b16 %v188
    %v1090 = vunpack.c.l.b16 %v189
    %v1091 = vunpack.c.h.b16 %v189
    %v1092 = vunpack.c.l.b16 %v190
    %v1093 = vunpack.c.h.b16 %v190
    %v1094 = vunpack.c.l.b16 %v191
    %v1095 = vunpack.c.h.b16 %v191
    %v1096 = vunpack.c.l.b16 %v192
    %v1097 = vunpack.c.h.b16 %v192
    %v1098 = vunpack.c.l.b16 %v193
    %v1099 = vunpack.c.h.b16 %v193
    %v1100 = vunpack.c.l.b16 %v194
    %v1101 = vunpack.c.h.b16 %v194
    %v1102 = vunpack.c.l.b16 %v195
    %v1103 = vunpack.c.h.b16 %v195
    %v1104 = vunpack.c.l.b16 %v196
    %v1105 = vunpack.c.h.b16 %v196
    %v1106 = vunpack.c.l.b16 %v197
    %v1107 = vunpack.c.h.b16 %v197
    %v1108 = vunpack.c.l.b16 %v198
    %v1109 = vunpack.c.h.b16 %v198
    %v1110 = vunpack.c.l.b16 %v199
    %v1111 = vunpack.c.h.b16 %v199
    %v1112 = vunpack.c.l.b16 %v200
    %v1113 = vunpack.c.h.b16 %v200
    %v1114 = vunpack.c.l.b16 %v201
    %v1115 = vunpack.c.h.b16 %v201
    %v1116 = vunpack.c.l.b16 %v202
    %v1117 = vunpack.c.h.b16 %v202
    %v1118 = vunpack.c.l.b16 %v203
    %v1119 = vunpack.c.h.b16 %v203
    %v1120 = vunpack.c.l.b16 %v204
    %v1121 = vunpack.c.h.b16 %v204
    %v1122 = vunpack.c.l.b16 %v205
    %v1123 = vunpack.c.h.b16 %v205
    %v1124 = vunpack.c.l.b16 %v206
    %v1125 = vunpack.c.h.b16 %v206
    %v1126 = vunpack.c.l.b16 %v207
    %v1127 = vunpack.c.h.b16 %v207
    %v1128 = vunpack.c.l.b16 %v208
    %v1129 = vunpack.c.h.b16 %v208
    %v1130 = vunpack.c.l.b16 %v209
    %v1131 = vunpack.c.h.b16 %v209
    %v1132 = vunpack.c.l.b16 %v210
    %v1133 = vunpack.c.h.b16 %v210
    %v1134 = vunpack.c.l.b16 %v211
    %v1135 = vunpack.c.h.b16 %v211
    %v1136 = vunpack.c.l.b16 %v212
    %v1137 = vunpack.c.h.b16 %v212
    %v1138 = vunpack.c.l.b16 %v213
    %v1139 = vunpack.c.h.b16 %v213
    %v1140 = vunpack.c.l.b16 %v214
    %v1141 = vunpack.c.h.b16 %v214
    %v1142 = vunpack.c.l.b16 %v215
    %v1143 = vunpack.c.h.b16 %v215
    %v1144 = vunpack.c.l.b16 %v216
    %v1145 = vunpack.c.h.b16 %v216
    %v1146 = vunpack.c.l.b16 %v217
    %v1147 = vunpack.c.h.b16 %v217
    %v1148 = vunpack.c.l.b16 %v218
    %v1149 = vunpack.c.h.b16 %v218
    %v1150 = vunpack.c.l.b16 %v219
    %v1151 = vunpack.c.h.b16 %v219
    %v1152 = vunpack.c.l.b16 %v220
    %v1153 = vunpack.c.h.b16 %v220
    %v1154 = vunpack.c.l.b16 %v221
    %v1155 = vunpack.c.h.b16 %v221
    %v1156 = vunpack.c.l.b16 %v222
    %v1157 = vunpack.c.h.b16 %v222
    %v1158 = vunpack.c.l.b16 %v223
    %v1159 = vunpack.c.h.b16 %v223
    %v1160 = vunpack.c.l.b16 %v224
    %v1161 = vunpack.c.h.b16 %v224
    %v1162 = vunpack.c.l.b16 %v225
    %v1163 = vunpack.c.h.b16 %v225
    %v1164 = vunpack.c.l.b16 %v226
    %v1165 = vunpack.c.h.b16 %v226
    %v1166 = vunpack.c.l.b16 %v227
    %v1167 = vunpack.c.h.b16 %v227
    %v1168 = vunpack.c.l.b16 %v228
    %v1169 = vunpack.c.h.b16 %v228
    %v1170 = vunpack.c.l.b16 %v229
    %v1171 = vunpack.c.h.b16 %v229
    %v1172 = vunpack.c.l.b16 %v230
    %v1173 = vunpack.c.h.b16 %v230
    %v1174 = vunpack.c.l.b16 %v231
    %v1175 = vunpack.c.h.b16 %v231
    %v1176 = vunpack.c.l.b16 %v232
    %v1177 = vunpack.c.h.b16 %v232
    %v1178 = vunpack.c.l.b16 %v233
    %v1179 = vunpack.c.h.b16 %v233
    %v1180 = vunpack.c.l.b16 %v234
    %v1181 = vunpack.c.h.b16 %v234
    %v1182 = vunpack.c.l.b16 %v235
    %v1183 = vunpack.c.h.b16 %v235
    %v1184 = vunpack.c.l.b16 %v236
    %v1185 = vunpack.c.h.b16 %v236
    %v1186 = vunpack.c.l.b16 %v237
    %v1187 = vunpack.c.h.b16 %v237
    %v1188 = vunpack.c.l.b16 %v238
    %v1189 = vunpack.c.h.b16 %v238
    %v1190 = vunpack.c.l.b16 %v239
    %v1191 = vunpack.c.h.b16 %v239
    %v1192 = vunpack.c.l.b16 %v240
    %v1193 = vunpack.c.h.b16 %v240
    %v1194 = vunpack.c.l.b16 %v241
    %v1195 = vunpack.c.h.b16 %v241
    %v1196 = vunpack.c.l.b16 %v242
    %v1197 = vunpack.c.h.b16 %v242
    %v1198 = vunpack.c.l.b16 %v243
    %v1199 = vunpack.c.h.b16 %v243
    %v1200 = vunpack.c.l.b16 %v244
    %v1201 = vunpack.c.h.b16 %v244
    %v1202 = vunpack.c.l.b16 %v245
    %v1203 = vunpack.c.h.b16 %v245
    %v1204 = vunpack.c.l.b16 %v246
    %v1205 = vunpack.c.h.b16 %v246
    %v1206 = vunpack.c.l.b16 %v247
    %v1207 = vunpack.c.h.b16 %v247
    %v1208 = vunpack.c.l.b16 %v248
    %v1209 = vunpack.c.h.b16 %v248
    %v1210 = vunpack.c.l.b16 %v249
    %v1211 = vunpack.c.h.b16 %v249
    %v1212 = vunpack.c.l.b16 %v250
    %v1213 = vunpack.c.h.b16 %v250
    %v1214 = vunpack.c.l.b16 %v251
    %v1215 = vunpack.c.h.b16 %v251
    %v1216 = vunpack.c.l.b16 %v252
    %v1217 = vunpack.c.h.b16 %v252
    %v1218 = vunpack.c.l.b16 %v253
    %v1219 = vunpack.c.h.b16 %v253
    %v1220 = vunpack.c.l.b16 %v254
    %v1221 = vunpack.c.h.b16 %v254
    %v1222 = vunpack.c.l.b16 %v255
    %v1223 = vunpack.c.h.b16 %v255
    %v1224 = vunpack.c.l.b16 %v256
    %v1225 = vunpack.c.h.b16 %v256
    %v1226 = vunpack.c.l.b16 %v257
    %v1227 = vunpack.c.h.b16 %v257
    %v1228 = vunpack.c.l.b16 %v258
    %v1229 = vunpack.c.h.b16 %v258
    %v1230 = vunpack.c.l.b16 %v259
    %v1231 = vunpack.c.h.b16 %v259
    %v1232 = vunpack.c.l.b16 %v260
    %v1233 = vunpack.c.h.b16 %v260
    %v1234 = vunpack.c.l.b16 %v261
    %v1235 = vunpack.c.h.b16 %v261
    %v1236 = vunpack.c.l.b16 %v262
    %v1237 = vunpack.c.h.b16 %v262
    %v1238 = vunpack.c.l.b16 %v263
    %v1239 = vunpack.c.h.b16 %v263
    %v1240 = vunpack.c.l.b16 %v264
    %v1241 = vunpack.c.h.b16 %v264
    %v1242 = vunpack.c.l.b16 %v265
    %v1243 = vunpack.c.h.b16 %v265
    %v1244 = vunpack.c.l.b16 %v266
    %v1245 = vunpack.c.h.b16 %v266
    %v1246 = vunpack.c.l.b16 %v267
    %v1247 = vunpack.c.h.b16 %v267
    %v1248 = vunpack.c.l.b16 %v268
    %v1249 = vunpack.c.h.b16 %v268
    %v1250 = vunpack.c.l.b16 %v269
    %v1251 = vunpack.c.h.b16 %v269
    %v1252 = vunpack.c.l.b16 %v270
    %v1253 = vunpack.c.h.b16 %v270
    %v1254 = vunpack.c.l.b16 %v271
    %v1255 = vunpack.c.h.b16 %v271
    %v1256 = vunpack.c.l.b16 %v272
    %v1257 = vunpack.c.h.b16 %v272
    %v1258 = vunpack.c.l.b16 %v273
    %v1259 = vunpack.c.h.b16 %v273
    %v1260 = vunpack.c.l.b16 %v274
    %v1261 = vunpack.c.h.b16 %v274
    %v1262 = vunpack.c.l.b16 %v275
    %v1263 = vunpack.c.h.b16 %v275
    %v1264 = vunpack.c.l.b16 %v276
    %v1265 = vunpack.c.h.b16 %v276
    %v1266 = vunpack.c.l.b16 %v277
    %v1267 = vunpack.c.h.b16 %v277
    %v1268 = vunpack.c.l.b16 %v278
    %v1269 = vunpack.c.h.b16 %v278
    %v1270 = vunpack.c.l.b16 %v279
    %v1271 = vunpack.c.h.b16 %v279
    %v1272 = vunpack.c.l.b16 %v280
    %v1273 = vunpack.c.h.b16 %v280
    %v1274 = vunpack.c.l.b16 %v281
    %v1275 = vunpack.c.h.b16 %v281
    %v1276 = vunpack.c.l.b16 %v282
    %v1277 = vunpack.c.h.b16 %v282
    %v1278 = vunpack.c.l.b16 %v283
    %v1279 = vunpack.c.h.b16 %v283
    %v1280 = vunpack.c.l.b16 %v284
    %v1281 = vunpack.c.h.b16 %v284
    %v1282 = vunpack.c.l.b16 %v285
    %v1283 = vunpack.c.h.b16 %v285
    %v1284 = vunpack.c.l.b16 %v286
    %v1285 = vunpack.c.h.b16 %v286
    %v1286 = vunpack.c.l.b16 %v287
    %v1287 = vunpack.c.h.b16 %v287
    %v1288 = vunpack.c.l.b16 %v288
    %v1289 = vunpack.c.h.b16 %v288
    %v1290 = vunpack.c.l.b16 %v289
    %v1291 = vunpack.c.h.b16 %v289
    %v1292 = vunpack.c.l.b16 %v290
    %v1293 = vunpack.c.h.b16 %v290
    %v1294 = vunpack.c.l.b16 %v291
    %v1295 = vunpack.c.h.b16 %v291
    %v1296 = vunpack.c.l.b16 %v292
    %v1297 = vunpack.c.h.b16 %v292
    %v1298 = vunpack.c.l.b16 %v293
    %v1299 = vunpack.c.h.b16 %v293
    %v1300 = vunpack.c.l.b16 %v294
    %v1301 = vunpack.c.h.b16 %v294
    %v1302 = vunpack.c.l.b16 %v295
    %v1303 = vunpack.c.h.b16 %v295
    %v1304 = vunpack.c.l.b16 %v296
    %v1305 = vunpack.c.h.b16 %v296
    %v1306 = vunpack.c.l.b16 %v297
    %v1307 = vunpack.c.h.b16 %v297
    %v1308 = vunpack.c.l.b16 %v298
    %v1309 = vunpack.c.h.b16 %v298
    %v1310 = vunpack.c.l.b16 %v299
    %v1311 = vunpack.c.h.b16 %v299
    %v1312 = vunpack.c.l.b16 %v300
    %v1313 = vunpack.c.h.b16 %v300
    %v1314 = vunpack.c.l.b16 %v301
    %v1315 = vunpack.c.h.b16 %v301
    %v1316 = vunpack.c.l.b16 %v302
    %v1317 = vunpack.c.h.b16 %v302
    %v1318 = vunpack.c.l.b16 %v303
    %v1319 = vunpack.c.h.b16 %v303
    %v1320 = vunpack.c.l.b16 %v304
    %v1321 = vunpack.c.h.b16 %v304
    %v1322 = vunpack.c.l.b16 %v305
    %v1323 = vunpack.c.h.b16 %v305
    %v1324 = vunpack.c.l.b16 %v306
    %v1325 = vunpack.c.h.b16 %v306
    %v1326 = vunpack.c.l.b16 %v307
    %v1327 = vunpack.c.h.b16 %v307
    %v1328 = vunpack.c.l.b16 %v308
    %v1329 = vunpack.c.h.b16 %v308
    %v1330 = vunpack.c.l.b16 %v309
    %v1331 = vunpack.c.h.b16 %v309
    %v1332 = vunpack.c.l.b16 %v310
    %v1333 = vunpack.c.h.b16 %v310
    %v1334 = vunpack.c.l.b16 %v311
    %v1335 = vunpack.c.h.b16 %v311
    %v1336 = vunpack.c.l.b16 %v312
    %v1337 = vunpack.c.h.b16 %v312
    %v1338 = vunpack.c.l.b16 %v313
    %v1339 = vunpack.c.h.b16 %v313
    %v1340 = vunpack.c.l.b16 %v314
    %v1341 = vunpack.c.h.b16 %v314
    %v1342 = vunpack.c.l.b16 %v315
    %v1343 = vunpack.c.h.b16 %v315
    %v1344 = vunpack.c.l.b16 %v316
    %v1345 = vunpack.c.h.b16 %v316
    %v1346 = vunpack.c.l.b16 %v317
    %v1347 = vunpack.c.h.b16 %v317
    %v1348 = vunpack.c.l.b16 %v318
    %v1349 = vunpack.c.h.b16 %v318
    %v1350 = vunpack.c.l.b16 %v319
    %v1351 = vunpack.c.h.b16 %v319
    %v1352 = vunpack.c.l.b16 %v320
    %v1353 = vunpack.c.h.b16 %v320
    %v1354 = vunpack.c.l.b16 %v321
    %v1355 = vunpack.c.h.b16 %v321
    %v1356 = vunpack.c.l.b16 %v322
    %v1357 = vunpack.c.h.b16 %v322
    %v1358 = vunpack.c.l.b16 %v323
    %v1359 = vunpack.c.h.b16 %v323
    %v1360 = vunpack.c.l.b16 %v324
    %v1361 = vunpack.c.h.b16 %v324
    %v1362 = vunpack.c.l.b16 %v325
    %v1363 = vunpack.c.h.b16 %v325
    %v1364 = vunpack.c.l.b16 %v326
    %v1365 = vunpack.c.h.b16 %v326
    %v1366 = vunpack.c.l.b16 %v327
    %v1367 = vunpack.c.h.b16 %v327
    %v1368 = vunpack.c.l.b16 %v328
    %v1369 = vunpack.c.h.b16 %v328
    %v1370 = vunpack.c.l.b16 %v329
    %v1371 = vunpack.c.h.b16 %v329
    %v1372 = vunpack.c.l.b16 %v330
    %v1373 = vunpack.c.h.b16 %v330
    %v1374 = vunpack.c.l.b16 %v331
    %v1375 = vunpack.c.h.b16 %v331
    %v1376 = vunpack.c.l.b16 %v332
    %v1377 = vunpack.c.h.b16 %v332
    %v1378 = vunpack.c.l.b16 %v333
    %v1379 = vunpack.c.h.b16 %v333
    %v1380 = vunpack.c.l.b16 %v334
    %v1381 = vunpack.c.h.b16 %v334
    %v1382 = vunpack.c.l.b16 %v335
    %v1383 = vunpack.c.h.b16 %v335
    %v1384 = vunpack.c.l.b16 %v336
    %v1385 = vunpack.c.h.b16 %v336
    %v1386 = vunpack.c.l.b16 %v337
    %v1387 = vunpack.c.h.b16 %v337
    %v1388 = vunpack.c.l.b16 %v338
    %v1389 = vunpack.c.h.b16 %v338
    %v1390 = vunpack.c.l.b16 %v339
    %v1391 = vunpack.c.h.b16 %v339
    %v1392 = vunpack.c.l.b16 %v340
    %v1393 = vunpack.c.h.b16 %v340
    %v1394 = vunpack.c.l.b16 %v341
    %v1395 = vunpack.c.h.b16 %v341
    %v1396 = vunpack.c.l.b16 %v342
    %v1397 = vunpack.c.h.b16 %v342
    %v1398 = vunpack.c.l.b16 %v343
    %v1399 = vunpack.c.h.b16 %v343
    %v1400 = vunpack.c.l.b16 %v344
    %v1401 = vunpack.c.h.b16 %v344
    %v1402 = vunpack.c.l.b16 %v345
    %v1403 = vunpack.c.h.b16 %v345
    %v1404 = vunpack.c.l.b16 %v346
    %v1405 = vunpack.c.h.b16 %v346
    %v1406 = vunpack.c.l.b16 %v347
    %v1407 = vunpack.c.h.b16 %v347
    %v1408 = vunpack.c.l.b16 %v348
    %v1409 = vunpack.c.h.b16 %v348
    %v1410 = vunpack.c.l.b16 %v349
    %v1411 = vunpack.c.h.b16 %v349
    %v1412 = vunpack.c.l.b16 %v350
    %v1413 = vunpack.c.h.b16 %v350
    %v1414 = vunpack.c.l.b16 %v351
    %v1415 = vunpack.c.h.b16 %v351
    %v1416 = vunpack.c.l.b16 %v352
    %v1417 = vunpack.c.h.b16 %v352
    %v1418 = vunpack.c.l.b16 %v353
    %v1419 = vunpack.c.h.b16 %v353
    %v1420 = vunpack.c.l.b16 %v354
    %v1421 = vunpack.c.h.b16 %v354
    %v1422 = vunpack.c.l.b16 %v355
    %v1423 = vunpack.c.h.b16 %v355
    %v1424 = vunpack.c.l.b16 %v356
    %v1425 = vunpack.c.h.b16 %v356
    %v1426 = vunpack.c.l.b16 %v357
    %v1427 = vunpack.c.h.b16 %v357
    %v1428 = vunpack.c.l.b16 %v358
    %v1429 = vunpack.c.h.b16 %v358
    %v1430 = vunpack.c.l.b16 %v359
    %v1431 = vunpack.c.h.b16 %v359
    %v1432 = vunpack.c.l.b16 %v360
    %v1433 = vunpack.c.h.b16 %v360
    %v1434 = vunpack.c.l.b16 %v361
    %v1435 = vunpack.c.h.b16 %v361
    %v1436 = vunpack.c.l.b16 %v362
    %v1437 = vunpack.c.h.b16 %v362
    %v1438 = vunpack.c.l.b16 %v363
    %v1439 = vunpack.c.h.b16 %v363
    %v1440 = vunpack.c.l.b16 %v364
    %v1441 = vunpack.c.h.b16 %v364
    %v1442 = vunpack.c.l.b16 %v365
    %v1443 = vunpack.c.h.b16 %v365
    %v1444 = vunpack.c.l.b16 %v366
    %v1445 = vunpack.c.h.b16 %v366
    %v1446 = vunpack.c.l.b16 %v367
    %v1447 = vunpack.c.h.b16 %v367
    %v1448 = vunpack.c.l.b16 %v368
    %v1449 = vunpack.c.h.b16 %v368
    %v1450 = vunpack.c.l.b16 %v369
    %v1451 = vunpack.c.h.b16 %v369
    %v1452 = vunpack.c.l.b16 %v370
    %v1453 = vunpack.c.h.b16 %v370
    %v1454 = vunpack.c.l.b16 %v371
    %v1455 = vunpack.c.h.b16 %v371
    %v1456 = vunpack.c.l.b16 %v372
    %v1457 = vunpack.c.h.b16 %v372
    %v1458 = vunpack.c.l.b16 %v373
    %v1459 = vunpack.c.h.b16 %v373
    %v1460 = vunpack.c.l.b16 %v374
    %v1461 = vunpack.c.h.b16 %v374
    %v1462 = vunpack.c.l.b16 %v375
    %v1463 = vunpack.c.h.b16 %v375
    %v1464 = vpack.c.b16 %v956, %v952
    %v1465 = vpack.c.b16 %v957, %v953
    %v1466 = vpack.c.b16 %v958, %v954
    %v1467 = vpack.c.b16 %v959, %v955
    %v1468 = vpack.c.b16 %v964, %v960
    %v1469 = vpack.c.b16 %v965, %v961
    %v1470 = vpack.c.b16 %v966, %v962
    %v1471 = vpack.c.b16 %v967, %v963
    %v1472 = vpack.c.b16 %v972, %v968
    %v1473 = vpack.c.b16 %v973, %v969
    %v1474 = vpack.c.b16 %v974, %v970
    %v1475 = vpack.c.b16 %v975, %v971
    %v1476 = vpack.c.b16 %v980, %v976
    %v1477 = vpack.c.b16 %v981, %v977
    %v1478 = vpack.c.b16 %v982, %v978
    %v1479 = vpack.c.b16 %v983, %v979
    %v1480 = vpack.c.b16 %v988, %v984
    %v1481 = vpack.c.b16 %v989, %v985
    %v1482 = vpack.c.b16 %v990, %v986
    %v1483 = vpack.c.b16 %v991, %v987
    %v1484 = vpack.c.b16 %v996, %v992
    %v1485 = vpack.c.b16 %v997, %v993
    %v1486 = vpack.c.b16 %v998, %v994
    %v1487 = vpack.c.b16 %v999, %v995
    %v1488 = vpack.c.b16 %v1004, %v1000
    %v1489 = vpack.c.b16 %v1005, %v1001
    %v1490 = vpack.c.b16 %v1006, %v1002
    %v1491 = vpack.c.b16 %v1007, %v1003
    %v1492 = vpack.c.b16 %v1012, %v1008
    %v1493 = vpack.c.b16 %v1013, %v1009
    %v1494 = vpack.c.b16 %v1014, %v1010
    %v1495 = vpack.c.b16 %v1015, %v1011
    %v1496 = vpack.c.b16 %v1020, %v1016
    %v1497 = vpack.c.b16 %v1021, %v1017
    %v1498 = vpack.c.b16 %v1022, %v1018
    %v1499 = vpack.c.b16 %v1023, %v1019
    %v1500 = vpack.c.b16 %v1028, %v1024
    %v1501 = vpack.c.b16 %v1029, %v1025
    %v1502 = vpack.c.b16 %v1030, %v1026
    %v1503 = vpack.c.b16 %v1031, %v1027
    %v1504 = vpack.c.b16 %v1036, %v1032
    %v1505 = vpack.c.b16 %v1037, %v1033
    %v1506 = vpack.c.b16 %v1038, %v1034
    %v1507 = vpack.c.b16 %v1039, %v1035
    %v1508 = vpack.c.b16 %v1044, %v1040
    %v1509 = vpack.c.b16 %v1045, %v1041
    %v1510 = vpack.c.b16 %v1046, %v1042
    %v1511 = vpack.c.b16 %v1047, %v1043
    %v1512 = vpack.c.b16 %v1052, %v1048
    %v1513 = vpack.c.b16 %v1053, %v1049
    %v1514 = vpack.c.b16 %v1054, %v1050
    %v1515 = vpack.c.b16 %v1055, %v1051
    %v1516 = vpack.c.b16 %v1060, %v1056
    %v1517 = vpack.c.b16 %v1061, %v1057
    %v1518 = vpack.c.b16 %v1062, %v1058
    %v1519 = vpack.c.b16 %v1063, %v1059
    %v1520 = vpack.c.b16 %v1068, %v1064
    %v1521 = vpack.c.b16 %v1069, %v1065
    %v1522 = vpack.c.b16 %v1070, %v1066
    %v1523 = vpack.c.b16 %v1071, %v1067
    %v1524 = vpack.c.b16 %v1076, %v1072
    %v1525 = vpack.c.b16 %v1077, %v1073
    %v1526 = vpack.c.b16 %v1078, %v1074
    %v1527 = vpack.c.b16 %v1079, %v1075
    %v1528 = vpack.c.b16 %v1084, %v1080
    %v1529 = vpack.c.b16 %v1085, %v1081
    %v1530 = vpack.c.b16 %v1086, %v1082
    %v1531 = vpack.c.b16 %v1087, %v1083
    %v1532 = vpack.c.b16 %v1092, %v1088
    %v1533 = vpack.c.b16 %v1093, %v1089
    %v1534 = vpack.c.b16 %v1094, %v1090
    %v1535 = vpack.c.b16 %v1095, %v1091
    %v1536 = vpack.c.b16 %v1100, %v1096
    %v1537 = vpack.c.b16 %v1101, %v1097
    %v1538 = vpack.c.b16 %v1102, %v1098
    %v1539 = vpack.c.b16 %v1103, %v1099
    %v1540 = vpack.c.b16 %v1108, %v1104
    %v1541 = vpack.c.b16 %v1109, %v1105
    %v1542 = vpack.c.b16 %v1110, %v1106
    %v1543 = vpack.c.b16 %v1111, %v1107
    %v1544 = vpack.c.b16 %v1116, %v1112
    %v1545 = vpack.c.b16 %v1117, %v1113
    %v1546 = vpack.c.b16 %v1118, %v1114
    %v1547 = vpack.c.b16 %v1119, %v1115
    %v1548 = vpack.c.b16 %v1124, %v1120
    %v1549 = vpack.c.b16 %v1125, %v1121
    %v1550 = vpack.c.b16 %v1126, %v1122
    %v1551 = vpack.c.b16 %v1127, %v1123
    %v1552 = vpack.c.b16 %v1132, %v1128
    %v1553 = vpack.c.b16 %v1133, %v1129
    %v1554 = vpack.c.b16 %v1134, %v1130
    %v1555 = vpack.c.b16 %v1135, %v1131
    %v1556 = vpack.c.b16 %v1140, %v1136
    %v1557 = vpack.c.b16 %v1141, %v1137
    %v1558 = vpack.c.b16 %v1142, %v1138
    %v1559 = vpack.c.b16 %v1143, %v1139
    %v1560 = vpack.c.b16 %v1148, %v1144
    %v1561 = vpack.c.b16 %v1149, %v1145
    %v1562 = vpack.c.b16 %v1150, %v1146
    %v1563 = vpack.c.b16 %v1151, %v1147
    %v1564 = vpack.c.b16 %v1156, %v1152
    %v1565 = vpack.c.b16 %v1157, %v1153
    %v1566 = vpack.c.b16 %v1158, %v1154
    %v1567 = vpack.c.b16 %v1159, %v1155
    %v1568 = vpack.c.b16 %v1164, %v1160
    %v1569 = vpack.c.b16 %v1165, %v1161
    %v1570 = vpack.c.b16 %v1166, %v1162
    %v1571 = vpack.c.b16 %v1167, %v1163
    %v1572 = vpack.c.b16 %v1172, %v1168
    %v1573 = vpack.c.b16 %v1173, %v1169
    %v1574 = vpack.c.b16 %v1174, %v1170
    %v1575 = vpack.c.b16 %v1175, %v1171
    %v1576 = vpack.c.b16 %v1180, %v1176
    %v1577 = vpack.c.b16 %v1181, %v1177
    %v1578 = vpack.c.b16 %v1182, %v1178
    %v1579 = vpack.c.b16 %v1183, %v1179
    %v1580 = vpack.c.b16 %v1188, %v1184
    %v1581 = vpack.c.b16 %v1189, %v1185
    %v1582 = vpack.c.b16 %v1190, %v1186
    %v1583 = vpack.c.b16 %v1191, %v1187
    %v1584 = vpack.c.b16 %v1196, %v1192
    %v1585 = vpack.c.b16 %v1197, %v1193
    %v1586 = vpack.c.b16 %v1198, %v1194
    %v1587 = vpack.c.b16 %v1199, %v1195
    %v1588 = vpack.c.b16 %v1204, %v1200
    %v1589 = vpack.c.b16 %v1205, %v1201
    %v1590 = vpack.c.b16 %v1206, %v1202
    %v1591 = vpack.c.b16 %v1207, %v1203
    %v1592 = vpack.c.b16 %v1212, %v1208
    %v1593 = vpack.c.b16 %v1213, %v1209
    %v1594 = vpack.c.b16 %v1214, %v1210
    %v1595 = vpack.c.b16 %v1215, %v1211
    %v1596 = vpack.c.b16 %v1220, %v1216
    %v1597 = vpack.c.b16 %v1221, %v1217
    %v1598 = vpack.c.b16 %v1222, %v1218
    %v1599 = vpack.c.b16 %v1223, %v1219
    %v1600 = vpack.c.b16 %v1228, %v1224
    %v1601 = vpack.c.b16 %v1229, %v1225
    %v1602 = vpack.c.b16 %v1230, %v1226
    %v1603 = vpack.c.b16 %v1231, %v1227
    %v1604 = vpack.c.b16 %v1236, %v1232
    %v1605 = vpack.c.b16 %v1237, %v1233
    %v1606 = vpack.c.b16 %v1238, %v1234
    %v1607 = vpack.c.b16 %v1239, %v1235
    %v1608 = vpack.c.b16 %v1244, %v1240
    %v1609 = vpack.c.b16 %v1245, %v1241
    %v1610 = vpack.c.b16 %v1246, %v1242
    %v1611 = vpack.c.b16 %v1247, %v1243
    %v1612 = vpack.c.b16 %v1252, %v1248
    %v1613 = vpack.c.b16 %v1253, %v1249
    %v1614 = vpack.c.b16 %v1254, %v1250
    %v1615 = vpack.c.b16 %v1255, %v1251
    %v1616 = vpack.c.b16 %v1260, %v1256
    %v1617 = vpack.c.b16 %v1261, %v1257
    %v1618 = vpack.c.b16 %v1262, %v1258
    %v1619 = vpack.c.b16 %v1263, %v1259
    %v1620 = vpack.c.b16 %v1268, %v1264
    %v1621 = vpack.c.b16 %v1269, %v1265
    %v1622 = vpack.c.b16 %v1270, %v1266
    %v1623 = vpack.c.b16 %v1271, %v1267
    %v1624 = vpack.c.b16 %v1276, %v1272
    %v1625 = vpack.c.b16 %v1277, %v1273
    %v1626 = vpack.c.b16 %v1278, %v1274
    %v1627 = vpack.c.b16 %v1279, %v1275
    %v1628 = vpack.c.b16 %v1284, %v1280
    %v1629 = vpack.c.b16 %v1285, %v1281
    %v1630 = vpack.c.b16 %v1286, %v1282
    %v1631 = vpack.c.b16 %v1287, %v1283
    %v1632 = vpack.c.b16 %v1292, %v1288
    %v1633 = vpack.c.b16 %v1293, %v1289
    %v1634 = vpack.c.b16 %v1294, %v1290
    %v1635 = vpack.c.b16 %v1295, %v1291
    %v1636 = vpack.c.b16 %v1300, %v1296
    %v1637 = vpack.c.b16 %v1301, %v1297
    %v1638 = vpack.c.b16 %v1302, %v1298
    %v1639 = vpack.c.b16 %v1303, %v1299
    %v1640 = vpack.c.b16 %v1308, %v1304
    %v1641 = vpack.c.b16 %v1309, %v1305
    %v1642 = vpack.c.b16 %v1310, %v1306
    %v1643 = vpack.c.b16 %v1311, %v1307
    %v1644 = vpack.c.b16 %v1316, %v1312
    %v1645 = vpack.c.b16 %v1317, %v1313
    %v1646 = vpack.c.b16 %v1318, %v1314
    %v1647 = vpack.c.b16 %v1319, %v1315
    %v1648 = vpack.c.b16 %v1324, %v1320
    %v1649 = vpack.c.b16 %v1325, %v1321
    %v1650 = vpack.c.b16 %v1326, %v1322
    %v1651 = vpack.c.b16 %v1327, %v1323
    %v1652 = vpack.c.b16 %v1332, %v1328
    %v1653 = vpack.c.b16 %v1333, %v1329
    %v1654 = vpack.c.b16 %v1334, %v1330
    %v1655 = vpack.c.b16 %v1335, %v1331
    %v1656 = vpack.c.b16 %v1340, %v1336
    %v1657 = vpack.c.b16 %v1341, %v1337
    %v1658 = vpack.c.b16 %v1342, %v1338
    %v1659 = vpack.c.b16 %v1343, %v1339
    %v1660 = vpack.c.b16 %v1348, %v1344
    %v1661 = vpack.c.b16 %v1349, %v1345
    %v1662 = vpack.c.b16 %v1350, %v1346
    %v1663 = vpack.c.b16 %v1351, %v1347
    %v1664 = vpack.c.b16 %v1356, %v1352
    %v1665 = vpack.c.b16 %v1357, %v1353
    %v1666 = vpack.c.b16 %v1358, %v1354
    %v1667 = vpack.c.b16 %v1359, %v1355
    %v1668 = vpack.c.b16 %v1364, %v1360
    %v1669 = vpack.c.b16 %v1365, %v1361
    %v1670 = vpack.c.b16 %v1366, %v1362
    %v1671 = vpack.c.b16 %v1367, %v1363
    %v1672 = vpack.c.b16 %v1372, %v1368
    %v1673 = vpack.c.b16 %v1373, %v1369
    %v1674 = vpack.c.b16 %v1374, %v1370
    %v1675 = vpack.c.b16 %v1375, %v1371
    %v1676 = vpack.c.b16 %v1380, %v1376
    %v1677 = vpack.c.b16 %v1381, %v1377
    %v1678 = vpack.c.b16 %v1382, %v1378
    %v1679 = vpack.c.b16 %v1383, %v1379
    %v1680 = vpack.c.b16 %v1388, %v1384
    %v1681 = vpack.c.b16 %v1389, %v1385
    %v1682 = vpack.c.b16 %v1390, %v1386
    %v1683 = vpack.c.b16 %v1391, %v1387
    %v1684 = vpack.c.b16 %v1396, %v1392
    %v1685 = vpack.c.b16 %v1397, %v1393
    %v1686 = vpack.c.b16 %v1398, %v1394
    %v1687 = vpack.c.b16 %v1399, %v1395
    %v1688 = vpack.c.b16 %v1404, %v1400
    %v1689 = vpack.c.b16 %v1405, %v1401
    %v1690 = vpack.c.b16 %v1406, %v1402
    %v1691 = vpack.c.b16 %v1407, %v1403
    %v1692 = vpack.c.b16 %v1412, %v1408
    %v1693 = vpack.c.b16 %v1413, %v1409
    %v1694 = vpack.c.b16 %v1414, %v1410
    %v1695 = vpack.c.b16 %v1415, %v1411
    %v1696 = vpack.c.b16 %v1420, %v1416
    %v1697 = vpack.c.b16 %v1421, %v1417
    %v1698 = vpack.c.b16 %v1422, %v1418
    %v1699 = vpack.c.b16 %v1423, %v1419
    %v1700 = vpack.c.b16 %v1428, %v1424
    %v1701 = vpack.c.b16 %v1429, %v1425
    %v1702 = vpack.c.b16 %v1430, %v1426
    %v1703 = vpack.c.b16 %v1431, %v1427
    %v1704 = vpack.c.b16 %v1436, %v1432
    %v1705 = vpack.c.b16 %v1437, %v1433
    %v1706 = vpack.c.b16 %v1438, %v1434
    %v1707 = vpack.c.b16 %v1439, %v1435
    %v1708 = vpack.c.b16 %v1444, %v1440
    %v1709 = vpack.c.b16 %v1445, %v1441
    %v1710 = vpack.c.b16 %v1446, %v1442
    %v1711 = vpack.c.b16 %v1447, %v1443
    %v1712 = vpack.c.b16 %v1452, %v1448
    %v1713 = vpack.c.b16 %v1453, %v1449
    %v1714 = vpack.c.b16 %v1454, %v1450
    %v1715 = vpack.c.b16 %v1455, %v1451
    %v1716 = vpack.c.b16 %v1460, %v1456
    %v1717 = vpack.c.b16 %v1461, %v1457
    %v1718 = vpack.c.b16 %v1462, %v1458
    %v1719 = vpack.c.b16 %v1463, %v1459
    %1976 = vmatprep.subr.bf16.mxu0 %v1465
    %1977 = vmatpush1.bf16.msra.mxu0 %v1464
    %1978 = vmatprep.subr.bf16.mxu0 %v1469
    %1979 = vmatpush1.bf16.msra.mxu0 %v1468
    %1980 = vmatprep.subr.bf16.mxu0 %v1473
    %1981 = vmatpush1.bf16.msra.mxu0 %v1472
    %1982 = vmatprep.subr.bf16.mxu0 %v1477
    %1983 = vmatpush1.bf16.msra.mxu0 %v1476
    %1984 = vmatprep.subr.bf16.mxu0 %v1481
    %1985 = vmatpush1.bf16.msra.mxu0 %v1480
    %1986 = vmatprep.subr.bf16.mxu0 %v1485
    %1987 = vmatpush1.bf16.msra.mxu0 %v1484
    %1988 = vmatprep.subr.bf16.mxu0 %v1489
    %1989 = vmatpush1.bf16.msra.mxu0 %v1488
    %1990 = vmatprep.subr.bf16.mxu0 %v1493
    %1991 = vmatpush1.bf16.msra.mxu0 %v1492
    %1992 = vmatprep.subr.bf16.mxu0 %v1497
    %1993 = vmatpush1.bf16.msra.mxu0 %v1496
    %1994 = vmatprep.subr.bf16.mxu0 %v1501
    %1995 = vmatpush1.bf16.msra.mxu0 %v1500
    %1996 = vmatprep.subr.bf16.mxu0 %v1505
    %1997 = vmatpush1.bf16.msra.mxu0 %v1504
    %1998 = vmatprep.subr.bf16.mxu0 %v1509
    %1999 = vmatpush1.bf16.msra.mxu0 %v1508
    %2000 = vmatprep.subr.bf16.mxu0 %v1513
    %2001 = vmatpush1.bf16.msra.mxu0 %v1512
    %2002 = vmatprep.subr.bf16.mxu0 %v1517
    %2003 = vmatpush1.bf16.msra.mxu0 %v1516
    %2004 = vmatprep.subr.bf16.mxu0 %v1521
    %2005 = vmatpush1.bf16.msra.mxu0 %v1520
    %2006 = vmatprep.subr.bf16.mxu0 %v1525
    %2007 = vmatpush1.bf16.msra.mxu0 %v1524
    %2008 = vmatprep.mubr.bf16.mxu0 %v569
    %2009 = vmatmul.mubr.bf16.gmra.mrb[0].mxu0 %v568
    %v2010 = vpop.f32.mrb[0].mxu0
    %v2011 = vadd.f32 0.0, %v2010
    %v2012 = vpop.f32.mrb[0].mxu0
    %v2013 = vadd.f32 0.0, %v2012
    %v2014 = vpop.f32.mrb[0].mxu0
    %v2015 = vadd.f32 0.0, %v2014
    %v2016 = vpop.f32.mrb[0].mxu0
    %v2017 = vadd.f32 0.0, %v2016
    %2018 = vmatprep.mubr.bf16.mxu0 %v577
    %2019 = vmatmul.mubr.bf16.gmra.mrb[0].mxu0 %v576
    %v2020 = vpop.f32.mrb[0].mxu0
    %v2021 = vadd.f32 0.0, %v2020
    %v2022 = vpop.f32.mrb[0].mxu0
    %v2023 = vadd.f32 0.0, %v2022
    %v2024 = vpop.f32.mrb[0].mxu0
    %v2025 = vadd.f32 0.0, %v2024
    %v2026 = vpop.f32.mrb[0].mxu0
    %v2027 = vadd.f32 0.0, %v2026
    %2028 = vmatprep.mubr.bf16.mxu0 %v585
    %2029 = vmatmul.mubr.bf16.gmra.mrb[0].mxu0 %v584
    %v2030 = vpop.f32.mrb[0].mxu0
    %v2031 = vadd.f32 0.0, %v2030
    %v2032 = vpop.f32.mrb[0].mxu0
    %v2033 = vadd.f32 0.0, %v2032
    %v2034 = vpop.f32.mrb[0].mxu0
    %v2035 = vadd.f32 0.0, %v2034
    %v2036 = vpop.f32.mrb[0].mxu0
    %v2037 = vadd.f32 0.0, %v2036
    %2038 = vmatprep.mubr.bf16.mxu0 %v593
    %2039 = vmatmul.mubr.bf16.gmra.mrb[0].mxu0 %v592
    %v2040 = vpop.f32.mrb[0].mxu0
    %v2041 = vadd.f32 0.0, %v2040
    %v2042 = vpop.f32.mrb[0].mxu0
    %v2043 = vadd.f32 0.0, %v2042
    %v2044 = vpop.f32.mrb[0].mxu0
    %v2045 = vadd.f32 0.0, %v2044
    %v2046 = vpop.f32.mrb[0].mxu0
    %v2047 = vadd.f32 0.0, %v2046
    %2048 = vmatprep.mubr.bf16.mxu0 %v601
    %2049 = vmatmul.mubr.bf16.gmra.mrb[0].mxu0 %v600
    %v2050 = vpop.f32.mrb[0].mxu0
    %v2051 = vadd.f32 0.0, %v2050
    %v2052 = vpop.f32.mrb[0].mxu0
    %v2053 = vadd.f32 0.0, %v2052
    %v2054 = vpop.f32.mrb[0].mxu0
    %v2055 = vadd.f32 0.0, %v2054
    %v2056 = vpop.f32.mrb[0].mxu0
    %v2057 = vadd.f32 0.0, %v2056
    %2058 = vmatprep.mubr.bf16.mxu0 %v609
    %2059 = vmatmul.mubr.bf16.gmra.mrb[0].mxu0 %v608
    %v2060 = vpop.f32.mrb[0].mxu0
    %v2061 = vadd.f32 0.0, %v2060
    %v2062 = vpop.f32.mrb[0].mxu0
    %v2063 = vadd.f32 0.0, %v2062
    %v2064 = vpop.f32.mrb[0].mxu0
    %v2065 = vadd.f32 0.0, %v2064
    %v2066 = vpop.f32.mrb[0].mxu0
    %v2067 = vadd.f32 0.0, %v2066
    %2068 = vmatprep.mubr.bf16.mxu0 %v617
    %2069 = vmatmul.mubr.bf16.gmra.mrb[0].mxu0 %v616
    %v2070 = vpop.f32.mrb[0].mxu0
    %v2071 = vadd.f32 0.0, %v2070
    %v2072 = vpop.f32.mrb[0].mxu0
    %v2073 = vadd.f32 0.0, %v2072
    %v2074 = vpop.f32.mrb[0].mxu0
    %v2075 = vadd.f32 0.0, %v2074
    %v2076 = vpop.f32.mrb[0].mxu0
    %v2077 = vadd.f32 0.0, %v2076
    %2078 = vmatprep.mubr.bf16.mxu0 %v625
    %2079 = vmatmul.mubr.bf16.gmra.mrb[0].mxu0 %v624
    %v2080 = vpop.f32.mrb[0].mxu0
    %v2081 = vadd.f32 0.0, %v2080
    %v2082 = vpop.f32.mrb[0].mxu0
    %v2083 = vadd.f32 0.0, %v2082
    %v2084 = vpop.f32.mrb[0].mxu0
    %v2085 = vadd.f32 0.0, %v2084
    %v2086 = vpop.f32.mrb[0].mxu0
    %v2087 = vadd.f32 0.0, %v2086
    %2088 = vdwg.mxu0
    %2089 = vmatprep.subr.bf16.mxu0 %v1529
    %2090 = vmatpush1.bf16.msra.mxu0 %v1528
    %2091 = vmatprep.subr.bf16.mxu0 %v1533
    %2092 = vmatpush1.bf16.msra.mxu0 %v1532
    %2093 = vmatprep.subr.bf16.mxu0 %v1537
    %2094 = vmatpush1.bf16.msra.mxu0 %v1536
    %2095 = vmatprep.subr.bf16.mxu0 %v1541
    %2096 = vmatpush1.bf16.msra.mxu0 %v1540
    %2097 = vmatprep.subr.bf16.mxu0 %v1545
    %2098 = vmatpush1.bf16.msra.mxu0 %v1544
    %2099 = vmatprep.subr.bf16.mxu0 %v1549
    %2100 = vmatpush1.bf16.msra.mxu0 %v1548
    %2101 = vmatprep.subr.bf16.mxu0 %v1553
    %2102 = vmatpush1.bf16.msra.mxu0 %v1552
    %2103 = vmatprep.subr.bf16.mxu0 %v1557
    %2104 = vmatpush1.bf16.msra.mxu0 %v1556
    %2105 = vmatprep.subr.bf16.mxu0 %v1561
    %2106 = vmatpush1.bf16.msra.mxu0 %v1560
    %2107 = vmatprep.subr.bf16.mxu0 %v1565
    %2108 = vmatpush1.bf16.msra.mxu0 %v1564
    %2109 = vmatprep.subr.bf16.mxu0 %v1569
    %2110 = vmatpush1.bf16.msra.mxu0 %v1568
    %2111 = vmatprep.subr.bf16.mxu0 %v1573
    %2112 = vmatpush1.bf16.msra.mxu0 %v1572
    %2113 = vmatprep.subr.bf16.mxu0 %v1577
    %2114 = vmatpush1.bf16.msra.mxu0 %v1576
    %2115 = vmatprep.subr.bf16.mxu0 %v1581
    %2116 = vmatpush1.bf16.msra.mxu0 %v1580
    %2117 = vmatprep.subr.bf16.mxu0 %v1585
    %2118 = vmatpush1.bf16.msra.mxu0 %v1584
    %2119 = vmatprep.subr.bf16.mxu0 %v1589
    %2120 = vmatpush1.bf16.msra.mxu0 %v1588
    %2121 = vmatprep.mubr.bf16.mxu0 %v571
    %2122 = vmatmul.mubr.bf16.gmra.mrb[0].mxu0 %v570
    %v2123 = vpop.f32.mrb[0].mxu0
    %v2124 = vadd.f32 %v2011, %v2123
    %v2125 = vpop.f32.mrb[0].mxu0
    %v2126 = vadd.f32 %v2013, %v2125
    %v2127 = vpop.f32.mrb[0].mxu0
    %v2128 = vadd.f32 %v2015, %v2127
    %v2129 = vpop.f32.mrb[0].mxu0
    %v2130 = vadd.f32 %v2017, %v2129
    %2131 = vmatprep.mubr.bf16.mxu0 %v579
    %2132 = vmatmul.mubr.bf16.gmra.mrb[0].mxu0 %v578
    %v2133 = vpop.f32.mrb[0].mxu0
    %v2134 = vadd.f32 %v2021, %v2133
    %v2135 = vpop.f32.mrb[0].mxu0
    %v2136 = vadd.f32 %v2023, %v2135
    %v2137 = vpop.f32.mrb[0].mxu0
    %v2138 = vadd.f32 %v2025, %v2137
    %v2139 = vpop.f32.mrb[0].mxu0
    %v2140 = vadd.f32 %v2027, %v2139
    %2141 = vmatprep.mubr.bf16.mxu0 %v587
    %2142 = vmatmul.mubr.bf16.gmra.mrb[0].mxu0 %v586
    %v2143 = vpop.f32.mrb[0].mxu0
    %v2144 = vadd.f32 %v2031, %v2143
    %v2145 = vpop.f32.mrb[0].mxu0
    %v2146 = vadd.f32 %v2033, %v2145
    %v2147 = vpop.f32.mrb[0].mxu0
    %v2148 = vadd.f32 %v2035, %v2147
    %v2149 = vpop.f32.mrb[0].mxu0
    %v2150 = vadd.f32 %v2037, %v2149
    %2151 = vmatprep.mubr.bf16.mxu0 %v595
    %2152 = vmatmul.mubr.bf16.gmra.mrb[0].mxu0 %v594
    %v2153 = vpop.f32.mrb[0].mxu0
    %v2154 = vadd.f32 %v2041, %v2153
    %v2155 = vpop.f32.mrb[0].mxu0
    %v2156 = vadd.f32 %v2043, %v2155
    %v2157 = vpop.f32.mrb[0].mxu0
    %v2158 = vadd.f32 %v2045, %v2157
    %v2159 = vpop.f32.mrb[0].mxu0
    %v2160 = vadd.f32 %v2047, %v2159
    %2161 = vmatprep.mubr.bf16.mxu0 %v603
    %2162 = vmatmul.mubr.bf16.gmra.mrb[0].mxu0 %v602
    %v2163 = vpop.f32.mrb[0].mxu0
    %v2164 = vadd.f32 %v2051, %v2163
    %v2165 = vpop.f32.mrb[0].mxu0
    %v2166 = vadd.f32 %v2053, %v2165
    %v2167 = vpop.f32.mrb[0].mxu0
    %v2168 = vadd.f32 %v2055, %v2167
    %v2169 = vpop.f32.mrb[0].mxu0
    %v2170 = vadd.f32 %v2057, %v2169
    %2171 = vmatprep.mubr.bf16.mxu0 %v611
    %2172 = vmatmul.mubr.bf16.gmra.mrb[0].mxu0 %v610
    %v2173 = vpop.f32.mrb[0].mxu0
    %v2174 = vadd.f32 %v2061, %v2173
    %v2175 = vpop.f32.mrb[0].mxu0
    %v2176 = vadd.f32 %v2063, %v2175
    %v2177 = vpop.f32.mrb[0].mxu0
    %v2178 = vadd.f32 %v2065, %v2177
    %v2179 = vpop.f32.mrb[0].mxu0
    %v2180 = vadd.f32 %v2067, %v2179
    %2181 = vmatprep.mubr.bf16.mxu0 %v619
    %2182 = vmatmul.mubr.bf16.gmra.mrb[0].mxu0 %v618
    %v2183 = vpop.f32.mrb[0].mxu0
    %v2184 = vadd.f32 %v2071, %v2183
    %v2185 = vpop.f32.mrb[0].mxu0
    %v2186 = vadd.f32 %v2073, %v2185
    %v2187 = vpop.f32.mrb[0].mxu0
    %v2188 = vadd.f32 %v2075, %v2187
    %v2189 = vpop.f32.mrb[0].mxu0
    %v2190 = vadd.f32 %v2077, %v2189
    %2191 = vmatprep.mubr.bf16.mxu0 %v627
    %2192 = vmatmul.mubr.bf16.gmra.mrb[0].mxu0 %v626
    %v2193 = vpop.f32.mrb[0].mxu0
    %v2194 = vadd.f32 %v2081, %v2193
    %v2195 = vpop.f32.mrb[0].mxu0
    %v2196 = vadd.f32 %v2083, %v2195
    %v2197 = vpop.f32.mrb[0].mxu0
    %v2198 = vadd.f32 %v2085, %v2197
    %v2199 = vpop.f32.mrb[0].mxu0
    %v2200 = vadd.f32 %v2087, %v2199
    %2201 = vdwg.mxu0
    %2202 = vmatprep.subr.bf16.mxu0 %v1593
    %2203 = vmatpush1.bf16.msra.mxu0 %v1592
    %2204 = vmatprep.subr.bf16.mxu0 %v1597
    %2205 = vmatpush1.bf16.msra.mxu0 %v1596
    %2206 = vmatprep.subr.bf16.mxu0 %v1601
    %2207 = vmatpush1.bf16.msra.mxu0 %v1600
    %2208 = vmatprep.subr.bf16.mxu0 %v1605
    %2209 = vmatpush1.bf16.msra.mxu0 %v1604
    %2210 = vmatprep.subr.bf16.mxu0 %v1609
    %2211 = vmatpush1.bf16.msra.mxu0 %v1608
    %2212 = vmatprep.subr.bf16.mxu0 %v1613
    %2213 = vmatpush1.bf16.msra.mxu0 %v1612
    %2214 = vmatprep.subr.bf16.mxu0 %v1617
    %2215 = vmatpush1.bf16.msra.mxu0 %v1616
    %2216 = vmatprep.subr.bf16.mxu0 %v1621
    %2217 = vmatpush1.bf16.msra.mxu0 %v1620
    %2218 = vmatprep.subr.bf16.mxu0 %v1625
    %2219 = vmatpush1.bf16.msra.mxu0 %v1624
    %2220 = vmatprep.subr.bf16.mxu0 %v1629
    %2221 = vmatpush1.bf16.msra.mxu0 %v1628
    %2222 = vmatprep.subr.bf16.mxu0 %v1633
    %2223 = vmatpush1.bf16.msra.mxu0 %v1632
    %2224 = vmatprep.subr.bf16.mxu0 %v1637
    %2225 = vmatpush1.bf16.msra.mxu0 %v1636
    %2226 = vmatprep.subr.bf16.mxu0 %v1641
    %2227 = vmatpush1.bf16.msra.mxu0 %v1640
    %2228 = vmatprep.subr.bf16.mxu0 %v1645
    %2229 = vmatpush1.bf16.msra.mxu0 %v1644
    %2230 = vmatprep.subr.bf16.mxu0 %v1649
    %2231 = vmatpush1.bf16.msra.mxu0 %v1648
    %2232 = vmatprep.subr.bf16.mxu0 %v1653
    %2233 = vmatpush1.bf16.msra.mxu0 %v1652
    %2234 = vmatprep.mubr.bf16.mxu0 %v573
    %2235 = vmatmul.mubr.bf16.gmra.mrb[0].mxu0 %v572
    %v2236 = vpop.f32.mrb[0].mxu0
    %v2237 = vadd.f32 %v2124, %v2236
    %v2238 = vpop.f32.mrb[0].mxu0
    %v2239 = vadd.f32 %v2126, %v2238
    %v2240 = vpop.f32.mrb[0].mxu0
    %v2241 = vadd.f32 %v2128, %v2240
    %v2242 = vpop.f32.mrb[0].mxu0
    %v2243 = vadd.f32 %v2130, %v2242
    %2244 = vmatprep.mubr.bf16.mxu0 %v581
    %2245 = vmatmul.mubr.bf16.gmra.mrb[0].mxu0 %v580
    %v2246 = vpop.f32.mrb[0].mxu0
    %v2247 = vadd.f32 %v2134, %v2246
    %v2248 = vpop.f32.mrb[0].mxu0
    %v2249 = vadd.f32 %v2136, %v2248
    %v2250 = vpop.f32.mrb[0].mxu0
    %v2251 = vadd.f32 %v2138, %v2250
    %v2252 = vpop.f32.mrb[0].mxu0
    %v2253 = vadd.f32 %v2140, %v2252
    %2254 = vmatprep.mubr.bf16.mxu0 %v589
    %2255 = vmatmul.mubr.bf16.gmra.mrb[0].mxu0 %v588
    %v2256 = vpop.f32.mrb[0].mxu0
    %v2257 = vadd.f32 %v2144, %v2256
    %v2258 = vpop.f32.mrb[0].mxu0
    %v2259 = vadd.f32 %v2146, %v2258
    %v2260 = vpop.f32.mrb[0].mxu0
    %v2261 = vadd.f32 %v2148, %v2260
    %v2262 = vpop.f32.mrb[0].mxu0
    %v2263 = vadd.f32 %v2150, %v2262
    %2264 = vmatprep.mubr.bf16.mxu0 %v597
    %2265 = vmatmul.mubr.bf16.gmra.mrb[0].mxu0 %v596
    %v2266 = vpop.f32.mrb[0].mxu0
    %v2267 = vadd.f32 %v2154, %v2266
    %v2268 = vpop.f32.mrb[0].mxu0
    %v2269 = vadd.f32 %v2156, %v2268
    %v2270 = vpop.f32.mrb[0].mxu0
    %v2271 = vadd.f32 %v2158, %v2270
    %v2272 = vpop.f32.mrb[0].mxu0
    %v2273 = vadd.f32 %v2160, %v2272
    %2274 = vmatprep.mubr.bf16.mxu0 %v605
    %2275 = vmatmul.mubr.bf16.gmra.mrb[0].mxu0 %v604
    %v2276 = vpop.f32.mrb[0].mxu0
    %v2277 = vadd.f32 %v2164, %v2276
    %v2278 = vpop.f32.mrb[0].mxu0
    %v2279 = vadd.f32 %v2166, %v2278
    %v2280 = vpop.f32.mrb[0].mxu0
    %v2281 = vadd.f32 %v2168, %v2280
    %v2282 = vpop.f32.mrb[0].mxu0
    %v2283 = vadd.f32 %v2170, %v2282
    %2284 = vmatprep.mubr.bf16.mxu0 %v613
    %2285 = vmatmul.mubr.bf16.gmra.mrb[0].mxu0 %v612
    %v2286 = vpop.f32.mrb[0].mxu0
    %v2287 = vadd.f32 %v2174, %v2286
    %v2288 = vpop.f32.mrb[0].mxu0
    %v2289 = vadd.f32 %v2176, %v2288
    %v2290 = vpop.f32.mrb[0].mxu0
    %v2291 = vadd.f32 %v2178, %v2290
    %v2292 = vpop.f32.mrb[0].mxu0
    %v2293 = vadd.f32 %v2180, %v2292
    %2294 = vmatprep.mubr.bf16.mxu0 %v621
    %2295 = vmatmul.mubr.bf16.gmra.mrb[0].mxu0 %v620
    %v2296 = vpop.f32.mrb[0].mxu0
    %v2297 = vadd.f32 %v2184, %v2296
    %v2298 = vpop.f32.mrb[0].mxu0
    %v2299 = vadd.f32 %v2186, %v2298
    %v2300 = vpop.f32.mrb[0].mxu0
    %v2301 = vadd.f32 %v2188, %v2300
    %v2302 = vpop.f32.mrb[0].mxu0
    %v2303 = vadd.f32 %v2190, %v2302
    %2304 = vmatprep.mubr.bf16.mxu0 %v629
    %2305 = vmatmul.mubr.bf16.gmra.mrb[0].mxu0 %v628
    %v2306 = vpop.f32.mrb[0].mxu0
    %v2307 = vadd.f32 %v2194, %v2306
    %v2308 = vpop.f32.mrb[0].mxu0
    %v2309 = vadd.f32 %v2196, %v2308
    %v2310 = vpop.f32.mrb[0].mxu0
    %v2311 = vadd.f32 %v2198, %v2310
    %v2312 = vpop.f32.mrb[0].mxu0
    %v2313 = vadd.f32 %v2200, %v2312
    %2314 = vdwg.mxu0
    %2315 = vmatprep.subr.bf16.mxu0 %v1657
    %2316 = vmatpush1.bf16.msra.mxu0 %v1656
    %2317 = vmatprep.subr.bf16.mxu0 %v1661
    %2318 = vmatpush1.bf16.msra.mxu0 %v1660
    %2319 = vmatprep.subr.bf16.mxu0 %v1665
    %2320 = vmatpush1.bf16.msra.mxu0 %v1664
    %2321 = vmatprep.subr.bf16.mxu0 %v1669
    %2322 = vmatpush1.bf16.msra.mxu0 %v1668
    %2323 = vmatprep.subr.bf16.mxu0 %v1673
    %2324 = vmatpush1.bf16.msra.mxu0 %v1672
    %2325 = vmatprep.subr.bf16.mxu0 %v1677
    %2326 = vmatpush1.bf16.msra.mxu0 %v1676
    %2327 = vmatprep.subr.bf16.mxu0 %v1681
    %2328 = vmatpush1.bf16.msra.mxu0 %v1680
    %2329 = vmatprep.subr.bf16.mxu0 %v1685
    %2330 = vmatpush1.bf16.msra.mxu0 %v1684
    %2331 = vmatprep.subr.bf16.mxu0 %v1689
    %2332 = vmatpush1.bf16.msra.mxu0 %v1688
    %2333 = vmatprep.subr.bf16.mxu0 %v1693
    %2334 = vmatpush1.bf16.msra.mxu0 %v1692
    %2335 = vmatprep.subr.bf16.mxu0 %v1697
    %2336 = vmatpush1.bf16.msra.mxu0 %v1696
    %2337 = vmatprep.subr.bf16.mxu0 %v1701
    %2338 = vmatpush1.bf16.msra.mxu0 %v1700
    %2339 = vmatprep.subr.bf16.mxu0 %v1705
    %2340 = vmatpush1.bf16.msra.mxu0 %v1704
    %2341 = vmatprep.subr.bf16.mxu0 %v1709
    %2342 = vmatpush1.bf16.msra.mxu0 %v1708
    %2343 = vmatprep.subr.bf16.mxu0 %v1713
    %2344 = vmatpush1.bf16.msra.mxu0 %v1712
    %2345 = vmatprep.subr.bf16.mxu0 %v1717
    %2346 = vmatpush1.bf16.msra.mxu0 %v1716
    %2347 = vmatprep.mubr.bf16.mxu0 %v575
    %2348 = vmatmul.mubr.bf16.gmra.mrb[0].mxu0 %v574
    %v2349 = vpop.f32.mrb[0].mxu0
    %v2350 = vadd.f32 %v2237, %v2349
    %v2351 = vpop.f32.mrb[0].mxu0
    %v2352 = vadd.f32 %v2239, %v2351
    %v2353 = vpop.f32.mrb[0].mxu0
    %v2354 = vadd.f32 %v2241, %v2353
    %v2355 = vpop.f32.mrb[0].mxu0
    %v2356 = vadd.f32 %v2243, %v2355
    %2357 = vmatprep.mubr.bf16.mxu0 %v583
    %2358 = vmatmul.mubr.bf16.gmra.mrb[0].mxu0 %v582
    %v2359 = vpop.f32.mrb[0].mxu0
    %v2360 = vadd.f32 %v2247, %v2359
    %v2361 = vpop.f32.mrb[0].mxu0
    %v2362 = vadd.f32 %v2249, %v2361
    %v2363 = vpop.f32.mrb[0].mxu0
    %v2364 = vadd.f32 %v2251, %v2363
    %v2365 = vpop.f32.mrb[0].mxu0
    %v2366 = vadd.f32 %v2253, %v2365
    %2367 = vmatprep.mubr.bf16.mxu0 %v591
    %2368 = vmatmul.mubr.bf16.gmra.mrb[0].mxu0 %v590
    %v2369 = vpop.f32.mrb[0].mxu0
    %v2370 = vadd.f32 %v2257, %v2369
    %v2371 = vpop.f32.mrb[0].mxu0
    %v2372 = vadd.f32 %v2259, %v2371
    %v2373 = vpop.f32.mrb[0].mxu0
    %v2374 = vadd.f32 %v2261, %v2373
    %v2375 = vpop.f32.mrb[0].mxu0
    %v2376 = vadd.f32 %v2263, %v2375
    %2377 = vmatprep.mubr.bf16.mxu0 %v599
    %2378 = vmatmul.mubr.bf16.gmra.mrb[0].mxu0 %v598
    %v2379 = vpop.f32.mrb[0].mxu0
    %v2380 = vadd.f32 %v2267, %v2379
    %v2381 = vpop.f32.mrb[0].mxu0
    %v2382 = vadd.f32 %v2269, %v2381
    %v2383 = vpop.f32.mrb[0].mxu0
    %v2384 = vadd.f32 %v2271, %v2383
    %v2385 = vpop.f32.mrb[0].mxu0
    %v2386 = vadd.f32 %v2273, %v2385
    %2387 = vmatprep.mubr.bf16.mxu0 %v607
    %2388 = vmatmul.mubr.bf16.gmra.mrb[0].mxu0 %v606
    %v2389 = vpop.f32.mrb[0].mxu0
    %v2390 = vadd.f32 %v2277, %v2389
    %v2391 = vpop.f32.mrb[0].mxu0
    %v2392 = vadd.f32 %v2279, %v2391
    %v2393 = vpop.f32.mrb[0].mxu0
    %v2394 = vadd.f32 %v2281, %v2393
    %v2395 = vpop.f32.mrb[0].mxu0
    %v2396 = vadd.f32 %v2283, %v2395
    %2397 = vmatprep.mubr.bf16.mxu0 %v615
    %2398 = vmatmul.mubr.bf16.gmra.mrb[0].mxu0 %v614
    %v2399 = vpop.f32.mrb[0].mxu0
    %v2400 = vadd.f32 %v2287, %v2399
    %v2401 = vpop.f32.mrb[0].mxu0
    %v2402 = vadd.f32 %v2289, %v2401
    %v2403 = vpop.f32.mrb[0].mxu0
    %v2404 = vadd.f32 %v2291, %v2403
    %v2405 = vpop.f32.mrb[0].mxu0
    %v2406 = vadd.f32 %v2293, %v2405
    %2407 = vmatprep.mubr.bf16.mxu0 %v623
    %2408 = vmatmul.mubr.bf16.gmra.mrb[0].mxu0 %v622
    %v2409 = vpop.f32.mrb[0].mxu0
    %v2410 = vadd.f32 %v2297, %v2409
    %v2411 = vpop.f32.mrb[0].mxu0
    %v2412 = vadd.f32 %v2299, %v2411
    %v2413 = vpop.f32.mrb[0].mxu0
    %v2414 = vadd.f32 %v2301, %v2413
    %v2415 = vpop.f32.mrb[0].mxu0
    %v2416 = vadd.f32 %v2303, %v2415
    %2417 = vmatprep.mubr.bf16.mxu0 %v631
    %2418 = vmatmul.mubr.bf16.gmra.mrb[0].mxu0 %v630
    %v2419 = vpop.f32.mrb[0].mxu0
    %v2420 = vadd.f32 %v2307, %v2419
    %v2421 = vpop.f32.mrb[0].mxu0
    %v2422 = vadd.f32 %v2309, %v2421
    %v2423 = vpop.f32.mrb[0].mxu0
    %v2424 = vadd.f32 %v2311, %v2423
    %v2425 = vpop.f32.mrb[0].mxu0
    %v2426 = vadd.f32 %v2313, %v2425
    %2427 = vdwg.mxu0
    %2428 = vmatprep.subr.bf16.mxu0 %v1467
    %2429 = vmatpush1.bf16.msra.mxu0 %v1466
    %2430 = vmatprep.subr.bf16.mxu0 %v1471
    %2431 = vmatpush1.bf16.msra.mxu0 %v1470
    %2432 = vmatprep.subr.bf16.mxu0 %v1475
    %2433 = vmatpush1.bf16.msra.mxu0 %v1474
    %2434 = vmatprep.subr.bf16.mxu0 %v1479
    %2435 = vmatpush1.bf16.msra.mxu0 %v1478
    %2436 = vmatprep.subr.bf16.mxu0 %v1483
    %2437 = vmatpush1.bf16.msra.mxu0 %v1482
    %2438 = vmatprep.subr.bf16.mxu0 %v1487
    %2439 = vmatpush1.bf16.msra.mxu0 %v1486
    %2440 = vmatprep.subr.bf16.mxu0 %v1491
    %2441 = vmatpush1.bf16.msra.mxu0 %v1490
    %2442 = vmatprep.subr.bf16.mxu0 %v1495
    %2443 = vmatpush1.bf16.msra.mxu0 %v1494
    %2444 = vmatprep.subr.bf16.mxu0 %v1499
    %2445 = vmatpush1.bf16.msra.mxu0 %v1498
    %2446 = vmatprep.subr.bf16.mxu0 %v1503
    %2447 = vmatpush1.bf16.msra.mxu0 %v1502
    %2448 = vmatprep.subr.bf16.mxu0 %v1507
    %2449 = vmatpush1.bf16.msra.mxu0 %v1506
    %2450 = vmatprep.subr.bf16.mxu0 %v1511
    %2451 = vmatpush1.bf16.msra.mxu0 %v1510
    %2452 = vmatprep.subr.bf16.mxu0 %v1515
    %2453 = vmatpush1.bf16.msra.mxu0 %v1514
    %2454 = vmatprep.subr.bf16.mxu0 %v1519
    %2455 = vmatpush1.bf16.msra.mxu0 %v1518
    %2456 = vmatprep.subr.bf16.mxu0 %v1523
    %2457 = vmatpush1.bf16.msra.mxu0 %v1522
    %2458 = vmatprep.subr.bf16.mxu0 %v1527
    %2459 = vmatpush1.bf16.msra.mxu0 %v1526
    %2460 = vmatprep.mubr.bf16.mxu0 %v569
    %2461 = vmatmul.mubr.bf16.gmra.mrb[0].mxu0 %v568
    %v2462 = vpop.f32.mrb[0].mxu0
    %v2463 = vadd.f32 0.0, %v2462
    %v2464 = vpop.f32.mrb[0].mxu0
    %v2465 = vadd.f32 0.0, %v2464
    %v2466 = vpop.f32.mrb[0].mxu0
    %v2467 = vadd.f32 0.0, %v2466
    %v2468 = vpop.f32.mrb[0].mxu0
    %v2469 = vadd.f32 0.0, %v2468
    %2470 = vmatprep.mubr.bf16.mxu0 %v577
    %2471 = vmatmul.mubr.bf16.gmra.mrb[0].mxu0 %v576
    %v2472 = vpop.f32.mrb[0].mxu0
    %v2473 = vadd.f32 0.0, %v2472
    %v2474 = vpop.f32.mrb[0].mxu0
    %v2475 = vadd.f32 0.0, %v2474
    %v2476 = vpop.f32.mrb[0].mxu0
    %v2477 = vadd.f32 0.0, %v2476
    %v2478 = vpop.f32.mrb[0].mxu0
    %v2479 = vadd.f32 0.0, %v2478
    %2480 = vmatprep.mubr.bf16.mxu0 %v585
    %2481 = vmatmul.mubr.bf16.gmra.mrb[0].mxu0 %v584
    %v2482 = vpop.f32.mrb[0].mxu0
    %v2483 = vadd.f32 0.0, %v2482
    %v2484 = vpop.f32.mrb[0].mxu0
    %v2485 = vadd.f32 0.0, %v2484
    %v2486 = vpop.f32.mrb[0].mxu0
    %v2487 = vadd.f32 0.0, %v2486
    %v2488 = vpop.f32.mrb[0].mxu0
    %v2489 = vadd.f32 0.0, %v2488
    %2490 = vmatprep.mubr.bf16.mxu0 %v593
    %2491 = vmatmul.mubr.bf16.gmra.mrb[0].mxu0 %v592
    %v2492 = vpop.f32.mrb[0].mxu0
    %v2493 = vadd.f32 0.0, %v2492
    %v2494 = vpop.f32.mrb[0].mxu0
    %v2495 = vadd.f32 0.0, %v2494
    %v2496 = vpop.f32.mrb[0].mxu0
    %v2497 = vadd.f32 0.0, %v2496
    %v2498 = vpop.f32.mrb[0].mxu0
    %v2499 = vadd.f32 0.0, %v2498
    %2500 = vmatprep.mubr.bf16.mxu0 %v601
    %2501 = vmatmul.mubr.bf16.gmra.mrb[0].mxu0 %v600
    %v2502 = vpop.f32.mrb[0].mxu0
    %v2503 = vadd.f32 0.0, %v2502
    %v2504 = vpop.f32.mrb[0].mxu0
    %v2505 = vadd.f32 0.0, %v2504
    %v2506 = vpop.f32.mrb[0].mxu0
    %v2507 = vadd.f32 0.0, %v2506
    %v2508 = vpop.f32.mrb[0].mxu0
    %v2509 = vadd.f32 0.0, %v2508
    %2510 = vmatprep.mubr.bf16.mxu0 %v609
    %2511 = vmatmul.mubr.bf16.gmra.mrb[0].mxu0 %v608
    %v2512 = vpop.f32.mrb[0].mxu0
    %v2513 = vadd.f32 0.0, %v2512
    %v2514 = vpop.f32.mrb[0].mxu0
    %v2515 = vadd.f32 0.0, %v2514
    %v2516 = vpop.f32.mrb[0].mxu0
    %v2517 = vadd.f32 0.0, %v2516
    %v2518 = vpop.f32.mrb[0].mxu0
    %v2519 = vadd.f32 0.0, %v2518
    %2520 = vmatprep.mubr.bf16.mxu0 %v617
    %2521 = vmatmul.mubr.bf16.gmra.mrb[0].mxu0 %v616
    %v2522 = vpop.f32.mrb[0].mxu0
    %v2523 = vadd.f32 0.0, %v2522
    %v2524 = vpop.f32.mrb[0].mxu0
    %v2525 = vadd.f32 0.0, %v2524
    %v2526 = vpop.f32.mrb[0].mxu0
    %v2527 = vadd.f32 0.0, %v2526
    %v2528 = vpop.f32.mrb[0].mxu0
    %v2529 = vadd.f32 0.0, %v2528
    %2530 = vmatprep.mubr.bf16.mxu0 %v625
    %2531 = vmatmul.mubr.bf16.gmra.mrb[0].mxu0 %v624
    %v2532 = vpop.f32.mrb[0].mxu0
    %v2533 = vadd.f32 0.0, %v2532
    %v2534 = vpop.f32.mrb[0].mxu0
    %v2535 = vadd.f32 0.0, %v2534
    %v2536 = vpop.f32.mrb[0].mxu0
    %v2537 = vadd.f32 0.0, %v2536
    %v2538 = vpop.f32.mrb[0].mxu0
    %v2539 = vadd.f32 0.0, %v2538
    %2540 = vdwg.mxu0
    %2541 = vmatprep.subr.bf16.mxu0 %v1531
    %2542 = vmatpush1.bf16.msra.mxu0 %v1530
    %2543 = vmatprep.subr.bf16.mxu0 %v1535
    %2544 = vmatpush1.bf16.msra.mxu0 %v1534
    %2545 = vmatprep.subr.bf16.mxu0 %v1539
    %2546 = vmatpush1.bf16.msra.mxu0 %v1538
    %2547 = vmatprep.subr.bf16.mxu0 %v1543
    %2548 = vmatpush1.bf16.msra.mxu0 %v1542
    %2549 = vmatprep.subr.bf16.mxu0 %v1547
    %2550 = vmatpush1.bf16.msra.mxu0 %v1546
    %2551 = vmatprep.subr.bf16.mxu0 %v1551
    %2552 = vmatpush1.bf16.msra.mxu0 %v1550
    %2553 = vmatprep.subr.bf16.mxu0 %v1555
    %2554 = vmatpush1.bf16.msra.mxu0 %v1554
    %2555 = vmatprep.subr.bf16.mxu0 %v1559
    %2556 = vmatpush1.bf16.msra.mxu0 %v1558
    %2557 = vmatprep.subr.bf16.mxu0 %v1563
    %2558 = vmatpush1.bf16.msra.mxu0 %v1562
    %2559 = vmatprep.subr.bf16.mxu0 %v1567
    %2560 = vmatpush1.bf16.msra.mxu0 %v1566
    %2561 = vmatprep.subr.bf16.mxu0 %v1571
    %2562 = vmatpush1.bf16.msra.mxu0 %v1570
    %2563 = vmatprep.subr.bf16.mxu0 %v1575
    %2564 = vmatpush1.bf16.msra.mxu0 %v1574
    %2565 = vmatprep.subr.bf16.mxu0 %v1579
    %2566 = vmatpush1.bf16.msra.mxu0 %v1578
    %2567 = vmatprep.subr.bf16.mxu0 %v1583
    %2568 = vmatpush1.bf16.msra.mxu0 %v1582
    %2569 = vmatprep.subr.bf16.mxu0 %v1587
    %2570 = vmatpush1.bf16.msra.mxu0 %v1586
    %2571 = vmatprep.subr.bf16.mxu0 %v1591
    %2572 = vmatpush1.bf16.msra.mxu0 %v1590
    %2573 = vmatprep.mubr.bf16.mxu0 %v571
    %2574 = vmatmul.mubr.bf16.gmra.mrb[0].mxu0 %v570
    %v2575 = vpop.f32.mrb[0].mxu0
    %v2576 = vadd.f32 %v2463, %v2575
    %v2577 = vpop.f32.mrb[0].mxu0
    %v2578 = vadd.f32 %v2465, %v2577
    %v2579 = vpop.f32.mrb[0].mxu0
    %v2580 = vadd.f32 %v2467, %v2579
    %v2581 = vpop.f32.mrb[0].mxu0
    %v2582 = vadd.f32 %v2469, %v2581
    %2583 = vmatprep.mubr.bf16.mxu0 %v579
    %2584 = vmatmul.mubr.bf16.gmra.mrb[0].mxu0 %v578
    %v2585 = vpop.f32.mrb[0].mxu0
    %v2586 = vadd.f32 %v2473, %v2585
    %v2587 = vpop.f32.mrb[0].mxu0
    %v2588 = vadd.f32 %v2475, %v2587
    %v2589 = vpop.f32.mrb[0].mxu0
    %v2590 = vadd.f32 %v2477, %v2589
    %v2591 = vpop.f32.mrb[0].mxu0
    %v2592 = vadd.f32 %v2479, %v2591
    %2593 = vmatprep.mubr.bf16.mxu0 %v587
    %2594 = vmatmul.mubr.bf16.gmra.mrb[0].mxu0 %v586
    %v2595 = vpop.f32.mrb[0].mxu0
    %v2596 = vadd.f32 %v2483, %v2595
    %v2597 = vpop.f32.mrb[0].mxu0
    %v2598 = vadd.f32 %v2485, %v2597
    %v2599 = vpop.f32.mrb[0].mxu0
    %v2600 = vadd.f32 %v2487, %v2599
    %v2601 = vpop.f32.mrb[0].mxu0
    %v2602 = vadd.f32 %v2489, %v2601
    %2603 = vmatprep.mubr.bf16.mxu0 %v595
    %2604 = vmatmul.mubr.bf16.gmra.mrb[0].mxu0 %v594
    %v2605 = vpop.f32.mrb[0].mxu0
    %v2606 = vadd.f32 %v2493, %v2605
    %v2607 = vpop.f32.mrb[0].mxu0
    %v2608 = vadd.f32 %v2495, %v2607
    %v2609 = vpop.f32.mrb[0].mxu0
    %v2610 = vadd.f32 %v2497, %v2609
    %v2611 = vpop.f32.mrb[0].mxu0
    %v2612 = vadd.f32 %v2499, %v2611
    %2613 = vmatprep.mubr.bf16.mxu0 %v603
    %2614 = vmatmul.mubr.bf16.gmra.mrb[0].mxu0 %v602
    %v2615 = vpop.f32.mrb[0].mxu0
    %v2616 = vadd.f32 %v2503, %v2615
    %v2617 = vpop.f32.mrb[0].mxu0
    %v2618 = vadd.f32 %v2505, %v2617
    %v2619 = vpop.f32.mrb[0].mxu0
    %v2620 = vadd.f32 %v2507, %v2619
    %v2621 = vpop.f32.mrb[0].mxu0
    %v2622 = vadd.f32 %v2509, %v2621
    %2623 = vmatprep.mubr.bf16.mxu0 %v611
    %2624 = vmatmul.mubr.bf16.gmra.mrb[0].mxu0 %v610
    %v2625 = vpop.f32.mrb[0].mxu0
    %v2626 = vadd.f32 %v2513, %v2625
    %v2627 = vpop.f32.mrb[0].mxu0
    %v2628 = vadd.f32 %v2515, %v2627
    %v2629 = vpop.f32.mrb[0].mxu0
    %v2630 = vadd.f32 %v2517, %v2629
    %v2631 = vpop.f32.mrb[0].mxu0
    %v2632 = vadd.f32 %v2519, %v2631
    %2633 = vmatprep.mubr.bf16.mxu0 %v619
    %2634 = vmatmul.mubr.bf16.gmra.mrb[0].mxu0 %v618
    %v2635 = vpop.f32.mrb[0].mxu0
    %v2636 = vadd.f32 %v2523, %v2635
    %v2637 = vpop.f32.mrb[0].mxu0
    %v2638 = vadd.f32 %v2525, %v2637
    %v2639 = vpop.f32.mrb[0].mxu0
    %v2640 = vadd.f32 %v2527, %v2639
    %v2641 = vpop.f32.mrb[0].mxu0
    %v2642 = vadd.f32 %v2529, %v2641
    %2643 = vmatprep.mubr.bf16.mxu0 %v627
    %2644 = vmatmul.mubr.bf16.gmra.mrb[0].mxu0 %v626
    %v2645 = vpop.f32.mrb[0].mxu0
    %v2646 = vadd.f32 %v2533, %v2645
    %v2647 = vpop.f32.mrb[0].mxu0
    %v2648 = vadd.f32 %v2535, %v2647
    %v2649 = vpop.f32.mrb[0].mxu0
    %v2650 = vadd.f32 %v2537, %v2649
    %v2651 = vpop.f32.mrb[0].mxu0
    %v2652 = vadd.f32 %v2539, %v2651
    %2653 = vdwg.mxu0
    %2654 = vmatprep.subr.bf16.mxu0 %v1595
    %2655 = vmatpush1.bf16.msra.mxu0 %v1594
    %2656 = vmatprep.subr.bf16.mxu0 %v1599
    %2657 = vmatpush1.bf16.msra.mxu0 %v1598
    %2658 = vmatprep.subr.bf16.mxu0 %v1603
    %2659 = vmatpush1.bf16.msra.mxu0 %v1602
    %2660 = vmatprep.subr.bf16.mxu0 %v1607
    %2661 = vmatpush1.bf16.msra.mxu0 %v1606
    %2662 = vmatprep.subr.bf16.mxu0 %v1611
    %2663 = vmatpush1.bf16.msra.mxu0 %v1610
    %2664 = vmatprep.subr.bf16.mxu0 %v1615
    %2665 = vmatpush1.bf16.msra.mxu0 %v1614
    %2666 = vmatprep.subr.bf16.mxu0 %v1619
    %2667 = vmatpush1.bf16.msra.mxu0 %v1618
    %2668 = vmatprep.subr.bf16.mxu0 %v1623
    %2669 = vmatpush1.bf16.msra.mxu0 %v1622
    %2670 = vmatprep.subr.bf16.mxu0 %v1627
    %2671 = vmatpush1.bf16.msra.mxu0 %v1626
    %2672 = vmatprep.subr.bf16.mxu0 %v1631
    %2673 = vmatpush1.bf16.msra.mxu0 %v1630
    %2674 = vmatprep.subr.bf16.mxu0 %v1635
    %2675 = vmatpush1.bf16.msra.mxu0 %v1634
    %2676 = vmatprep.subr.bf16.mxu0 %v1639
    %2677 = vmatpush1.bf16.msra.mxu0 %v1638
    %2678 = vmatprep.subr.bf16.mxu0 %v1643
    %2679 = vmatpush1.bf16.msra.mxu0 %v1642
    %2680 = vmatprep.subr.bf16.mxu0 %v1647
    %2681 = vmatpush1.bf16.msra.mxu0 %v1646
    %2682 = vmatprep.subr.bf16.mxu0 %v1651
    %2683 = vmatpush1.bf16.msra.mxu0 %v1650
    %2684 = vmatprep.subr.bf16.mxu0 %v1655
    %2685 = vmatpush1.bf16.msra.mxu0 %v1654
    %2686 = vmatprep.mubr.bf16.mxu0 %v573
    %2687 = vmatmul.mubr.bf16.gmra.mrb[0].mxu0 %v572
    %v2688 = vpop.f32.mrb[0].mxu0
    %v2689 = vadd.f32 %v2576, %v2688
    %v2690 = vpop.f32.mrb[0].mxu0
    %v2691 = vadd.f32 %v2578, %v2690
    %v2692 = vpop.f32.mrb[0].mxu0
    %v2693 = vadd.f32 %v2580, %v2692
    %v2694 = vpop.f32.mrb[0].mxu0
    %v2695 = vadd.f32 %v2582, %v2694
    %2696 = vmatprep.mubr.bf16.mxu0 %v581
    %2697 = vmatmul.mubr.bf16.gmra.mrb[0].mxu0 %v580
    %v2698 = vpop.f32.mrb[0].mxu0
    %v2699 = vadd.f32 %v2586, %v2698
    %v2700 = vpop.f32.mrb[0].mxu0
    %v2701 = vadd.f32 %v2588, %v2700
    %v2702 = vpop.f32.mrb[0].mxu0
    %v2703 = vadd.f32 %v2590, %v2702
    %v2704 = vpop.f32.mrb[0].mxu0
    %v2705 = vadd.f32 %v2592, %v2704
    %2706 = vmatprep.mubr.bf16.mxu0 %v589
    %2707 = vmatmul.mubr.bf16.gmra.mrb[0].mxu0 %v588
    %v2708 = vpop.f32.mrb[0].mxu0
    %v2709 = vadd.f32 %v2596, %v2708
    %v2710 = vpop.f32.mrb[0].mxu0
    %v2711 = vadd.f32 %v2598, %v2710
    %v2712 = vpop.f32.mrb[0].mxu0
    %v2713 = vadd.f32 %v2600, %v2712
    %v2714 = vpop.f32.mrb[0].mxu0
    %v2715 = vadd.f32 %v2602, %v2714
    %2716 = vmatprep.mubr.bf16.mxu0 %v597
    %2717 = vmatmul.mubr.bf16.gmra.mrb[0].mxu0 %v596
    %v2718 = vpop.f32.mrb[0].mxu0
    %v2719 = vadd.f32 %v2606, %v2718
    %v2720 = vpop.f32.mrb[0].mxu0
    %v2721 = vadd.f32 %v2608, %v2720
    %v2722 = vpop.f32.mrb[0].mxu0
    %v2723 = vadd.f32 %v2610, %v2722
    %v2724 = vpop.f32.mrb[0].mxu0
    %v2725 = vadd.f32 %v2612, %v2724
    %2726 = vmatprep.mubr.bf16.mxu0 %v605
    %2727 = vmatmul.mubr.bf16.gmra.mrb[0].mxu0 %v604
    %v2728 = vpop.f32.mrb[0].mxu0
    %v2729 = vadd.f32 %v2616, %v2728
    %v2730 = vpop.f32.mrb[0].mxu0
    %v2731 = vadd.f32 %v2618, %v2730
    %v2732 = vpop.f32.mrb[0].mxu0
    %v2733 = vadd.f32 %v2620, %v2732
    %v2734 = vpop.f32.mrb[0].mxu0
    %v2735 = vadd.f32 %v2622, %v2734
    %2736 = vmatprep.mubr.bf16.mxu0 %v613
    %2737 = vmatmul.mubr.bf16.gmra.mrb[0].mxu0 %v612
    %v2738 = vpop.f32.mrb[0].mxu0
    %v2739 = vadd.f32 %v2626, %v2738
    %v2740 = vpop.f32.mrb[0].mxu0
    %v2741 = vadd.f32 %v2628, %v2740
    %v2742 = vpop.f32.mrb[0].mxu0
    %v2743 = vadd.f32 %v2630, %v2742
    %v2744 = vpop.f32.mrb[0].mxu0
    %v2745 = vadd.f32 %v2632, %v2744
    %2746 = vmatprep.mubr.bf16.mxu0 %v621
    %2747 = vmatmul.mubr.bf16.gmra.mrb[0].mxu0 %v620
    %v2748 = vpop.f32.mrb[0].mxu0
    %v2749 = vadd.f32 %v2636, %v2748
    %v2750 = vpop.f32.mrb[0].mxu0
    %v2751 = vadd.f32 %v2638, %v2750
    %v2752 = vpop.f32.mrb[0].mxu0
    %v2753 = vadd.f32 %v2640, %v2752
    %v2754 = vpop.f32.mrb[0].mxu0
    %v2755 = vadd.f32 %v2642, %v2754
    %2756 = vmatprep.mubr.bf16.mxu0 %v629
    %2757 = vmatmul.mubr.bf16.gmra.mrb[0].mxu0 %v628
    %v2758 = vpop.f32.mrb[0].mxu0
    %v2759 = vadd.f32 %v2646, %v2758
    %v2760 = vpop.f32.mrb[0].mxu0
    %v2761 = vadd.f32 %v2648, %v2760
    %v2762 = vpop.f32.mrb[0].mxu0
    %v2763 = vadd.f32 %v2650, %v2762
    %v2764 = vpop.f32.mrb[0].mxu0
    %v2765 = vadd.f32 %v2652, %v2764
    %2766 = vdwg.mxu0
    %2767 = vmatprep.subr.bf16.mxu0 %v1659
    %2768 = vmatpush1.bf16.msra.mxu0 %v1658
    %2769 = vmatprep.subr.bf16.mxu0 %v1663
    %2770 = vmatpush1.bf16.msra.mxu0 %v1662
    %2771 = vmatprep.subr.bf16.mxu0 %v1667
    %2772 = vmatpush1.bf16.msra.mxu0 %v1666
    %2773 = vmatprep.subr.bf16.mxu0 %v1671
    %2774 = vmatpush1.bf16.msra.mxu0 %v1670
    %2775 = vmatprep.subr.bf16.mxu0 %v1675
    %2776 = vmatpush1.bf16.msra.mxu0 %v1674
    %2777 = vmatprep.subr.bf16.mxu0 %v1679
    %2778 = vmatpush1.bf16.msra.mxu0 %v1678
    %2779 = vmatprep.subr.bf16.mxu0 %v1683
    %2780 = vmatpush1.bf16.msra.mxu0 %v1682
    %2781 = vmatprep.subr.bf16.mxu0 %v1687
    %2782 = vmatpush1.bf16.msra.mxu0 %v1686
    %2783 = vmatprep.subr.bf16.mxu0 %v1691
    %2784 = vmatpush1.bf16.msra.mxu0 %v1690
    %2785 = vmatprep.subr.bf16.mxu0 %v1695
    %2786 = vmatpush1.bf16.msra.mxu0 %v1694
    %2787 = vmatprep.subr.bf16.mxu0 %v1699
    %2788 = vmatpush1.bf16.msra.mxu0 %v1698
    %2789 = vmatprep.subr.bf16.mxu0 %v1703
    %2790 = vmatpush1.bf16.msra.mxu0 %v1702
    %2791 = vmatprep.subr.bf16.mxu0 %v1707
    %2792 = vmatpush1.bf16.msra.mxu0 %v1706
    %2793 = vmatprep.subr.bf16.mxu0 %v1711
    %2794 = vmatpush1.bf16.msra.mxu0 %v1710
    %2795 = vmatprep.subr.bf16.mxu0 %v1715
    %2796 = vmatpush1.bf16.msra.mxu0 %v1714
    %2797 = vmatprep.subr.bf16.mxu0 %v1719
    %2798 = vmatpush1.bf16.msra.mxu0 %v1718
    %2799 = vmatprep.mubr.bf16.mxu0 %v575
    %2800 = vmatmul.mubr.bf16.gmra.mrb[0].mxu0 %v574
    %v2801 = vpop.f32.mrb[0].mxu0
    %v2802 = vadd.f32 %v2689, %v2801
    %v2803 = vpop.f32.mrb[0].mxu0
    %v2804 = vadd.f32 %v2691, %v2803
    %v2805 = vpop.f32.mrb[0].mxu0
    %v2806 = vadd.f32 %v2693, %v2805
    %v2807 = vpop.f32.mrb[0].mxu0
    %v2808 = vadd.f32 %v2695, %v2807
    %2809 = vmatprep.mubr.bf16.mxu0 %v583
    %2810 = vmatmul.mubr.bf16.gmra.mrb[0].mxu0 %v582
    %v2811 = vpop.f32.mrb[0].mxu0
    %v2812 = vadd.f32 %v2699, %v2811
    %v2813 = vpop.f32.mrb[0].mxu0
    %v2814 = vadd.f32 %v2701, %v2813
    %v2815 = vpop.f32.mrb[0].mxu0
    %v2816 = vadd.f32 %v2703, %v2815
    %v2817 = vpop.f32.mrb[0].mxu0
    %v2818 = vadd.f32 %v2705, %v2817
    %2819 = vmatprep.mubr.bf16.mxu0 %v591
    %2820 = vmatmul.mubr.bf16.gmra.mrb[0].mxu0 %v590
    %v2821 = vpop.f32.mrb[0].mxu0
    %v2822 = vadd.f32 %v2709, %v2821
    %v2823 = vpop.f32.mrb[0].mxu0
    %v2824 = vadd.f32 %v2711, %v2823
    %v2825 = vpop.f32.mrb[0].mxu0
    %v2826 = vadd.f32 %v2713, %v2825
    %v2827 = vpop.f32.mrb[0].mxu0
    %v2828 = vadd.f32 %v2715, %v2827
    %2829 = vmatprep.mubr.bf16.mxu0 %v599
    %2830 = vmatmul.mubr.bf16.gmra.mrb[0].mxu0 %v598
    %v2831 = vpop.f32.mrb[0].mxu0
    %v2832 = vadd.f32 %v2719, %v2831
    %v2833 = vpop.f32.mrb[0].mxu0
    %v2834 = vadd.f32 %v2721, %v2833
    %v2835 = vpop.f32.mrb[0].mxu0
    %v2836 = vadd.f32 %v2723, %v2835
    %v2837 = vpop.f32.mrb[0].mxu0
    %v2838 = vadd.f32 %v2725, %v2837
    %2839 = vmatprep.mubr.bf16.mxu0 %v607
    %2840 = vmatmul.mubr.bf16.gmra.mrb[0].mxu0 %v606
    %v2841 = vpop.f32.mrb[0].mxu0
    %v2842 = vadd.f32 %v2729, %v2841
    %v2843 = vpop.f32.mrb[0].mxu0
    %v2844 = vadd.f32 %v2731, %v2843
    %v2845 = vpop.f32.mrb[0].mxu0
    %v2846 = vadd.f32 %v2733, %v2845
    %v2847 = vpop.f32.mrb[0].mxu0
    %v2848 = vadd.f32 %v2735, %v2847
    %2849 = vmatprep.mubr.bf16.mxu0 %v615
    %2850 = vmatmul.mubr.bf16.gmra.mrb[0].mxu0 %v614
    %v2851 = vpop.f32.mrb[0].mxu0
    %v2852 = vadd.f32 %v2739, %v2851
    %v2853 = vpop.f32.mrb[0].mxu0
    %v2854 = vadd.f32 %v2741, %v2853
    %v2855 = vpop.f32.mrb[0].mxu0
    %v2856 = vadd.f32 %v2743, %v2855
    %v2857 = vpop.f32.mrb[0].mxu0
    %v2858 = vadd.f32 %v2745, %v2857
    %2859 = vmatprep.mubr.bf16.mxu0 %v623
    %2860 = vmatmul.mubr.bf16.gmra.mrb[0].mxu0 %v622
    %v2861 = vpop.f32.mrb[0].mxu0
    %v2862 = vadd.f32 %v2749, %v2861
    %v2863 = vpop.f32.mrb[0].mxu0
    %v2864 = vadd.f32 %v2751, %v2863
    %v2865 = vpop.f32.mrb[0].mxu0
    %v2866 = vadd.f32 %v2753, %v2865
    %v2867 = vpop.f32.mrb[0].mxu0
    %v2868 = vadd.f32 %v2755, %v2867
    %2869 = vmatprep.mubr.bf16.mxu0 %v631
    %2870 = vmatmul.mubr.bf16.gmra.mrb[0].mxu0 %v630
    %v2871 = vpop.f32.mrb[0].mxu0
    %v2872 = vadd.f32 %v2759, %v2871
    %v2873 = vpop.f32.mrb[0].mxu0
    %v2874 = vadd.f32 %v2761, %v2873
    %v2875 = vpop.f32.mrb[0].mxu0
    %v2876 = vadd.f32 %v2763, %v2875
    %v2877 = vpop.f32.mrb[0].mxu0
    %v2878 = vadd.f32 %v2765, %v2877
    %2879 = vdwg.mxu0
    %v2880 = vld [vmem:[#allocation7] sm:$0xff]
    %v2881 = vld [vmem:[#allocation7 + $0x8] sm:$0xff]
    %v2882 = vld [vmem:[#allocation7 + $0x14] sm:$0xff]
    %v2883 = vld [vmem:[#allocation7 + $0x1c] sm:$0xff]
    %v2884 = vld [vmem:[#allocation7 + $0x28] sm:$0xff]
    %v2885 = vld [vmem:[#allocation7 + $0x30] sm:$0xff]
    %v2886 = vld [vmem:[#allocation7 + $0x3c] sm:$0xff]
    %v2887 = vld [vmem:[#allocation7 + $0x44] sm:$0xff]
    %v2888 = vld [vmem:[#allocation7 + $0x50] sm:$0xff]
    %v2889 = vld [vmem:[#allocation7 + $0x58] sm:$0xff]
    %v2890 = vld [vmem:[#allocation7 + $0x64] sm:$0xff]
    %v2891 = vld [vmem:[#allocation7 + $0x6c] sm:$0xff]
    %v2892 = vld [vmem:[#allocation7 + $0x78] sm:$0xff]
    %v2893 = vld [vmem:[#allocation7 + $0x80] sm:$0xff]
    %v2894 = vld [vmem:[#allocation7 + $0x8c] sm:$0xff]
    %v2895 = vld [vmem:[#allocation7 + $0x94] sm:$0xff]
    %v2896 = vld [vmem:[#allocation7 + $0xa0] sm:$0xff]
    %v2897 = vld [vmem:[#allocation7 + $0xa8] sm:$0xff]
    %v2898 = vld [vmem:[#allocation7 + $0xb4] sm:$0xff]
    %v2899 = vld [vmem:[#allocation7 + $0xbc] sm:$0xff]
    %v2900 = vld [vmem:[#allocation7 + $0xc8] sm:$0xff]
    %v2901 = vld [vmem:[#allocation7 + $0xd0] sm:$0xff]
    %v2902 = vld [vmem:[#allocation7 + $0xdc] sm:$0xff]
    %v2903 = vld [vmem:[#allocation7 + $0xe4] sm:$0xff]
    %v2904 = vld [vmem:[#allocation7 + $0xf0] sm:$0xff]
    %v2905 = vld [vmem:[#allocation7 + $0xf8] sm:$0xff]
    %v2906 = vld [vmem:[#allocation7 + $0x104] sm:$0xff]
    %v2907 = vld [vmem:[#allocation7 + $0x10c] sm:$0xff]
    %v2908 = vld [vmem:[#allocation7 + $0x118] sm:$0xff]
    %v2909 = vld [vmem:[#allocation7 + $0x120] sm:$0xff]
    %v2910 = vld [vmem:[#allocation7 + $0x12c] sm:$0xff]
    %v2911 = vld [vmem:[#allocation7 + $0x134] sm:$0xff]
    %v2912 = vld [vmem:[#allocation7 + $0x140] sm:$0xff]
    %v2913 = vld [vmem:[#allocation7 + $0x148] sm:$0xff]
    %v2914 = vld [vmem:[#allocation7 + $0x154] sm:$0xff]
    %v2915 = vld [vmem:[#allocation7 + $0x15c] sm:$0xff]
    %v2916 = vld [vmem:[#allocation7 + $0x168] sm:$0xff]
    %v2917 = vld [vmem:[#allocation7 + $0x170] sm:$0xff]
    %v2918 = vld [vmem:[#allocation7 + $0x17c] sm:$0xff]
    %v2919 = vld [vmem:[#allocation7 + $0x184] sm:$0xff]
    %v2920 = vld [vmem:[#allocation7 + $0x190] sm:$0xff]
    %v2921 = vld [vmem:[#allocation7 + $0x198] sm:$0xff]
    %v2922 = vld [vmem:[#allocation7 + $0x1a4] sm:$0xff]
    %v2923 = vld [vmem:[#allocation7 + $0x1ac] sm:$0xff]
    %v2924 = vld [vmem:[#allocation7 + $0x1b8] sm:$0xff]
    %v2925 = vld [vmem:[#allocation7 + $0x1c0] sm:$0xff]
    %v2926 = vld [vmem:[#allocation7 + $0x1cc] sm:$0xff]
    %v2927 = vld [vmem:[#allocation7 + $0x1d4] sm:$0xff]
    %v2928 = vld [vmem:[#allocation7 + $0x1e0] sm:$0xff]
    %v2929 = vld [vmem:[#allocation7 + $0x1e8] sm:$0xff]
    %v2930 = vld [vmem:[#allocation7 + $0x1f4] sm:$0xff]
    %v2931 = vld [vmem:[#allocation7 + $0x1fc] sm:$0xff]
    %v2932 = vld [vmem:[#allocation7 + $0x208] sm:$0xff]
    %v2933 = vld [vmem:[#allocation7 + $0x210] sm:$0xff]
    %v2934 = vld [vmem:[#allocation7 + $0x21c] sm:$0xff]
    %v2935 = vld [vmem:[#allocation7 + $0x224] sm:$0xff]
    %v2936 = vld [vmem:[#allocation7 + $0x230] sm:$0xff]
    %v2937 = vld [vmem:[#allocation7 + $0x238] sm:$0xff]
    %v2938 = vld [vmem:[#allocation7 + $0x244] sm:$0xff]
    %v2939 = vld [vmem:[#allocation7 + $0x24c] sm:$0xff]
    %v2940 = vld [vmem:[#allocation7 + $0x258] sm:$0xff]
    %v2941 = vld [vmem:[#allocation7 + $0x260] sm:$0xff]
    %v2942 = vld [vmem:[#allocation7 + $0x26c] sm:$0xff]
    %v2943 = vld [vmem:[#allocation7 + $0x274] sm:$0xff]
    %v2944 = vld [vmem:[#allocation7 + $0x280] sm:$0xff]
    %v2945 = vld [vmem:[#allocation7 + $0x288] sm:$0xff]
    %v2946 = vld [vmem:[#allocation7 + $0x294] sm:$0xff]
    %v2947 = vld [vmem:[#allocation7 + $0x29c] sm:$0xff]
    %v2948 = vld [vmem:[#allocation7 + $0x2a8] sm:$0xff]
    %v2949 = vld [vmem:[#allocation7 + $0x2b0] sm:$0xff]
    %v2950 = vld [vmem:[#allocation7 + $0x2bc] sm:$0xff]
    %v2951 = vld [vmem:[#allocation7 + $0x2c4] sm:$0xff]
    %v2952 = vld [vmem:[#allocation7 + $0x2d0] sm:$0xff]
    %v2953 = vld [vmem:[#allocation7 + $0x2d8] sm:$0xff]
    %v2954 = vld [vmem:[#allocation7 + $0x2e4] sm:$0xff]
    %v2955 = vld [vmem:[#allocation7 + $0x2ec] sm:$0xff]
    %v2956 = vld [vmem:[#allocation7 + $0x2f8] sm:$0xff]
    %v2957 = vld [vmem:[#allocation7 + $0x300] sm:$0xff]
    %v2958 = vld [vmem:[#allocation7 + $0x30c] sm:$0xff]
    %v2959 = vld [vmem:[#allocation7 + $0x314] sm:$0xff]
    %v2960 = vld [vmem:[#allocation7 + $0x320] sm:$0xff]
    %v2961 = vld [vmem:[#allocation7 + $0x328] sm:$0xff]
    %v2962 = vld [vmem:[#allocation7 + $0x334] sm:$0xff]
    %v2963 = vld [vmem:[#allocation7 + $0x33c] sm:$0xff]
    %v2964 = vld [vmem:[#allocation7 + $0x348] sm:$0xff]
    %v2965 = vld [vmem:[#allocation7 + $0x350] sm:$0xff]
    %v2966 = vld [vmem:[#allocation7 + $0x35c] sm:$0xff]
    %v2967 = vld [vmem:[#allocation7 + $0x364] sm:$0xff]
    %v2968 = vld [vmem:[#allocation7 + $0x370] sm:$0xff]
    %v2969 = vld [vmem:[#allocation7 + $0x378] sm:$0xff]
    %v2970 = vld [vmem:[#allocation7 + $0x384] sm:$0xff]
    %v2971 = vld [vmem:[#allocation7 + $0x38c] sm:$0xff]
    %v2972 = vld [vmem:[#allocation7 + $0x398] sm:$0xff]
    %v2973 = vld [vmem:[#allocation7 + $0x3a0] sm:$0xff]
    %v2974 = vld [vmem:[#allocation7 + $0x3ac] sm:$0xff]
    %v2975 = vld [vmem:[#allocation7 + $0x3b4] sm:$0xff]
    %v2976 = vld [vmem:[#allocation7 + $0x3c0] sm:$0xff]
    %v2977 = vld [vmem:[#allocation7 + $0x3c8] sm:$0xff]
    %v2978 = vld [vmem:[#allocation7 + $0x3d4] sm:$0xff]
    %v2979 = vld [vmem:[#allocation7 + $0x3dc] sm:$0xff]
    %v2980 = vld [vmem:[#allocation7 + $0x3e8] sm:$0xff]
    %v2981 = vld [vmem:[#allocation7 + $0x3f0] sm:$0xff]
    %v2982 = vld [vmem:[#allocation7 + $0x3fc] sm:$0xff]
    %v2983 = vld [vmem:[#allocation7 + $0x404] sm:$0xff]
    %v2984 = vld [vmem:[#allocation7 + $0x410] sm:$0xff]
    %v2985 = vld [vmem:[#allocation7 + $0x418] sm:$0xff]
    %v2986 = vld [vmem:[#allocation7 + $0x424] sm:$0xff]
    %v2987 = vld [vmem:[#allocation7 + $0x42c] sm:$0xff]
    %v2988 = vld [vmem:[#allocation7 + $0x438] sm:$0xff]
    %v2989 = vld [vmem:[#allocation7 + $0x440] sm:$0xff]
    %v2990 = vld [vmem:[#allocation7 + $0x44c] sm:$0xff]
    %v2991 = vld [vmem:[#allocation7 + $0x454] sm:$0xff]
    %v2992 = vld [vmem:[#allocation7 + $0x460] sm:$0xff]
    %v2993 = vld [vmem:[#allocation7 + $0x468] sm:$0xff]
    %v2994 = vld [vmem:[#allocation7 + $0x474] sm:$0xff]
    %v2995 = vld [vmem:[#allocation7 + $0x47c] sm:$0xff]
    %v2996 = vld [vmem:[#allocation7 + $0x488] sm:$0xff]
    %v2997 = vld [vmem:[#allocation7 + $0x490] sm:$0xff]
    %v2998 = vld [vmem:[#allocation7 + $0x49c] sm:$0xff]
    %v2999 = vld [vmem:[#allocation7 + $0x4a4] sm:$0xff]
    %v3000 = vld [vmem:[#allocation7 + $0x4b0] sm:$0xff]
    %v3001 = vld [vmem:[#allocation7 + $0x4b8] sm:$0xff]
    %v3002 = vld [vmem:[#allocation7 + $0x4c4] sm:$0xff]
    %v3003 = vld [vmem:[#allocation7 + $0x4cc] sm:$0xff]
    %v3004 = vld [vmem:[#allocation7 + $0x4d8] sm:$0xff]
    %v3005 = vld [vmem:[#allocation7 + $0x4e0] sm:$0xff]
    %v3006 = vld [vmem:[#allocation7 + $0x4ec] sm:$0xff]
    %v3007 = vld [vmem:[#allocation7 + $0x4f4] sm:$0xff]
    %v3008 = vld [vmem:[#allocation7 + $0x500] sm:$0xff]
    %v3009 = vld [vmem:[#allocation7 + $0x508] sm:$0xff]
    %v3010 = vld [vmem:[#allocation7 + $0x514] sm:$0xff]
    %v3011 = vld [vmem:[#allocation7 + $0x51c] sm:$0xff]
    %v3012 = vld [vmem:[#allocation7 + $0x528] sm:$0xff]
    %v3013 = vld [vmem:[#allocation7 + $0x530] sm:$0xff]
    %v3014 = vld [vmem:[#allocation7 + $0x53c] sm:$0xff]
    %v3015 = vld [vmem:[#allocation7 + $0x544] sm:$0xff]
    %v3016 = vld [vmem:[#allocation7 + $0x550] sm:$0xff]
    %v3017 = vld [vmem:[#allocation7 + $0x558] sm:$0xff]
    %v3018 = vld [vmem:[#allocation7 + $0x564] sm:$0xff]
    %v3019 = vld [vmem:[#allocation7 + $0x56c] sm:$0xff]
    %v3020 = vld [vmem:[#allocation7 + $0x578] sm:$0xff]
    %v3021 = vld [vmem:[#allocation7 + $0x580] sm:$0xff]
    %v3022 = vld [vmem:[#allocation7 + $0x58c] sm:$0xff]
    %v3023 = vld [vmem:[#allocation7 + $0x594] sm:$0xff]
    %v3024 = vld [vmem:[#allocation7 + $0x5a0] sm:$0xff]
    %v3025 = vld [vmem:[#allocation7 + $0x5a8] sm:$0xff]
    %v3026 = vld [vmem:[#allocation7 + $0x5b4] sm:$0xff]
    %v3027 = vld [vmem:[#allocation7 + $0x5bc] sm:$0xff]
    %v3028 = vld [vmem:[#allocation7 + $0x5c8] sm:$0xff]
    %v3029 = vld [vmem:[#allocation7 + $0x5d0] sm:$0xff]
    %v3030 = vld [vmem:[#allocation7 + $0x5dc] sm:$0xff]
    %v3031 = vld [vmem:[#allocation7 + $0x5e4] sm:$0xff]
    %v3032 = vld [vmem:[#allocation7 + $0x5f0] sm:$0xff]
    %v3033 = vld [vmem:[#allocation7 + $0x5f8] sm:$0xff]
    %v3034 = vld [vmem:[#allocation7 + $0x604] sm:$0xff]
    %v3035 = vld [vmem:[#allocation7 + $0x60c] sm:$0xff]
    %v3036 = vld [vmem:[#allocation7 + $0x618] sm:$0xff]
    %v3037 = vld [vmem:[#allocation7 + $0x620] sm:$0xff]
    %v3038 = vld [vmem:[#allocation7 + $0x62c] sm:$0xff]
    %v3039 = vld [vmem:[#allocation7 + $0x634] sm:$0xff]
    %v3040 = vld [vmem:[#allocation7 + $0x640] sm:$0xff]
    %v3041 = vld [vmem:[#allocation7 + $0x648] sm:$0xff]
    %v3042 = vld [vmem:[#allocation7 + $0x654] sm:$0xff]
    %v3043 = vld [vmem:[#allocation7 + $0x65c] sm:$0xff]
    %v3044 = vld [vmem:[#allocation7 + $0x668] sm:$0xff]
    %v3045 = vld [vmem:[#allocation7 + $0x670] sm:$0xff]
    %v3046 = vld [vmem:[#allocation7 + $0x67c] sm:$0xff]
    %v3047 = vld [vmem:[#allocation7 + $0x684] sm:$0xff]
    %v3048 = vld [vmem:[#allocation7 + $0x690] sm:$0xff]
    %v3049 = vld [vmem:[#allocation7 + $0x698] sm:$0xff]
    %v3050 = vld [vmem:[#allocation7 + $0x6a4] sm:$0xff]
    %v3051 = vld [vmem:[#allocation7 + $0x6ac] sm:$0xff]
    %v3052 = vld [vmem:[#allocation7 + $0x6b8] sm:$0xff]
    %v3053 = vld [vmem:[#allocation7 + $0x6c0] sm:$0xff]
    %v3054 = vld [vmem:[#allocation7 + $0x6cc] sm:$0xff]
    %v3055 = vld [vmem:[#allocation7 + $0x6d4] sm:$0xff]
    %v3056 = vld [vmem:[#allocation7 + $0x6e0] sm:$0xff]
    %v3057 = vld [vmem:[#allocation7 + $0x6e8] sm:$0xff]
    %v3058 = vld [vmem:[#allocation7 + $0x6f4] sm:$0xff]
    %v3059 = vld [vmem:[#allocation7 + $0x6fc] sm:$0xff]
    %v3060 = vld [vmem:[#allocation7 + $0x708] sm:$0xff]
    %v3061 = vld [vmem:[#allocation7 + $0x710] sm:$0xff]
    %v3062 = vld [vmem:[#allocation7 + $0x71c] sm:$0xff]
    %v3063 = vld [vmem:[#allocation7 + $0x724] sm:$0xff]
    %v3064 = vld [vmem:[#allocation7 + $0x730] sm:$0xff]
    %v3065 = vld [vmem:[#allocation7 + $0x738] sm:$0xff]
    %v3066 = vld [vmem:[#allocation7 + $0x744] sm:$0xff]
    %v3067 = vld [vmem:[#allocation7 + $0x74c] sm:$0xff]
    %v3068 = vld [vmem:[#allocation7 + $0x758] sm:$0xff]
    %v3069 = vld [vmem:[#allocation7 + $0x760] sm:$0xff]
    %v3070 = vld [vmem:[#allocation7 + $0x76c] sm:$0xff]
    %v3071 = vld [vmem:[#allocation7 + $0x774] sm:$0xff]
    %v3072 = vld [vmem:[#allocation7 + $0x780] sm:$0xff]
    %v3073 = vld [vmem:[#allocation7 + $0x788] sm:$0xff]
    %v3074 = vld [vmem:[#allocation7 + $0x794] sm:$0xff]
    %v3075 = vld [vmem:[#allocation7 + $0x79c] sm:$0xff]
    %v3076 = vld [vmem:[#allocation7 + $0x7a8] sm:$0xff]
    %v3077 = vld [vmem:[#allocation7 + $0x7b0] sm:$0xff]
    %v3078 = vld [vmem:[#allocation7 + $0x7bc] sm:$0xff]
    %v3079 = vld [vmem:[#allocation7 + $0x7c4] sm:$0xff]
    %v3080 = vld [vmem:[#allocation7 + $0x7d0] sm:$0xff]
    %v3081 = vld [vmem:[#allocation7 + $0x7d8] sm:$0xff]
    %v3082 = vld [vmem:[#allocation7 + $0x7e4] sm:$0xff]
    %v3083 = vld [vmem:[#allocation7 + $0x7ec] sm:$0xff]
    %v3084 = vld [vmem:[#allocation7 + $0x7f8] sm:$0xff]
    %v3085 = vld [vmem:[#allocation7 + $0x800] sm:$0xff]
    %v3086 = vld [vmem:[#allocation7 + $0x80c] sm:$0xff]
    %v3087 = vld [vmem:[#allocation7 + $0x814] sm:$0xff]
    %v3088 = vld [vmem:[#allocation7 + $0x820] sm:$0xff]
    %v3089 = vld [vmem:[#allocation7 + $0x828] sm:$0xff]
    %v3090 = vld [vmem:[#allocation7 + $0x834] sm:$0xff]
    %v3091 = vld [vmem:[#allocation7 + $0x83c] sm:$0xff]
    %v3092 = vld [vmem:[#allocation7 + $0x848] sm:$0xff]
    %v3093 = vld [vmem:[#allocation7 + $0x850] sm:$0xff]
    %v3094 = vld [vmem:[#allocation7 + $0x85c] sm:$0xff]
    %v3095 = vld [vmem:[#allocation7 + $0x864] sm:$0xff]
    %v3096 = vld [vmem:[#allocation7 + $0x870] sm:$0xff]
    %v3097 = vld [vmem:[#allocation7 + $0x878] sm:$0xff]
    %v3098 = vld [vmem:[#allocation7 + $0x884] sm:$0xff]
    %v3099 = vld [vmem:[#allocation7 + $0x88c] sm:$0xff]
    %v3100 = vld [vmem:[#allocation7 + $0x898] sm:$0xff]
    %v3101 = vld [vmem:[#allocation7 + $0x8a0] sm:$0xff]
    %v3102 = vld [vmem:[#allocation7 + $0x8ac] sm:$0xff]
    %v3103 = vld [vmem:[#allocation7 + $0x8b4] sm:$0xff]
    %v3104 = vld [vmem:[#allocation7 + $0x8c0] sm:$0xff]
    %v3105 = vld [vmem:[#allocation7 + $0x8c8] sm:$0xff]
    %v3106 = vld [vmem:[#allocation7 + $0x8d4] sm:$0xff]
    %v3107 = vld [vmem:[#allocation7 + $0x8dc] sm:$0xff]
    %v3108 = vld [vmem:[#allocation7 + $0x8e8] sm:$0xff]
    %v3109 = vld [vmem:[#allocation7 + $0x8f0] sm:$0xff]
    %v3110 = vld [vmem:[#allocation7 + $0x8fc] sm:$0xff]
    %v3111 = vld [vmem:[#allocation7 + $0x904] sm:$0xff]
    %v3112 = vld [vmem:[#allocation7 + $0x910] sm:$0xff]
    %v3113 = vld [vmem:[#allocation7 + $0x918] sm:$0xff]
    %v3114 = vld [vmem:[#allocation7 + $0x924] sm:$0xff]
    %v3115 = vld [vmem:[#allocation7 + $0x92c] sm:$0xff]
    %v3116 = vld [vmem:[#allocation7 + $0x938] sm:$0xff]
    %v3117 = vld [vmem:[#allocation7 + $0x940] sm:$0xff]
    %v3118 = vld [vmem:[#allocation7 + $0x94c] sm:$0xff]
    %v3119 = vld [vmem:[#allocation7 + $0x954] sm:$0xff]
    %v3120 = vld [vmem:[#allocation7 + $0x960] sm:$0xff]
    %v3121 = vld [vmem:[#allocation7 + $0x968] sm:$0xff]
    %v3122 = vld [vmem:[#allocation7 + $0x974] sm:$0xff]
    %v3123 = vld [vmem:[#allocation7 + $0x97c] sm:$0xff]
    %v3124 = vld [vmem:[#allocation7 + $0x988] sm:$0xff]
    %v3125 = vld [vmem:[#allocation7 + $0x990] sm:$0xff]
    %v3126 = vld [vmem:[#allocation7 + $0x99c] sm:$0xff]
    %v3127 = vld [vmem:[#allocation7 + $0x9a4] sm:$0xff]
    %v3128 = vld [vmem:[#allocation7 + $0x9b0] sm:$0xff]
    %v3129 = vld [vmem:[#allocation7 + $0x9b8] sm:$0xff]
    %v3130 = vld [vmem:[#allocation7 + $0x9c4] sm:$0xff]
    %v3131 = vld [vmem:[#allocation7 + $0x9cc] sm:$0xff]
    %v3132 = vld [vmem:[#allocation7 + $0x9d8] sm:$0xff]
    %v3133 = vld [vmem:[#allocation7 + $0x9e0] sm:$0xff]
    %v3134 = vld [vmem:[#allocation7 + $0x9ec] sm:$0xff]
    %v3135 = vld [vmem:[#allocation7 + $0x9f4] sm:$0xff]
    %v3392 = vunpack.c.l.b16 %v2880
    %v3393 = vunpack.c.h.b16 %v2880
    %v3394 = vunpack.c.l.b16 %v2881
    %v3395 = vunpack.c.h.b16 %v2881
    %v3396 = vunpack.c.l.b16 %v2882
    %v3397 = vunpack.c.h.b16 %v2882
    %v3398 = vunpack.c.l.b16 %v2883
    %v3399 = vunpack.c.h.b16 %v2883
    %v3400 = vunpack.c.l.b16 %v2884
    %v3401 = vunpack.c.h.b16 %v2884
    %v3402 = vunpack.c.l.b16 %v2885
    %v3403 = vunpack.c.h.b16 %v2885
    %v3404 = vunpack.c.l.b16 %v2886
    %v3405 = vunpack.c.h.b16 %v2886
    %v3406 = vunpack.c.l.b16 %v2887
    %v3407 = vunpack.c.h.b16 %v2887
    %v3408 = vunpack.c.l.b16 %v2888
    %v3409 = vunpack.c.h.b16 %v2888
    %v3410 = vunpack.c.l.b16 %v2889
    %v3411 = vunpack.c.h.b16 %v2889
    %v3412 = vunpack.c.l.b16 %v2890
    %v3413 = vunpack.c.h.b16 %v2890
    %v3414 = vunpack.c.l.b16 %v2891
    %v3415 = vunpack.c.h.b16 %v2891
    %v3416 = vunpack.c.l.b16 %v2892
    %v3417 = vunpack.c.h.b16 %v2892
    %v3418 = vunpack.c.l.b16 %v2893
    %v3419 = vunpack.c.h.b16 %v2893
    %v3420 = vunpack.c.l.b16 %v2894
    %v3421 = vunpack.c.h.b16 %v2894
    %v3422 = vunpack.c.l.b16 %v2895
    %v3423 = vunpack.c.h.b16 %v2895
    %v3424 = vunpack.c.l.b16 %v2896
    %v3425 = vunpack.c.h.b16 %v2896
    %v3426 = vunpack.c.l.b16 %v2897
    %v3427 = vunpack.c.h.b16 %v2897
    %v3428 = vunpack.c.l.b16 %v2898
    %v3429 = vunpack.c.h.b16 %v2898
    %v3430 = vunpack.c.l.b16 %v2899
    %v3431 = vunpack.c.h.b16 %v2899
    %v3432 = vunpack.c.l.b16 %v2900
    %v3433 = vunpack.c.h.b16 %v2900
    %v3434 = vunpack.c.l.b16 %v2901
    %v3435 = vunpack.c.h.b16 %v2901
    %v3436 = vunpack.c.l.b16 %v2902
    %v3437 = vunpack.c.h.b16 %v2902
    %v3438 = vunpack.c.l.b16 %v2903
    %v3439 = vunpack.c.h.b16 %v2903
    %v3440 = vunpack.c.l.b16 %v2904
    %v3441 = vunpack.c.h.b16 %v2904
    %v3442 = vunpack.c.l.b16 %v2905
    %v3443 = vunpack.c.h.b16 %v2905
    %v3444 = vunpack.c.l.b16 %v2906
    %v3445 = vunpack.c.h.b16 %v2906
    %v3446 = vunpack.c.l.b16 %v2907
    %v3447 = vunpack.c.h.b16 %v2907
    %v3448 = vunpack.c.l.b16 %v2908
    %v3449 = vunpack.c.h.b16 %v2908
    %v3450 = vunpack.c.l.b16 %v2909
    %v3451 = vunpack.c.h.b16 %v2909
    %v3452 = vunpack.c.l.b16 %v2910
    %v3453 = vunpack.c.h.b16 %v2910
    %v3454 = vunpack.c.l.b16 %v2911
    %v3455 = vunpack.c.h.b16 %v2911
    %v3456 = vunpack.c.l.b16 %v2912
    %v3457 = vunpack.c.h.b16 %v2912
    %v3458 = vunpack.c.l.b16 %v2913
    %v3459 = vunpack.c.h.b16 %v2913
    %v3460 = vunpack.c.l.b16 %v2914
    %v3461 = vunpack.c.h.b16 %v2914
    %v3462 = vunpack.c.l.b16 %v2915
    %v3463 = vunpack.c.h.b16 %v2915
    %v3464 = vunpack.c.l.b16 %v2916
    %v3465 = vunpack.c.h.b16 %v2916
    %v3466 = vunpack.c.l.b16 %v2917
    %v3467 = vunpack.c.h.b16 %v2917
    %v3468 = vunpack.c.l.b16 %v2918
    %v3469 = vunpack.c.h.b16 %v2918
    %v3470 = vunpack.c.l.b16 %v2919
    %v3471 = vunpack.c.h.b16 %v2919
    %v3472 = vunpack.c.l.b16 %v2920
    %v3473 = vunpack.c.h.b16 %v2920
    %v3474 = vunpack.c.l.b16 %v2921
    %v3475 = vunpack.c.h.b16 %v2921
    %v3476 = vunpack.c.l.b16 %v2922
    %v3477 = vunpack.c.h.b16 %v2922
    %v3478 = vunpack.c.l.b16 %v2923
    %v3479 = vunpack.c.h.b16 %v2923
    %v3480 = vunpack.c.l.b16 %v2924
    %v3481 = vunpack.c.h.b16 %v2924
    %v3482 = vunpack.c.l.b16 %v2925
    %v3483 = vunpack.c.h.b16 %v2925
    %v3484 = vunpack.c.l.b16 %v2926
    %v3485 = vunpack.c.h.b16 %v2926
    %v3486 = vunpack.c.l.b16 %v2927
    %v3487 = vunpack.c.h.b16 %v2927
    %v3488 = vunpack.c.l.b16 %v2928
    %v3489 = vunpack.c.h.b16 %v2928
    %v3490 = vunpack.c.l.b16 %v2929
    %v3491 = vunpack.c.h.b16 %v2929
    %v3492 = vunpack.c.l.b16 %v2930
    %v3493 = vunpack.c.h.b16 %v2930
    %v3494 = vunpack.c.l.b16 %v2931
    %v3495 = vunpack.c.h.b16 %v2931
    %v3496 = vunpack.c.l.b16 %v2932
    %v3497 = vunpack.c.h.b16 %v2932
    %v3498 = vunpack.c.l.b16 %v2933
    %v3499 = vunpack.c.h.b16 %v2933
    %v3500 = vunpack.c.l.b16 %v2934
    %v3501 = vunpack.c.h.b16 %v2934
    %v3502 = vunpack.c.l.b16 %v2935
    %v3503 = vunpack.c.h.b16 %v2935
    %v3504 = vunpack.c.l.b16 %v2936
    %v3505 = vunpack.c.h.b16 %v2936
    %v3506 = vunpack.c.l.b16 %v2937
    %v3507 = vunpack.c.h.b16 %v2937
    %v3508 = vunpack.c.l.b16 %v2938
    %v3509 = vunpack.c.h.b16 %v2938
    %v3510 = vunpack.c.l.b16 %v2939
    %v3511 = vunpack.c.h.b16 %v2939
    %v3512 = vunpack.c.l.b16 %v2940
    %v3513 = vunpack.c.h.b16 %v2940
    %v3514 = vunpack.c.l.b16 %v2941
    %v3515 = vunpack.c.h.b16 %v2941
    %v3516 = vunpack.c.l.b16 %v2942
    %v3517 = vunpack.c.h.b16 %v2942
    %v3518 = vunpack.c.l.b16 %v2943
    %v3519 = vunpack.c.h.b16 %v2943
    %v3520 = vunpack.c.l.b16 %v2944
    %v3521 = vunpack.c.h.b16 %v2944
    %v3522 = vunpack.c.l.b16 %v2945
    %v3523 = vunpack.c.h.b16 %v2945
    %v3524 = vunpack.c.l.b16 %v2946
    %v3525 = vunpack.c.h.b16 %v2946
    %v3526 = vunpack.c.l.b16 %v2947
    %v3527 = vunpack.c.h.b16 %v2947
    %v3528 = vunpack.c.l.b16 %v2948
    %v3529 = vunpack.c.h.b16 %v2948
    %v3530 = vunpack.c.l.b16 %v2949
    %v3531 = vunpack.c.h.b16 %v2949
    %v3532 = vunpack.c.l.b16 %v2950
    %v3533 = vunpack.c.h.b16 %v2950
    %v3534 = vunpack.c.l.b16 %v2951
    %v3535 = vunpack.c.h.b16 %v2951
    %v3536 = vunpack.c.l.b16 %v2952
    %v3537 = vunpack.c.h.b16 %v2952
    %v3538 = vunpack.c.l.b16 %v2953
    %v3539 = vunpack.c.h.b16 %v2953
    %v3540 = vunpack.c.l.b16 %v2954
    %v3541 = vunpack.c.h.b16 %v2954
    %v3542 = vunpack.c.l.b16 %v2955
    %v3543 = vunpack.c.h.b16 %v2955
    %v3544 = vunpack.c.l.b16 %v2956
    %v3545 = vunpack.c.h.b16 %v2956
    %v3546 = vunpack.c.l.b16 %v2957
    %v3547 = vunpack.c.h.b16 %v2957
    %v3548 = vunpack.c.l.b16 %v2958
    %v3549 = vunpack.c.h.b16 %v2958
    %v3550 = vunpack.c.l.b16 %v2959
    %v3551 = vunpack.c.h.b16 %v2959
    %v3552 = vunpack.c.l.b16 %v2960
    %v3553 = vunpack.c.h.b16 %v2960
    %v3554 = vunpack.c.l.b16 %v2961
    %v3555 = vunpack.c.h.b16 %v2961
    %v3556 = vunpack.c.l.b16 %v2962
    %v3557 = vunpack.c.h.b16 %v2962
    %v3558 = vunpack.c.l.b16 %v2963
    %v3559 = vunpack.c.h.b16 %v2963
    %v3560 = vunpack.c.l.b16 %v2964
    %v3561 = vunpack.c.h.b16 %v2964
    %v3562 = vunpack.c.l.b16 %v2965
    %v3563 = vunpack.c.h.b16 %v2965
    %v3564 = vunpack.c.l.b16 %v2966
    %v3565 = vunpack.c.h.b16 %v2966
    %v3566 = vunpack.c.l.b16 %v2967
    %v3567 = vunpack.c.h.b16 %v2967
    %v3568 = vunpack.c.l.b16 %v2968
    %v3569 = vunpack.c.h.b16 %v2968
    %v3570 = vunpack.c.l.b16 %v2969
    %v3571 = vunpack.c.h.b16 %v2969
    %v3572 = vunpack.c.l.b16 %v2970
    %v3573 = vunpack.c.h.b16 %v2970
    %v3574 = vunpack.c.l.b16 %v2971
    %v3575 = vunpack.c.h.b16 %v2971
    %v3576 = vunpack.c.l.b16 %v2972
    %v3577 = vunpack.c.h.b16 %v2972
    %v3578 = vunpack.c.l.b16 %v2973
    %v3579 = vunpack.c.h.b16 %v2973
    %v3580 = vunpack.c.l.b16 %v2974
    %v3581 = vunpack.c.h.b16 %v2974
    %v3582 = vunpack.c.l.b16 %v2975
    %v3583 = vunpack.c.h.b16 %v2975
    %v3584 = vunpack.c.l.b16 %v2976
    %v3585 = vunpack.c.h.b16 %v2976
    %v3586 = vunpack.c.l.b16 %v2977
    %v3587 = vunpack.c.h.b16 %v2977
    %v3588 = vunpack.c.l.b16 %v2978
    %v3589 = vunpack.c.h.b16 %v2978
    %v3590 = vunpack.c.l.b16 %v2979
    %v3591 = vunpack.c.h.b16 %v2979
    %v3592 = vunpack.c.l.b16 %v2980
    %v3593 = vunpack.c.h.b16 %v2980
    %v3594 = vunpack.c.l.b16 %v2981
    %v3595 = vunpack.c.h.b16 %v2981
    %v3596 = vunpack.c.l.b16 %v2982
    %v3597 = vunpack.c.h.b16 %v2982
    %v3598 = vunpack.c.l.b16 %v2983
    %v3599 = vunpack.c.h.b16 %v2983
    %v3600 = vunpack.c.l.b16 %v2984
    %v3601 = vunpack.c.h.b16 %v2984
    %v3602 = vunpack.c.l.b16 %v2985
    %v3603 = vunpack.c.h.b16 %v2985
    %v3604 = vunpack.c.l.b16 %v2986
    %v3605 = vunpack.c.h.b16 %v2986
    %v3606 = vunpack.c.l.b16 %v2987
    %v3607 = vunpack.c.h.b16 %v2987
    %v3608 = vunpack.c.l.b16 %v2988
    %v3609 = vunpack.c.h.b16 %v2988
    %v3610 = vunpack.c.l.b16 %v2989
    %v3611 = vunpack.c.h.b16 %v2989
    %v3612 = vunpack.c.l.b16 %v2990
    %v3613 = vunpack.c.h.b16 %v2990
    %v3614 = vunpack.c.l.b16 %v2991
    %v3615 = vunpack.c.h.b16 %v2991
    %v3616 = vunpack.c.l.b16 %v2992
    %v3617 = vunpack.c.h.b16 %v2992
    %v3618 = vunpack.c.l.b16 %v2993
    %v3619 = vunpack.c.h.b16 %v2993
    %v3620 = vunpack.c.l.b16 %v2994
    %v3621 = vunpack.c.h.b16 %v2994
    %v3622 = vunpack.c.l.b16 %v2995
    %v3623 = vunpack.c.h.b16 %v2995
    %v3624 = vunpack.c.l.b16 %v2996
    %v3625 = vunpack.c.h.b16 %v2996
    %v3626 = vunpack.c.l.b16 %v2997
    %v3627 = vunpack.c.h.b16 %v2997
    %v3628 = vunpack.c.l.b16 %v2998
    %v3629 = vunpack.c.h.b16 %v2998
    %v3630 = vunpack.c.l.b16 %v2999
    %v3631 = vunpack.c.h.b16 %v2999
    %v3632 = vunpack.c.l.b16 %v3000
    %v3633 = vunpack.c.h.b16 %v3000
    %v3634 = vunpack.c.l.b16 %v3001
    %v3635 = vunpack.c.h.b16 %v3001
    %v3636 = vunpack.c.l.b16 %v3002
    %v3637 = vunpack.c.h.b16 %v3002
    %v3638 = vunpack.c.l.b16 %v3003
    %v3639 = vunpack.c.h.b16 %v3003
    %v3640 = vunpack.c.l.b16 %v3004
    %v3641 = vunpack.c.h.b16 %v3004
    %v3642 = vunpack.c.l.b16 %v3005
    %v3643 = vunpack.c.h.b16 %v3005
    %v3644 = vunpack.c.l.b16 %v3006
    %v3645 = vunpack.c.h.b16 %v3006
    %v3646 = vunpack.c.l.b16 %v3007
    %v3647 = vunpack.c.h.b16 %v3007
    %v3648 = vunpack.c.l.b16 %v3008
    %v3649 = vunpack.c.h.b16 %v3008
    %v3650 = vunpack.c.l.b16 %v3009
    %v3651 = vunpack.c.h.b16 %v3009
    %v3652 = vunpack.c.l.b16 %v3010
    %v3653 = vunpack.c.h.b16 %v3010
    %v3654 = vunpack.c.l.b16 %v3011
    %v3655 = vunpack.c.h.b16 %v3011
    %v3656 = vunpack.c.l.b16 %v3012
    %v3657 = vunpack.c.h.b16 %v3012
    %v3658 = vunpack.c.l.b16 %v3013
    %v3659 = vunpack.c.h.b16 %v3013
    %v3660 = vunpack.c.l.b16 %v3014
    %v3661 = vunpack.c.h.b16 %v3014
    %v3662 = vunpack.c.l.b16 %v3015
    %v3663 = vunpack.c.h.b16 %v3015
    %v3664 = vunpack.c.l.b16 %v3016
    %v3665 = vunpack.c.h.b16 %v3016
    %v3666 = vunpack.c.l.b16 %v3017
    %v3667 = vunpack.c.h.b16 %v3017
    %v3668 = vunpack.c.l.b16 %v3018
    %v3669 = vunpack.c.h.b16 %v3018
    %v3670 = vunpack.c.l.b16 %v3019
    %v3671 = vunpack.c.h.b16 %v3019
    %v3672 = vunpack.c.l.b16 %v3020
    %v3673 = vunpack.c.h.b16 %v3020
    %v3674 = vunpack.c.l.b16 %v3021
    %v3675 = vunpack.c.h.b16 %v3021
    %v3676 = vunpack.c.l.b16 %v3022
    %v3677 = vunpack.c.h.b16 %v3022
    %v3678 = vunpack.c.l.b16 %v3023
    %v3679 = vunpack.c.h.b16 %v3023
    %v3680 = vunpack.c.l.b16 %v3024
    %v3681 = vunpack.c.h.b16 %v3024
    %v3682 = vunpack.c.l.b16 %v3025
    %v3683 = vunpack.c.h.b16 %v3025
    %v3684 = vunpack.c.l.b16 %v3026
    %v3685 = vunpack.c.h.b16 %v3026
    %v3686 = vunpack.c.l.b16 %v3027
    %v3687 = vunpack.c.h.b16 %v3027
    %v3688 = vunpack.c.l.b16 %v3028
    %v3689 = vunpack.c.h.b16 %v3028
    %v3690 = vunpack.c.l.b16 %v3029
    %v3691 = vunpack.c.h.b16 %v3029
    %v3692 = vunpack.c.l.b16 %v3030
    %v3693 = vunpack.c.h.b16 %v3030
    %v3694 = vunpack.c.l.b16 %v3031
    %v3695 = vunpack.c.h.b16 %v3031
    %v3696 = vunpack.c.l.b16 %v3032
    %v3697 = vunpack.c.h.b16 %v3032
    %v3698 = vunpack.c.l.b16 %v3033
    %v3699 = vunpack.c.h.b16 %v3033
    %v3700 = vunpack.c.l.b16 %v3034
    %v3701 = vunpack.c.h.b16 %v3034
    %v3702 = vunpack.c.l.b16 %v3035
    %v3703 = vunpack.c.h.b16 %v3035
    %v3704 = vunpack.c.l.b16 %v3036
    %v3705 = vunpack.c.h.b16 %v3036
    %v3706 = vunpack.c.l.b16 %v3037
    %v3707 = vunpack.c.h.b16 %v3037
    %v3708 = vunpack.c.l.b16 %v3038
    %v3709 = vunpack.c.h.b16 %v3038
    %v3710 = vunpack.c.l.b16 %v3039
    %v3711 = vunpack.c.h.b16 %v3039
    %v3712 = vunpack.c.l.b16 %v3040
    %v3713 = vunpack.c.h.b16 %v3040
    %v3714 = vunpack.c.l.b16 %v3041
    %v3715 = vunpack.c.h.b16 %v3041
    %v3716 = vunpack.c.l.b16 %v3042
    %v3717 = vunpack.c.h.b16 %v3042
    %v3718 = vunpack.c.l.b16 %v3043
    %v3719 = vunpack.c.h.b16 %v3043
    %v3720 = vunpack.c.l.b16 %v3044
    %v3721 = vunpack.c.h.b16 %v3044
    %v3722 = vunpack.c.l.b16 %v3045
    %v3723 = vunpack.c.h.b16 %v3045
    %v3724 = vunpack.c.l.b16 %v3046
    %v3725 = vunpack.c.h.b16 %v3046
    %v3726 = vunpack.c.l.b16 %v3047
    %v3727 = vunpack.c.h.b16 %v3047
    %v3728 = vunpack.c.l.b16 %v3048
    %v3729 = vunpack.c.h.b16 %v3048
    %v3730 = vunpack.c.l.b16 %v3049
    %v3731 = vunpack.c.h.b16 %v3049
    %v3732 = vunpack.c.l.b16 %v3050
    %v3733 = vunpack.c.h.b16 %v3050
    %v3734 = vunpack.c.l.b16 %v3051
    %v3735 = vunpack.c.h.b16 %v3051
    %v3736 = vunpack.c.l.b16 %v3052
    %v3737 = vunpack.c.h.b16 %v3052
    %v3738 = vunpack.c.l.b16 %v3053
    %v3739 = vunpack.c.h.b16 %v3053
    %v3740 = vunpack.c.l.b16 %v3054
    %v3741 = vunpack.c.h.b16 %v3054
    %v3742 = vunpack.c.l.b16 %v3055
    %v3743 = vunpack.c.h.b16 %v3055
    %v3744 = vunpack.c.l.b16 %v3056
    %v3745 = vunpack.c.h.b16 %v3056
    %v3746 = vunpack.c.l.b16 %v3057
    %v3747 = vunpack.c.h.b16 %v3057
    %v3748 = vunpack.c.l.b16 %v3058
    %v3749 = vunpack.c.h.b16 %v3058
    %v3750 = vunpack.c.l.b16 %v3059
    %v3751 = vunpack.c.h.b16 %v3059
    %v3752 = vunpack.c.l.b16 %v3060
    %v3753 = vunpack.c.h.b16 %v3060
    %v3754 = vunpack.c.l.b16 %v3061
    %v3755 = vunpack.c.h.b16 %v3061
    %v3756 = vunpack.c.l.b16 %v3062
    %v3757 = vunpack.c.h.b16 %v3062
    %v3758 = vunpack.c.l.b16 %v3063
    %v3759 = vunpack.c.h.b16 %v3063
    %v3760 = vunpack.c.l.b16 %v3064
    %v3761 = vunpack.c.h.b16 %v3064
    %v3762 = vunpack.c.l.b16 %v3065
    %v3763 = vunpack.c.h.b16 %v3065
    %v3764 = vunpack.c.l.b16 %v3066
    %v3765 = vunpack.c.h.b16 %v3066
    %v3766 = vunpack.c.l.b16 %v3067
    %v3767 = vunpack.c.h.b16 %v3067
    %v3768 = vunpack.c.l.b16 %v3068
    %v3769 = vunpack.c.h.b16 %v3068
    %v3770 = vunpack.c.l.b16 %v3069
    %v3771 = vunpack.c.h.b16 %v3069
    %v3772 = vunpack.c.l.b16 %v3070
    %v3773 = vunpack.c.h.b16 %v3070
    %v3774 = vunpack.c.l.b16 %v3071
    %v3775 = vunpack.c.h.b16 %v3071
    %v3776 = vunpack.c.l.b16 %v3072
    %v3777 = vunpack.c.h.b16 %v3072
    %v3778 = vunpack.c.l.b16 %v3073
    %v3779 = vunpack.c.h.b16 %v3073
    %v3780 = vunpack.c.l.b16 %v3074
    %v3781 = vunpack.c.h.b16 %v3074
    %v3782 = vunpack.c.l.b16 %v3075
    %v3783 = vunpack.c.h.b16 %v3075
    %v3784 = vunpack.c.l.b16 %v3076
    %v3785 = vunpack.c.h.b16 %v3076
    %v3786 = vunpack.c.l.b16 %v3077
    %v3787 = vunpack.c.h.b16 %v3077
    %v3788 = vunpack.c.l.b16 %v3078
    %v3789 = vunpack.c.h.b16 %v3078
    %v3790 = vunpack.c.l.b16 %v3079
    %v3791 = vunpack.c.h.b16 %v3079
    %v3792 = vunpack.c.l.b16 %v3080
    %v3793 = vunpack.c.h.b16 %v3080
    %v3794 = vunpack.c.l.b16 %v3081
    %v3795 = vunpack.c.h.b16 %v3081
    %v3796 = vunpack.c.l.b16 %v3082
    %v3797 = vunpack.c.h.b16 %v3082
    %v3798 = vunpack.c.l.b16 %v3083
    %v3799 = vunpack.c.h.b16 %v3083
    %v3800 = vunpack.c.l.b16 %v3084
    %v3801 = vunpack.c.h.b16 %v3084
    %v3802 = vunpack.c.l.b16 %v3085
    %v3803 = vunpack.c.h.b16 %v3085
    %v3804 = vunpack.c.l.b16 %v3086
    %v3805 = vunpack.c.h.b16 %v3086
    %v3806 = vunpack.c.l.b16 %v3087
    %v3807 = vunpack.c.h.b16 %v3087
    %v3808 = vunpack.c.l.b16 %v3088
    %v3809 = vunpack.c.h.b16 %v3088
    %v3810 = vunpack.c.l.b16 %v3089
    %v3811 = vunpack.c.h.b16 %v3089
    %v3812 = vunpack.c.l.b16 %v3090
    %v3813 = vunpack.c.h.b16 %v3090
    %v3814 = vunpack.c.l.b16 %v3091
    %v3815 = vunpack.c.h.b16 %v3091
    %v3816 = vunpack.c.l.b16 %v3092
    %v3817 = vunpack.c.h.b16 %v3092
    %v3818 = vunpack.c.l.b16 %v3093
    %v3819 = vunpack.c.h.b16 %v3093
    %v3820 = vunpack.c.l.b16 %v3094
    %v3821 = vunpack.c.h.b16 %v3094
    %v3822 = vunpack.c.l.b16 %v3095
    %v3823 = vunpack.c.h.b16 %v3095
    %v3824 = vunpack.c.l.b16 %v3096
    %v3825 = vunpack.c.h.b16 %v3096
    %v3826 = vunpack.c.l.b16 %v3097
    %v3827 = vunpack.c.h.b16 %v3097
    %v3828 = vunpack.c.l.b16 %v3098
    %v3829 = vunpack.c.h.b16 %v3098
    %v3830 = vunpack.c.l.b16 %v3099
    %v3831 = vunpack.c.h.b16 %v3099
    %v3832 = vunpack.c.l.b16 %v3100
    %v3833 = vunpack.c.h.b16 %v3100
    %v3834 = vunpack.c.l.b16 %v3101
    %v3835 = vunpack.c.h.b16 %v3101
    %v3836 = vunpack.c.l.b16 %v3102
    %v3837 = vunpack.c.h.b16 %v3102
    %v3838 = vunpack.c.l.b16 %v3103
    %v3839 = vunpack.c.h.b16 %v3103
    %v3840 = vunpack.c.l.b16 %v3104
    %v3841 = vunpack.c.h.b16 %v3104
    %v3842 = vunpack.c.l.b16 %v3105
    %v3843 = vunpack.c.h.b16 %v3105
    %v3844 = vunpack.c.l.b16 %v3106
    %v3845 = vunpack.c.h.b16 %v3106
    %v3846 = vunpack.c.l.b16 %v3107
    %v3847 = vunpack.c.h.b16 %v3107
    %v3848 = vunpack.c.l.b16 %v3108
    %v3849 = vunpack.c.h.b16 %v3108
    %v3850 = vunpack.c.l.b16 %v3109
    %v3851 = vunpack.c.h.b16 %v3109
    %v3852 = vunpack.c.l.b16 %v3110
    %v3853 = vunpack.c.h.b16 %v3110
    %v3854 = vunpack.c.l.b16 %v3111
    %v3855 = vunpack.c.h.b16 %v3111
    %v3856 = vunpack.c.l.b16 %v3112
    %v3857 = vunpack.c.h.b16 %v3112
    %v3858 = vunpack.c.l.b16 %v3113
    %v3859 = vunpack.c.h.b16 %v3113
    %v3860 = vunpack.c.l.b16 %v3114
    %v3861 = vunpack.c.h.b16 %v3114
    %v3862 = vunpack.c.l.b16 %v3115
    %v3863 = vunpack.c.h.b16 %v3115
    %v3864 = vunpack.c.l.b16 %v3116
    %v3865 = vunpack.c.h.b16 %v3116
    %v3866 = vunpack.c.l.b16 %v3117
    %v3867 = vunpack.c.h.b16 %v3117
    %v3868 = vunpack.c.l.b16 %v3118
    %v3869 = vunpack.c.h.b16 %v3118
    %v3870 = vunpack.c.l.b16 %v3119
    %v3871 = vunpack.c.h.b16 %v3119
    %v3872 = vunpack.c.l.b16 %v3120
    %v3873 = vunpack.c.h.b16 %v3120
    %v3874 = vunpack.c.l.b16 %v3121
    %v3875 = vunpack.c.h.b16 %v3121
    %v3876 = vunpack.c.l.b16 %v3122
    %v3877 = vunpack.c.h.b16 %v3122
    %v3878 = vunpack.c.l.b16 %v3123
    %v3879 = vunpack.c.h.b16 %v3123
    %v3880 = vunpack.c.l.b16 %v3124
    %v3881 = vunpack.c.h.b16 %v3124
    %v3882 = vunpack.c.l.b16 %v3125
    %v3883 = vunpack.c.h.b16 %v3125
    %v3884 = vunpack.c.l.b16 %v3126
    %v3885 = vunpack.c.h.b16 %v3126
    %v3886 = vunpack.c.l.b16 %v3127
    %v3887 = vunpack.c.h.b16 %v3127
    %v3888 = vunpack.c.l.b16 %v3128
    %v3889 = vunpack.c.h.b16 %v3128
    %v3890 = vunpack.c.l.b16 %v3129
    %v3891 = vunpack.c.h.b16 %v3129
    %v3892 = vunpack.c.l.b16 %v3130
    %v3893 = vunpack.c.h.b16 %v3130
    %v3894 = vunpack.c.l.b16 %v3131
    %v3895 = vunpack.c.h.b16 %v3131
    %v3896 = vunpack.c.l.b16 %v3132
    %v3897 = vunpack.c.h.b16 %v3132
    %v3898 = vunpack.c.l.b16 %v3133
    %v3899 = vunpack.c.h.b16 %v3133
    %v3900 = vunpack.c.l.b16 %v3134
    %v3901 = vunpack.c.h.b16 %v3134
    %v3902 = vunpack.c.l.b16 %v3135
    %v3903 = vunpack.c.h.b16 %v3135
    %v3904 = vpack.c.b16 %v3396, %v3392
    %v3905 = vpack.c.b16 %v3397, %v3393
    %v3906 = vpack.c.b16 %v3398, %v3394
    %v3907 = vpack.c.b16 %v3399, %v3395
    %v3908 = vpack.c.b16 %v3404, %v3400
    %v3909 = vpack.c.b16 %v3405, %v3401
    %v3910 = vpack.c.b16 %v3406, %v3402
    %v3911 = vpack.c.b16 %v3407, %v3403
    %v3912 = vpack.c.b16 %v3412, %v3408
    %v3913 = vpack.c.b16 %v3413, %v3409
    %v3914 = vpack.c.b16 %v3414, %v3410
    %v3915 = vpack.c.b16 %v3415, %v3411
    %v3916 = vpack.c.b16 %v3420, %v3416
    %v3917 = vpack.c.b16 %v3421, %v3417
    %v3918 = vpack.c.b16 %v3422, %v3418
    %v3919 = vpack.c.b16 %v3423, %v3419
    %v3920 = vpack.c.b16 %v3428, %v3424
    %v3921 = vpack.c.b16 %v3429, %v3425
    %v3922 = vpack.c.b16 %v3430, %v3426
    %v3923 = vpack.c.b16 %v3431, %v3427
    %v3924 = vpack.c.b16 %v3436, %v3432
    %v3925 = vpack.c.b16 %v3437, %v3433
    %v3926 = vpack.c.b16 %v3438, %v3434
    %v3927 = vpack.c.b16 %v3439, %v3435
    %v3928 = vpack.c.b16 %v3444, %v3440
    %v3929 = vpack.c.b16 %v3445, %v3441
    %v3930 = vpack.c.b16 %v3446, %v3442
    %v3931 = vpack.c.b16 %v3447, %v3443
    %v3932 = vpack.c.b16 %v3452, %v3448
    %v3933 = vpack.c.b16 %v3453, %v3449
    %v3934 = vpack.c.b16 %v3454, %v3450
    %v3935 = vpack.c.b16 %v3455, %v3451
    %v3936 = vpack.c.b16 %v3460, %v3456
    %v3937 = vpack.c.b16 %v3461, %v3457
    %v3938 = vpack.c.b16 %v3462, %v3458
    %v3939 = vpack.c.b16 %v3463, %v3459
    %v3940 = vpack.c.b16 %v3468, %v3464
    %v3941 = vpack.c.b16 %v3469, %v3465
    %v3942 = vpack.c.b16 %v3470, %v3466
    %v3943 = vpack.c.b16 %v3471, %v3467
    %v3944 = vpack.c.b16 %v3476, %v3472
    %v3945 = vpack.c.b16 %v3477, %v3473
    %v3946 = vpack.c.b16 %v3478, %v3474
    %v3947 = vpack.c.b16 %v3479, %v3475
    %v3948 = vpack.c.b16 %v3484, %v3480
    %v3949 = vpack.c.b16 %v3485, %v3481
    %v3950 = vpack.c.b16 %v3486, %v3482
    %v3951 = vpack.c.b16 %v3487, %v3483
    %v3952 = vpack.c.b16 %v3492, %v3488
    %v3953 = vpack.c.b16 %v3493, %v3489
    %v3954 = vpack.c.b16 %v3494, %v3490
    %v3955 = vpack.c.b16 %v3495, %v3491
    %v3956 = vpack.c.b16 %v3500, %v3496
    %v3957 = vpack.c.b16 %v3501, %v3497
    %v3958 = vpack.c.b16 %v3502, %v3498
    %v3959 = vpack.c.b16 %v3503, %v3499
    %v3960 = vpack.c.b16 %v3508, %v3504
    %v3961 = vpack.c.b16 %v3509, %v3505
    %v3962 = vpack.c.b16 %v3510, %v3506
    %v3963 = vpack.c.b16 %v3511, %v3507
    %v3964 = vpack.c.b16 %v3516, %v3512
    %v3965 = vpack.c.b16 %v3517, %v3513
    %v3966 = vpack.c.b16 %v3518, %v3514
    %v3967 = vpack.c.b16 %v3519, %v3515
    %v3968 = vpack.c.b16 %v3524, %v3520
    %v3969 = vpack.c.b16 %v3525, %v3521
    %v3970 = vpack.c.b16 %v3526, %v3522
    %v3971 = vpack.c.b16 %v3527, %v3523
    %v3972 = vpack.c.b16 %v3532, %v3528
    %v3973 = vpack.c.b16 %v3533, %v3529
    %v3974 = vpack.c.b16 %v3534, %v3530
    %v3975 = vpack.c.b16 %v3535, %v3531
    %v3976 = vpack.c.b16 %v3540, %v3536
    %v3977 = vpack.c.b16 %v3541, %v3537
    %v3978 = vpack.c.b16 %v3542, %v3538
    %v3979 = vpack.c.b16 %v3543, %v3539
    %v3980 = vpack.c.b16 %v3548, %v3544
    %v3981 = vpack.c.b16 %v3549, %v3545
    %v3982 = vpack.c.b16 %v3550, %v3546
    %v3983 = vpack.c.b16 %v3551, %v3547
    %v3984 = vpack.c.b16 %v3556, %v3552
    %v3985 = vpack.c.b16 %v3557, %v3553
    %v3986 = vpack.c.b16 %v3558, %v3554
    %v3987 = vpack.c.b16 %v3559, %v3555
    %v3988 = vpack.c.b16 %v3564, %v3560
    %v3989 = vpack.c.b16 %v3565, %v3561
    %v3990 = vpack.c.b16 %v3566, %v3562
    %v3991 = vpack.c.b16 %v3567, %v3563
    %v3992 = vpack.c.b16 %v3572, %v3568
    %v3993 = vpack.c.b16 %v3573, %v3569
    %v3994 = vpack.c.b16 %v3574, %v3570
    %v3995 = vpack.c.b16 %v3575, %v3571
    %v3996 = vpack.c.b16 %v3580, %v3576
    %v3997 = vpack.c.b16 %v3581, %v3577
    %v3998 = vpack.c.b16 %v3582, %v3578
    %v3999 = vpack.c.b16 %v3583, %v3579
    %v4000 = vpack.c.b16 %v3588, %v3584
    %v4001 = vpack.c.b16 %v3589, %v3585
    %v4002 = vpack.c.b16 %v3590, %v3586
    %v4003 = vpack.c.b16 %v3591, %v3587
    %v4004 = vpack.c.b16 %v3596, %v3592
    %v4005 = vpack.c.b16 %v3597, %v3593
    %v4006 = vpack.c.b16 %v3598, %v3594
    %v4007 = vpack.c.b16 %v3599, %v3595
    %v4008 = vpack.c.b16 %v3604, %v3600
    %v4009 = vpack.c.b16 %v3605, %v3601
    %v4010 = vpack.c.b16 %v3606, %v3602
    %v4011 = vpack.c.b16 %v3607, %v3603
    %v4012 = vpack.c.b16 %v3612, %v3608
    %v4013 = vpack.c.b16 %v3613, %v3609
    %v4014 = vpack.c.b16 %v3614, %v3610
    %v4015 = vpack.c.b16 %v3615, %v3611
    %v4016 = vpack.c.b16 %v3620, %v3616
    %v4017 = vpack.c.b16 %v3621, %v3617
    %v4018 = vpack.c.b16 %v3622, %v3618
    %v4019 = vpack.c.b16 %v3623, %v3619
    %v4020 = vpack.c.b16 %v3628, %v3624
    %v4021 = vpack.c.b16 %v3629, %v3625
    %v4022 = vpack.c.b16 %v3630, %v3626
    %v4023 = vpack.c.b16 %v3631, %v3627
    %v4024 = vpack.c.b16 %v3636, %v3632
    %v4025 = vpack.c.b16 %v3637, %v3633
    %v4026 = vpack.c.b16 %v3638, %v3634
    %v4027 = vpack.c.b16 %v3639, %v3635
    %v4028 = vpack.c.b16 %v3644, %v3640
    %v4029 = vpack.c.b16 %v3645, %v3641
    %v4030 = vpack.c.b16 %v3646, %v3642
    %v4031 = vpack.c.b16 %v3647, %v3643
    %v4032 = vpack.c.b16 %v3652, %v3648
    %v4033 = vpack.c.b16 %v3653, %v3649
    %v4034 = vpack.c.b16 %v3654, %v3650
    %v4035 = vpack.c.b16 %v3655, %v3651
    %v4036 = vpack.c.b16 %v3660, %v3656
    %v4037 = vpack.c.b16 %v3661, %v3657
    %v4038 = vpack.c.b16 %v3662, %v3658
    %v4039 = vpack.c.b16 %v3663, %v3659
    %v4040 = vpack.c.b16 %v3668, %v3664
    %v4041 = vpack.c.b16 %v3669, %v3665
    %v4042 = vpack.c.b16 %v3670, %v3666
    %v4043 = vpack.c.b16 %v3671, %v3667
    %v4044 = vpack.c.b16 %v3676, %v3672
    %v4045 = vpack.c.b16 %v3677, %v3673
    %v4046 = vpack.c.b16 %v3678, %v3674
    %v4047 = vpack.c.b16 %v3679, %v3675
    %v4048 = vpack.c.b16 %v3684, %v3680
    %v4049 = vpack.c.b16 %v3685, %v3681
    %v4050 = vpack.c.b16 %v3686, %v3682
    %v4051 = vpack.c.b16 %v3687, %v3683
    %v4052 = vpack.c.b16 %v3692, %v3688
    %v4053 = vpack.c.b16 %v3693, %v3689
    %v4054 = vpack.c.b16 %v3694, %v3690
    %v4055 = vpack.c.b16 %v3695, %v3691
    %v4056 = vpack.c.b16 %v3700, %v3696
    %v4057 = vpack.c.b16 %v3701, %v3697
    %v4058 = vpack.c.b16 %v3702, %v3698
    %v4059 = vpack.c.b16 %v3703, %v3699
    %v4060 = vpack.c.b16 %v3708, %v3704
    %v4061 = vpack.c.b16 %v3709, %v3705
    %v4062 = vpack.c.b16 %v3710, %v3706
    %v4063 = vpack.c.b16 %v3711, %v3707
    %v4064 = vpack.c.b16 %v3716, %v3712
    %v4065 = vpack.c.b16 %v3717, %v3713
    %v4066 = vpack.c.b16 %v3718, %v3714
    %v4067 = vpack.c.b16 %v3719, %v3715
    %v4068 = vpack.c.b16 %v3724, %v3720
    %v4069 = vpack.c.b16 %v3725, %v3721
    %v4070 = vpack.c.b16 %v3726, %v3722
    %v4071 = vpack.c.b16 %v3727, %v3723
    %v4072 = vpack.c.b16 %v3732, %v3728
    %v4073 = vpack.c.b16 %v3733, %v3729
    %v4074 = vpack.c.b16 %v3734, %v3730
    %v4075 = vpack.c.b16 %v3735, %v3731
    %v4076 = vpack.c.b16 %v3740, %v3736
    %v4077 = vpack.c.b16 %v3741, %v3737
    %v4078 = vpack.c.b16 %v3742, %v3738
    %v4079 = vpack.c.b16 %v3743, %v3739
    %v4080 = vpack.c.b16 %v3748, %v3744
    %v4081 = vpack.c.b16 %v3749, %v3745
    %v4082 = vpack.c.b16 %v3750, %v3746
    %v4083 = vpack.c.b16 %v3751, %v3747
    %v4084 = vpack.c.b16 %v3756, %v3752
    %v4085 = vpack.c.b16 %v3757, %v3753
    %v4086 = vpack.c.b16 %v3758, %v3754
    %v4087 = vpack.c.b16 %v3759, %v3755
    %v4088 = vpack.c.b16 %v3764, %v3760
    %v4089 = vpack.c.b16 %v3765, %v3761
    %v4090 = vpack.c.b16 %v3766, %v3762
    %v4091 = vpack.c.b16 %v3767, %v3763
    %v4092 = vpack.c.b16 %v3772, %v3768
    %v4093 = vpack.c.b16 %v3773, %v3769
    %v4094 = vpack.c.b16 %v3774, %v3770
    %v4095 = vpack.c.b16 %v3775, %v3771
    %v4096 = vpack.c.b16 %v3780, %v3776
    %v4097 = vpack.c.b16 %v3781, %v3777
    %v4098 = vpack.c.b16 %v3782, %v3778
    %v4099 = vpack.c.b16 %v3783, %v3779
    %v4100 = vpack.c.b16 %v3788, %v3784
    %v4101 = vpack.c.b16 %v3789, %v3785
    %v4102 = vpack.c.b16 %v3790, %v3786
    %v4103 = vpack.c.b16 %v3791, %v3787
    %v4104 = vpack.c.b16 %v3796, %v3792
    %v4105 = vpack.c.b16 %v3797, %v3793
    %v4106 = vpack.c.b16 %v3798, %v3794
    %v4107 = vpack.c.b16 %v3799, %v3795
    %v4108 = vpack.c.b16 %v3804, %v3800
    %v4109 = vpack.c.b16 %v3805, %v3801
    %v4110 = vpack.c.b16 %v3806, %v3802
    %v4111 = vpack.c.b16 %v3807, %v3803
    %v4112 = vpack.c.b16 %v3812, %v3808
    %v4113 = vpack.c.b16 %v3813, %v3809
    %v4114 = vpack.c.b16 %v3814, %v3810
    %v4115 = vpack.c.b16 %v3815, %v3811
    %v4116 = vpack.c.b16 %v3820, %v3816
    %v4117 = vpack.c.b16 %v3821, %v3817
    %v4118 = vpack.c.b16 %v3822, %v3818
    %v4119 = vpack.c.b16 %v3823, %v3819
    %v4120 = vpack.c.b16 %v3828, %v3824
    %v4121 = vpack.c.b16 %v3829, %v3825
    %v4122 = vpack.c.b16 %v3830, %v3826
    %v4123 = vpack.c.b16 %v3831, %v3827
    %v4124 = vpack.c.b16 %v3836, %v3832
    %v4125 = vpack.c.b16 %v3837, %v3833
    %v4126 = vpack.c.b16 %v3838, %v3834
    %v4127 = vpack.c.b16 %v3839, %v3835
    %v4128 = vpack.c.b16 %v3844, %v3840
    %v4129 = vpack.c.b16 %v3845, %v3841
    %v4130 = vpack.c.b16 %v3846, %v3842
    %v4131 = vpack.c.b16 %v3847, %v3843
    %v4132 = vpack.c.b16 %v3852, %v3848
    %v4133 = vpack.c.b16 %v3853, %v3849
    %v4134 = vpack.c.b16 %v3854, %v3850
    %v4135 = vpack.c.b16 %v3855, %v3851
    %v4136 = vpack.c.b16 %v3860, %v3856
    %v4137 = vpack.c.b16 %v3861, %v3857
    %v4138 = vpack.c.b16 %v3862, %v3858
    %v4139 = vpack.c.b16 %v3863, %v3859
    %v4140 = vpack.c.b16 %v3868, %v3864
    %v4141 = vpack.c.b16 %v3869, %v3865
    %v4142 = vpack.c.b16 %v3870, %v3866
    %v4143 = vpack.c.b16 %v3871, %v3867
    %v4144 = vpack.c.b16 %v3876, %v3872
    %v4145 = vpack.c.b16 %v3877, %v3873
    %v4146 = vpack.c.b16 %v3878, %v3874
    %v4147 = vpack.c.b16 %v3879, %v3875
    %v4148 = vpack.c.b16 %v3884, %v3880
    %v4149 = vpack.c.b16 %v3885, %v3881
    %v4150 = vpack.c.b16 %v3886, %v3882
    %v4151 = vpack.c.b16 %v3887, %v3883
    %v4152 = vpack.c.b16 %v3892, %v3888
    %v4153 = vpack.c.b16 %v3893, %v3889
    %v4154 = vpack.c.b16 %v3894, %v3890
    %v4155 = vpack.c.b16 %v3895, %v3891
    %v4156 = vpack.c.b16 %v3900, %v3896
    %v4157 = vpack.c.b16 %v3901, %v3897
    %v4158 = vpack.c.b16 %v3902, %v3898
    %v4159 = vpack.c.b16 %v3903, %v3899
    %4416 = vmatprep.subr.bf16.mxu0 %v3905
    %4417 = vmatpush1.bf16.msra.mxu0 %v3904
    %4418 = vmatprep.subr.bf16.mxu0 %v3909
    %4419 = vmatpush1.bf16.msra.mxu0 %v3908
    %4420 = vmatprep.subr.bf16.mxu0 %v3913
    %4421 = vmatpush1.bf16.msra.mxu0 %v3912
    %4422 = vmatprep.subr.bf16.mxu0 %v3917
    %4423 = vmatpush1.bf16.msra.mxu0 %v3916
    %4424 = vmatprep.subr.bf16.mxu0 %v3921
    %4425 = vmatpush1.bf16.msra.mxu0 %v3920
    %4426 = vmatprep.subr.bf16.mxu0 %v3925
    %4427 = vmatpush1.bf16.msra.mxu0 %v3924
    %4428 = vmatprep.subr.bf16.mxu0 %v3929
    %4429 = vmatpush1.bf16.msra.mxu0 %v3928
    %4430 = vmatprep.subr.bf16.mxu0 %v3933
    %4431 = vmatpush1.bf16.msra.mxu0 %v3932
    %4432 = vmatprep.subr.bf16.mxu0 %v3937
    %4433 = vmatpush1.bf16.msra.mxu0 %v3936
    %4434 = vmatprep.subr.bf16.mxu0 %v3941
    %4435 = vmatpush1.bf16.msra.mxu0 %v3940
    %4436 = vmatprep.subr.bf16.mxu0 %v3945
    %4437 = vmatpush1.bf16.msra.mxu0 %v3944
    %4438 = vmatprep.subr.bf16.mxu0 %v3949
    %4439 = vmatpush1.bf16.msra.mxu0 %v3948
    %4440 = vmatprep.subr.bf16.mxu0 %v3953
    %4441 = vmatpush1.bf16.msra.mxu0 %v3952
    %4442 = vmatprep.subr.bf16.mxu0 %v3957
    %4443 = vmatpush1.bf16.msra.mxu0 %v3956
    %4444 = vmatprep.subr.bf16.mxu0 %v3961
    %4445 = vmatpush1.bf16.msra.mxu0 %v3960
    %4446 = vmatprep.subr.bf16.mxu0 %v3965
    %4447 = vmatpush1.bf16.msra.mxu0 %v3964
    %4448 = vmatprep.mubr.bf16.mxu0 %v569
    %4449 = vmatmul.mubr.bf16.gmra.mrb[0].mxu0 %v568
    %v4450 = vpop.f32.mrb[0].mxu0
    %v4451 = vadd.f32 0.0, %v4450
    %v4452 = vpop.f32.mrb[0].mxu0
    %v4453 = vadd.f32 0.0, %v4452
    %v4454 = vpop.f32.mrb[0].mxu0
    %v4455 = vadd.f32 0.0, %v4454
    %v4456 = vpop.f32.mrb[0].mxu0
    %v4457 = vadd.f32 0.0, %v4456
    %4458 = vmatprep.mubr.bf16.mxu0 %v577
    %4459 = vmatmul.mubr.bf16.gmra.mrb[0].mxu0 %v576
    %v4460 = vpop.f32.mrb[0].mxu0
    %v4461 = vadd.f32 0.0, %v4460
    %v4462 = vpop.f32.mrb[0].mxu0
    %v4463 = vadd.f32 0.0, %v4462
    %v4464 = vpop.f32.mrb[0].mxu0
    %v4465 = vadd.f32 0.0, %v4464
    %v4466 = vpop.f32.mrb[0].mxu0
    %v4467 = vadd.f32 0.0, %v4466
    %4468 = vmatprep.mubr.bf16.mxu0 %v585
    %4469 = vmatmul.mubr.bf16.gmra.mrb[0].mxu0 %v584
    %v4470 = vpop.f32.mrb[0].mxu0
    %v4471 = vadd.f32 0.0, %v4470
    %v4472 = vpop.f32.mrb[0].mxu0
    %v4473 = vadd.f32 0.0, %v4472
    %v4474 = vpop.f32.mrb[0].mxu0
    %v4475 = vadd.f32 0.0, %v4474
    %v4476 = vpop.f32.mrb[0].mxu0
    %v4477 = vadd.f32 0.0, %v4476
    %4478 = vmatprep.mubr.bf16.mxu0 %v593
    %4479 = vmatmul.mubr.bf16.gmra.mrb[0].mxu0 %v592
    %v4480 = vpop.f32.mrb[0].mxu0
    %v4481 = vadd.f32 0.0, %v4480
    %v4482 = vpop.f32.mrb[0].mxu0
    %v4483 = vadd.f32 0.0, %v4482
    %v4484 = vpop.f32.mrb[0].mxu0
    %v4485 = vadd.f32 0.0, %v4484
    %v4486 = vpop.f32.mrb[0].mxu0
    %v4487 = vadd.f32 0.0, %v4486
    %4488 = vmatprep.mubr.bf16.mxu0 %v601
    %4489 = vmatmul.mubr.bf16.gmra.mrb[0].mxu0 %v600
    %v4490 = vpop.f32.mrb[0].mxu0
    %v4491 = vadd.f32 0.0, %v4490
    %v4492 = vpop.f32.mrb[0].mxu0
    %v4493 = vadd.f32 0.0, %v4492
    %v4494 = vpop.f32.mrb[0].mxu0
    %v4495 = vadd.f32 0.0, %v4494
    %v4496 = vpop.f32.mrb[0].mxu0
    %v4497 = vadd.f32 0.0, %v4496
    %4498 = vmatprep.mubr.bf16.mxu0 %v609
    %4499 = vmatmul.mubr.bf16.gmra.mrb[0].mxu0 %v608
    %v4500 = vpop.f32.mrb[0].mxu0
    %v4501 = vadd.f32 0.0, %v4500
    %v4502 = vpop.f32.mrb[0].mxu0
    %v4503 = vadd.f32 0.0, %v4502
    %v4504 = vpop.f32.mrb[0].mxu0
    %v4505 = vadd.f32 0.0, %v4504
    %v4506 = vpop.f32.mrb[0].mxu0
    %v4507 = vadd.f32 0.0, %v4506
    %4508 = vmatprep.mubr.bf16.mxu0 %v617
    %4509 = vmatmul.mubr.bf16.gmra.mrb[0].mxu0 %v616
    %v4510 = vpop.f32.mrb[0].mxu0
    %v4511 = vadd.f32 0.0, %v4510
    %v4512 = vpop.f32.mrb[0].mxu0
    %v4513 = vadd.f32 0.0, %v4512
    %v4514 = vpop.f32.mrb[0].mxu0
    %v4515 = vadd.f32 0.0, %v4514
    %v4516 = vpop.f32.mrb[0].mxu0
    %v4517 = vadd.f32 0.0, %v4516
    %4518 = vmatprep.mubr.bf16.mxu0 %v625
    %4519 = vmatmul.mubr.bf16.gmra.mrb[0].mxu0 %v624
    %v4520 = vpop.f32.mrb[0].mxu0
    %v4521 = vadd.f32 0.0, %v4520
    %v4522 = vpop.f32.mrb[0].mxu0
    %v4523 = vadd.f32 0.0, %v4522
    %v4524 = vpop.f32.mrb[0].mxu0
    %v4525 = vadd.f32 0.0, %v4524
    %v4526 = vpop.f32.mrb[0].mxu0
    %v4527 = vadd.f32 0.0, %v4526
    %4528 = vdwg.mxu0
    %4529 = vmatprep.subr.bf16.mxu0 %v3969
    %4530 = vmatpush1.bf16.msra.mxu0 %v3968
    %4531 = vmatprep.subr.bf16.mxu0 %v3973
    %4532 = vmatpush1.bf16.msra.mxu0 %v3972
    %4533 = vmatprep.subr.bf16.mxu0 %v3977
    %4534 = vmatpush1.bf16.msra.mxu0 %v3976
    %4535 = vmatprep.subr.bf16.mxu0 %v3981
    %4536 = vmatpush1.bf16.msra.mxu0 %v3980
    %4537 = vmatprep.subr.bf16.mxu0 %v3985
    %4538 = vmatpush1.bf16.msra.mxu0 %v3984
    %4539 = vmatprep.subr.bf16.mxu0 %v3989
    %4540 = vmatpush1.bf16.msra.mxu0 %v3988
    %4541 = vmatprep.subr.bf16.mxu0 %v3993
    %4542 = vmatpush1.bf16.msra.mxu0 %v3992
    %4543 = vmatprep.subr.bf16.mxu0 %v3997
    %4544 = vmatpush1.bf16.msra.mxu0 %v3996
    %4545 = vmatprep.subr.bf16.mxu0 %v4001
    %4546 = vmatpush1.bf16.msra.mxu0 %v4000
    %4547 = vmatprep.subr.bf16.mxu0 %v4005
    %4548 = vmatpush1.bf16.msra.mxu0 %v4004
    %4549 = vmatprep.subr.bf16.mxu0 %v4009
    %4550 = vmatpush1.bf16.msra.mxu0 %v4008
    %4551 = vmatprep.subr.bf16.mxu0 %v4013
    %4552 = vmatpush1.bf16.msra.mxu0 %v4012
    %4553 = vmatprep.subr.bf16.mxu0 %v4017
    %4554 = vmatpush1.bf16.msra.mxu0 %v4016
    %4555 = vmatprep.subr.bf16.mxu0 %v4021
    %4556 = vmatpush1.bf16.msra.mxu0 %v4020
    %4557 = vmatprep.subr.bf16.mxu0 %v4025
    %4558 = vmatpush1.bf16.msra.mxu0 %v4024
    %4559 = vmatprep.subr.bf16.mxu0 %v4029
    %4560 = vmatpush1.bf16.msra.mxu0 %v4028
    %4561 = vmatprep.mubr.bf16.mxu0 %v571
    %4562 = vmatmul.mubr.bf16.gmra.mrb[0].mxu0 %v570
    %v4563 = vpop.f32.mrb[0].mxu0
    %v4564 = vadd.f32 %v4451, %v4563
    %v4565 = vpop.f32.mrb[0].mxu0
    %v4566 = vadd.f32 %v4453, %v4565
    %v4567 = vpop.f32.mrb[0].mxu0
    %v4568 = vadd.f32 %v4455, %v4567
    %v4569 = vpop.f32.mrb[0].mxu0
    %v4570 = vadd.f32 %v4457, %v4569
    %4571 = vmatprep.mubr.bf16.mxu0 %v579
    %4572 = vmatmul.mubr.bf16.gmra.mrb[0].mxu0 %v578
    %v4573 = vpop.f32.mrb[0].mxu0
    %v4574 = vadd.f32 %v4461, %v4573
    %v4575 = vpop.f32.mrb[0].mxu0
    %v4576 = vadd.f32 %v4463, %v4575
    %v4577 = vpop.f32.mrb[0].mxu0
    %v4578 = vadd.f32 %v4465, %v4577
    %v4579 = vpop.f32.mrb[0].mxu0
    %v4580 = vadd.f32 %v4467, %v4579
    %4581 = vmatprep.mubr.bf16.mxu0 %v587
    %4582 = vmatmul.mubr.bf16.gmra.mrb[0].mxu0 %v586
    %v4583 = vpop.f32.mrb[0].mxu0
    %v4584 = vadd.f32 %v4471, %v4583
    %v4585 = vpop.f32.mrb[0].mxu0
    %v4586 = vadd.f32 %v4473, %v4585
    %v4587 = vpop.f32.mrb[0].mxu0
    %v4588 = vadd.f32 %v4475, %v4587
    %v4589 = vpop.f32.mrb[0].mxu0
    %v4590 = vadd.f32 %v4477, %v4589
    %4591 = vmatprep.mubr.bf16.mxu0 %v595
    %4592 = vmatmul.mubr.bf16.gmra.mrb[0].mxu0 %v594
    %v4593 = vpop.f32.mrb[0].mxu0
    %v4594 = vadd.f32 %v4481, %v4593
    %v4595 = vpop.f32.mrb[0].mxu0
    %v4596 = vadd.f32 %v4483, %v4595
    %v4597 = vpop.f32.mrb[0].mxu0
    %v4598 = vadd.f32 %v4485, %v4597
    %v4599 = vpop.f32.mrb[0].mxu0
    %v4600 = vadd.f32 %v4487, %v4599
    %4601 = vmatprep.mubr.bf16.mxu0 %v603
    %4602 = vmatmul.mubr.bf16.gmra.mrb[0].mxu0 %v602
    %v4603 = vpop.f32.mrb[0].mxu0
    %v4604 = vadd.f32 %v4491, %v4603
    %v4605 = vpop.f32.mrb[0].mxu0
    %v4606 = vadd.f32 %v4493, %v4605
    %v4607 = vpop.f32.mrb[0].mxu0
    %v4608 = vadd.f32 %v4495, %v4607
    %v4609 = vpop.f32.mrb[0].mxu0
    %v4610 = vadd.f32 %v4497, %v4609
    %4611 = vmatprep.mubr.bf16.mxu0 %v611
    %4612 = vmatmul.mubr.bf16.gmra.mrb[0].mxu0 %v610
    %v4613 = vpop.f32.mrb[0].mxu0
    %v4614 = vadd.f32 %v4501, %v4613
    %v4615 = vpop.f32.mrb[0].mxu0
    %v4616 = vadd.f32 %v4503, %v4615
    %v4617 = vpop.f32.mrb[0].mxu0
    %v4618 = vadd.f32 %v4505, %v4617
    %v4619 = vpop.f32.mrb[0].mxu0
    %v4620 = vadd.f32 %v4507, %v4619
    %4621 = vmatprep.mubr.bf16.mxu0 %v619
    %4622 = vmatmul.mubr.bf16.gmra.mrb[0].mxu0 %v618
    %v4623 = vpop.f32.mrb[0].mxu0
    %v4624 = vadd.f32 %v4511, %v4623
    %v4625 = vpop.f32.mrb[0].mxu0
    %v4626 = vadd.f32 %v4513, %v4625
    %v4627 = vpop.f32.mrb[0].mxu0
    %v4628 = vadd.f32 %v4515, %v4627
    %v4629 = vpop.f32.mrb[0].mxu0
    %v4630 = vadd.f32 %v4517, %v4629
    %4631 = vmatprep.mubr.bf16.mxu0 %v627
    %4632 = vmatmul.mubr.bf16.gmra.mrb[0].mxu0 %v626
    %v4633 = vpop.f32.mrb[0].mxu0
    %v4634 = vadd.f32 %v4521, %v4633
    %v4635 = vpop.f32.mrb[0].mxu0
    %v4636 = vadd.f32 %v4523, %v4635
    %v4637 = vpop.f32.mrb[0].mxu0
    %v4638 = vadd.f32 %v4525, %v4637
    %v4639 = vpop.f32.mrb[0].mxu0
    %v4640 = vadd.f32 %v4527, %v4639
    %4641 = vdwg.mxu0
    %4642 = vmatprep.subr.bf16.mxu0 %v4033
    %4643 = vmatpush1.bf16.msra.mxu0 %v4032
    %4644 = vmatprep.subr.bf16.mxu0 %v4037
    %4645 = vmatpush1.bf16.msra.mxu0 %v4036
    %4646 = vmatprep.subr.bf16.mxu0 %v4041
    %4647 = vmatpush1.bf16.msra.mxu0 %v4040
    %4648 = vmatprep.subr.bf16.mxu0 %v4045
    %4649 = vmatpush1.bf16.msra.mxu0 %v4044
    %4650 = vmatprep.subr.bf16.mxu0 %v4049
    %4651 = vmatpush1.bf16.msra.mxu0 %v4048
    %4652 = vmatprep.subr.bf16.mxu0 %v4053
    %4653 = vmatpush1.bf16.msra.mxu0 %v4052
    %4654 = vmatprep.subr.bf16.mxu0 %v4057
    %4655 = vmatpush1.bf16.msra.mxu0 %v4056
    %4656 = vmatprep.subr.bf16.mxu0 %v4061
    %4657 = vmatpush1.bf16.msra.mxu0 %v4060
    %4658 = vmatprep.subr.bf16.mxu0 %v4065
    %4659 = vmatpush1.bf16.msra.mxu0 %v4064
    %4660 = vmatprep.subr.bf16.mxu0 %v4069
    %4661 = vmatpush1.bf16.msra.mxu0 %v4068
    %4662 = vmatprep.subr.bf16.mxu0 %v4073
    %4663 = vmatpush1.bf16.msra.mxu0 %v4072
    %4664 = vmatprep.subr.bf16.mxu0 %v4077
    %4665 = vmatpush1.bf16.msra.mxu0 %v4076
    %4666 = vmatprep.subr.bf16.mxu0 %v4081
    %4667 = vmatpush1.bf16.msra.mxu0 %v4080
    %4668 = vmatprep.subr.bf16.mxu0 %v4085
    %4669 = vmatpush1.bf16.msra.mxu0 %v4084
    %4670 = vmatprep.subr.bf16.mxu0 %v4089
    %4671 = vmatpush1.bf16.msra.mxu0 %v4088
    %4672 = vmatprep.subr.bf16.mxu0 %v4093
    %4673 = vmatpush1.bf16.msra.mxu0 %v4092
    %4674 = vmatprep.mubr.bf16.mxu0 %v573
    %4675 = vmatmul.mubr.bf16.gmra.mrb[0].mxu0 %v572
    %v4676 = vpop.f32.mrb[0].mxu0
    %v4677 = vadd.f32 %v4564, %v4676
    %v4678 = vpop.f32.mrb[0].mxu0
    %v4679 = vadd.f32 %v4566, %v4678
    %v4680 = vpop.f32.mrb[0].mxu0
    %v4681 = vadd.f32 %v4568, %v4680
    %v4682 = vpop.f32.mrb[0].mxu0
    %v4683 = vadd.f32 %v4570, %v4682
    %4684 = vmatprep.mubr.bf16.mxu0 %v581
    %4685 = vmatmul.mubr.bf16.gmra.mrb[0].mxu0 %v580
    %v4686 = vpop.f32.mrb[0].mxu0
    %v4687 = vadd.f32 %v4574, %v4686
    %v4688 = vpop.f32.mrb[0].mxu0
    %v4689 = vadd.f32 %v4576, %v4688
    %v4690 = vpop.f32.mrb[0].mxu0
    %v4691 = vadd.f32 %v4578, %v4690
    %v4692 = vpop.f32.mrb[0].mxu0
    %v4693 = vadd.f32 %v4580, %v4692
    %4694 = vmatprep.mubr.bf16.mxu0 %v589
    %4695 = vmatmul.mubr.bf16.gmra.mrb[0].mxu0 %v588
    %v4696 = vpop.f32.mrb[0].mxu0
    %v4697 = vadd.f32 %v4584, %v4696
    %v4698 = vpop.f32.mrb[0].mxu0
    %v4699 = vadd.f32 %v4586, %v4698
    %v4700 = vpop.f32.mrb[0].mxu0
    %v4701 = vadd.f32 %v4588, %v4700
    %v4702 = vpop.f32.mrb[0].mxu0
    %v4703 = vadd.f32 %v4590, %v4702
    %4704 = vmatprep.mubr.bf16.mxu0 %v597
    %4705 = vmatmul.mubr.bf16.gmra.mrb[0].mxu0 %v596
    %v4706 = vpop.f32.mrb[0].mxu0
    %v4707 = vadd.f32 %v4594, %v4706
    %v4708 = vpop.f32.mrb[0].mxu0
    %v4709 = vadd.f32 %v4596, %v4708
    %v4710 = vpop.f32.mrb[0].mxu0
    %v4711 = vadd.f32 %v4598, %v4710
    %v4712 = vpop.f32.mrb[0].mxu0
    %v4713 = vadd.f32 %v4600, %v4712
    %4714 = vmatprep.mubr.bf16.mxu0 %v605
    %4715 = vmatmul.mubr.bf16.gmra.mrb[0].mxu0 %v604
    %v4716 = vpop.f32.mrb[0].mxu0
    %v4717 = vadd.f32 %v4604, %v4716
    %v4718 = vpop.f32.mrb[0].mxu0
    %v4719 = vadd.f32 %v4606, %v4718
    %v4720 = vpop.f32.mrb[0].mxu0
    %v4721 = vadd.f32 %v4608, %v4720
    %v4722 = vpop.f32.mrb[0].mxu0
    %v4723 = vadd.f32 %v4610, %v4722
    %4724 = vmatprep.mubr.bf16.mxu0 %v613
    %4725 = vmatmul.mubr.bf16.gmra.mrb[0].mxu0 %v612
    %v4726 = vpop.f32.mrb[0].mxu0
    %v4727 = vadd.f32 %v4614, %v4726
    %v4728 = vpop.f32.mrb[0].mxu0
    %v4729 = vadd.f32 %v4616, %v4728
    %v4730 = vpop.f32.mrb[0].mxu0
    %v4731 = vadd.f32 %v4618, %v4730
    %v4732 = vpop.f32.mrb[0].mxu0
    %v4733 = vadd.f32 %v4620, %v4732
    %4734 = vmatprep.mubr.bf16.mxu0 %v621
    %4735 = vmatmul.mubr.bf16.gmra.mrb[0].mxu0 %v620
    %v4736 = vpop.f32.mrb[0].mxu0
    %v4737 = vadd.f32 %v4624, %v4736
    %v4738 = vpop.f32.mrb[0].mxu0
    %v4739 = vadd.f32 %v4626, %v4738
    %v4740 = vpop.f32.mrb[0].mxu0
    %v4741 = vadd.f32 %v4628, %v4740
    %v4742 = vpop.f32.mrb[0].mxu0
    %v4743 = vadd.f32 %v4630, %v4742
    %4744 = vmatprep.mubr.bf16.mxu0 %v629
    %4745 = vmatmul.mubr.bf16.gmra.mrb[0].mxu0 %v628
    %v4746 = vpop.f32.mrb[0].mxu0
    %v4747 = vadd.f32 %v4634, %v4746
    %v4748 = vpop.f32.mrb[0].mxu0
    %v4749 = vadd.f32 %v4636, %v4748
    %v4750 = vpop.f32.mrb[0].mxu0
    %v4751 = vadd.f32 %v4638, %v4750
    %v4752 = vpop.f32.mrb[0].mxu0
    %v4753 = vadd.f32 %v4640, %v4752
    %4754 = vdwg.mxu0
    %4755 = vmatprep.subr.bf16.mxu0 %v4097
    %4756 = vmatpush1.bf16.msra.mxu0 %v4096
    %4757 = vmatprep.subr.bf16.mxu0 %v4101
    %4758 = vmatpush1.bf16.msra.mxu0 %v4100
    %4759 = vmatprep.subr.bf16.mxu0 %v4105
    %4760 = vmatpush1.bf16.msra.mxu0 %v4104
    %4761 = vmatprep.subr.bf16.mxu0 %v4109
    %4762 = vmatpush1.bf16.msra.mxu0 %v4108
    %4763 = vmatprep.subr.bf16.mxu0 %v4113
    %4764 = vmatpush1.bf16.msra.mxu0 %v4112
    %4765 = vmatprep.subr.bf16.mxu0 %v4117
    %4766 = vmatpush1.bf16.msra.mxu0 %v4116
    %4767 = vmatprep.subr.bf16.mxu0 %v4121
    %4768 = vmatpush1.bf16.msra.mxu0 %v4120
    %4769 = vmatprep.subr.bf16.mxu0 %v4125
    %4770 = vmatpush1.bf16.msra.mxu0 %v4124
    %4771 = vmatprep.subr.bf16.mxu0 %v4129
    %4772 = vmatpush1.bf16.msra.mxu0 %v4128
    %4773 = vmatprep.subr.bf16.mxu0 %v4133
    %4774 = vmatpush1.bf16.msra.mxu0 %v4132
    %4775 = vmatprep.subr.bf16.mxu0 %v4137
    %4776 = vmatpush1.bf16.msra.mxu0 %v4136
    %4777 = vmatprep.subr.bf16.mxu0 %v4141
    %4778 = vmatpush1.bf16.msra.mxu0 %v4140
    %4779 = vmatprep.subr.bf16.mxu0 %v4145
    %4780 = vmatpush1.bf16.msra.mxu0 %v4144
    %4781 = vmatprep.subr.bf16.mxu0 %v4149
    %4782 = vmatpush1.bf16.msra.mxu0 %v4148
    %4783 = vmatprep.subr.bf16.mxu0 %v4153
    %4784 = vmatpush1.bf16.msra.mxu0 %v4152
    %4785 = vmatprep.subr.bf16.mxu0 %v4157
    %4786 = vmatpush1.bf16.msra.mxu0 %v4156
    %4787 = vmatprep.mubr.bf16.mxu0 %v575
    %4788 = vmatmul.mubr.bf16.gmra.mrb[0].mxu0 %v574
    %v4789 = vpop.f32.mrb[0].mxu0
    %v4790 = vadd.f32 %v4677, %v4789
    %v4791 = vpop.f32.mrb[0].mxu0
    %v4792 = vadd.f32 %v4679, %v4791
    %v4793 = vpop.f32.mrb[0].mxu0
    %v4794 = vadd.f32 %v4681, %v4793
    %v4795 = vpop.f32.mrb[0].mxu0
    %v4796 = vadd.f32 %v4683, %v4795
    %4797 = vmatprep.mubr.bf16.mxu0 %v583
    %4798 = vmatmul.mubr.bf16.gmra.mrb[0].mxu0 %v582
    %v4799 = vpop.f32.mrb[0].mxu0
    %v4800 = vadd.f32 %v4687, %v4799
    %v4801 = vpop.f32.mrb[0].mxu0
    %v4802 = vadd.f32 %v4689, %v4801
    %v4803 = vpop.f32.mrb[0].mxu0
    %v4804 = vadd.f32 %v4691, %v4803
    %v4805 = vpop.f32.mrb[0].mxu0
    %v4806 = vadd.f32 %v4693, %v4805
    %4807 = vmatprep.mubr.bf16.mxu0 %v591
    %4808 = vmatmul.mubr.bf16.gmra.mrb[0].mxu0 %v590
    %v4809 = vpop.f32.mrb[0].mxu0
    %v4810 = vadd.f32 %v4697, %v4809
    %v4811 = vpop.f32.mrb[0].mxu0
    %v4812 = vadd.f32 %v4699, %v4811
    %v4813 = vpop.f32.mrb[0].mxu0
    %v4814 = vadd.f32 %v4701, %v4813
    %v4815 = vpop.f32.mrb[0].mxu0
    %v4816 = vadd.f32 %v4703, %v4815
    %4817 = vmatprep.mubr.bf16.mxu0 %v599
    %4818 = vmatmul.mubr.bf16.gmra.mrb[0].mxu0 %v598
    %v4819 = vpop.f32.mrb[0].mxu0
    %v4820 = vadd.f32 %v4707, %v4819
    %v4821 = vpop.f32.mrb[0].mxu0
    %v4822 = vadd.f32 %v4709, %v4821
    %v4823 = vpop.f32.mrb[0].mxu0
    %v4824 = vadd.f32 %v4711, %v4823
    %v4825 = vpop.f32.mrb[0].mxu0
    %v4826 = vadd.f32 %v4713, %v4825
    %4827 = vmatprep.mubr.bf16.mxu0 %v607
    %4828 = vmatmul.mubr.bf16.gmra.mrb[0].mxu0 %v606
    %v4829 = vpop.f32.mrb[0].mxu0
    %v4830 = vadd.f32 %v4717, %v4829
    %v4831 = vpop.f32.mrb[0].mxu0
    %v4832 = vadd.f32 %v4719, %v4831
    %v4833 = vpop.f32.mrb[0].mxu0
    %v4834 = vadd.f32 %v4721, %v4833
    %v4835 = vpop.f32.mrb[0].mxu0
    %v4836 = vadd.f32 %v4723, %v4835
    %4837 = vmatprep.mubr.bf16.mxu0 %v615
    %4838 = vmatmul.mubr.bf16.gmra.mrb[0].mxu0 %v614
    %v4839 = vpop.f32.mrb[0].mxu0
    %v4840 = vadd.f32 %v4727, %v4839
    %v4841 = vpop.f32.mrb[0].mxu0
    %v4842 = vadd.f32 %v4729, %v4841
    %v4843 = vpop.f32.mrb[0].mxu0
    %v4844 = vadd.f32 %v4731, %v4843
    %v4845 = vpop.f32.mrb[0].mxu0
    %v4846 = vadd.f32 %v4733, %v4845
    %4847 = vmatprep.mubr.bf16.mxu0 %v623
    %4848 = vmatmul.mubr.bf16.gmra.mrb[0].mxu0 %v622
    %v4849 = vpop.f32.mrb[0].mxu0
    %v4850 = vadd.f32 %v4737, %v4849
    %v4851 = vpop.f32.mrb[0].mxu0
    %v4852 = vadd.f32 %v4739, %v4851
    %v4853 = vpop.f32.mrb[0].mxu0
    %v4854 = vadd.f32 %v4741, %v4853
    %v4855 = vpop.f32.mrb[0].mxu0
    %v4856 = vadd.f32 %v4743, %v4855
    %4857 = vmatprep.mubr.bf16.mxu0 %v631
    %4858 = vmatmul.mubr.bf16.gmra.mrb[0].mxu0 %v630
    %v4859 = vpop.f32.mrb[0].mxu0
    %v4860 = vadd.f32 %v4747, %v4859
    %v4861 = vpop.f32.mrb[0].mxu0
    %v4862 = vadd.f32 %v4749, %v4861
    %v4863 = vpop.f32.mrb[0].mxu0
    %v4864 = vadd.f32 %v4751, %v4863
    %v4865 = vpop.f32.mrb[0].mxu0
    %v4866 = vadd.f32 %v4753, %v4865
    %4867 = vdwg.mxu0
    %4868 = vmatprep.subr.bf16.mxu0 %v3907
    %4869 = vmatpush1.bf16.msra.mxu0 %v3906
    %4870 = vmatprep.subr.bf16.mxu0 %v3911
    %4871 = vmatpush1.bf16.msra.mxu0 %v3910
    %4872 = vmatprep.subr.bf16.mxu0 %v3915
    %4873 = vmatpush1.bf16.msra.mxu0 %v3914
    %4874 = vmatprep.subr.bf16.mxu0 %v3919
    %4875 = vmatpush1.bf16.msra.mxu0 %v3918
    %4876 = vmatprep.subr.bf16.mxu0 %v3923
    %4877 = vmatpush1.bf16.msra.mxu0 %v3922
    %4878 = vmatprep.subr.bf16.mxu0 %v3927
    %4879 = vmatpush1.bf16.msra.mxu0 %v3926
    %4880 = vmatprep.subr.bf16.mxu0 %v3931
    %4881 = vmatpush1.bf16.msra.mxu0 %v3930
    %4882 = vmatprep.subr.bf16.mxu0 %v3935
    %4883 = vmatpush1.bf16.msra.mxu0 %v3934
    %4884 = vmatprep.subr.bf16.mxu0 %v3939
    %4885 = vmatpush1.bf16.msra.mxu0 %v3938
    %4886 = vmatprep.subr.bf16.mxu0 %v3943
    %4887 = vmatpush1.bf16.msra.mxu0 %v3942
    %4888 = vmatprep.subr.bf16.mxu0 %v3947
    %4889 = vmatpush1.bf16.msra.mxu0 %v3946
    %4890 = vmatprep.subr.bf16.mxu0 %v3951
    %4891 = vmatpush1.bf16.msra.mxu0 %v3950
    %4892 = vmatprep.subr.bf16.mxu0 %v3955
    %4893 = vmatpush1.bf16.msra.mxu0 %v3954
    %4894 = vmatprep.subr.bf16.mxu0 %v3959
    %4895 = vmatpush1.bf16.msra.mxu0 %v3958
    %4896 = vmatprep.subr.bf16.mxu0 %v3963
    %4897 = vmatpush1.bf16.msra.mxu0 %v3962
    %4898 = vmatprep.subr.bf16.mxu0 %v3967
    %4899 = vmatpush1.bf16.msra.mxu0 %v3966
    %4900 = vmatprep.mubr.bf16.mxu0 %v569
    %4901 = vmatmul.mubr.bf16.gmra.mrb[0].mxu0 %v568
    %v4902 = vpop.f32.mrb[0].mxu0
    %v4903 = vadd.f32 0.0, %v4902
    %v4904 = vpop.f32.mrb[0].mxu0
    %v4905 = vadd.f32 0.0, %v4904
    %v4906 = vpop.f32.mrb[0].mxu0
    %v4907 = vadd.f32 0.0, %v4906
    %v4908 = vpop.f32.mrb[0].mxu0
    %v4909 = vadd.f32 0.0, %v4908
    %4910 = vmatprep.mubr.bf16.mxu0 %v577
    %4911 = vmatmul.mubr.bf16.gmra.mrb[0].mxu0 %v576
    %v4912 = vpop.f32.mrb[0].mxu0
    %v4913 = vadd.f32 0.0, %v4912
    %v4914 = vpop.f32.mrb[0].mxu0
    %v4915 = vadd.f32 0.0, %v4914
    %v4916 = vpop.f32.mrb[0].mxu0
    %v4917 = vadd.f32 0.0, %v4916
    %v4918 = vpop.f32.mrb[0].mxu0
    %v4919 = vadd.f32 0.0, %v4918
    %4920 = vmatprep.mubr.bf16.mxu0 %v585
    %4921 = vmatmul.mubr.bf16.gmra.mrb[0].mxu0 %v584
    %v4922 = vpop.f32.mrb[0].mxu0
    %v4923 = vadd.f32 0.0, %v4922
    %v4924 = vpop.f32.mrb[0].mxu0
    %v4925 = vadd.f32 0.0, %v4924
    %v4926 = vpop.f32.mrb[0].mxu0
    %v4927 = vadd.f32 0.0, %v4926
    %v4928 = vpop.f32.mrb[0].mxu0
    %v4929 = vadd.f32 0.0, %v4928
    %4930 = vmatprep.mubr.bf16.mxu0 %v593
    %4931 = vmatmul.mubr.bf16.gmra.mrb[0].mxu0 %v592
    %v4932 = vpop.f32.mrb[0].mxu0
    %v4933 = vadd.f32 0.0, %v4932
    %v4934 = vpop.f32.mrb[0].mxu0
    %v4935 = vadd.f32 0.0, %v4934
    %v4936 = vpop.f32.mrb[0].mxu0
    %v4937 = vadd.f32 0.0, %v4936
    %v4938 = vpop.f32.mrb[0].mxu0
    %v4939 = vadd.f32 0.0, %v4938
    %4940 = vmatprep.mubr.bf16.mxu0 %v601
    %4941 = vmatmul.mubr.bf16.gmra.mrb[0].mxu0 %v600
    %v4942 = vpop.f32.mrb[0].mxu0
    %v4943 = vadd.f32 0.0, %v4942
    %v4944 = vpop.f32.mrb[0].mxu0
    %v4945 = vadd.f32 0.0, %v4944
    %v4946 = vpop.f32.mrb[0].mxu0
    %v4947 = vadd.f32 0.0, %v4946
    %v4948 = vpop.f32.mrb[0].mxu0
    %v4949 = vadd.f32 0.0, %v4948
    %4950 = vmatprep.mubr.bf16.mxu0 %v609
    %4951 = vmatmul.mubr.bf16.gmra.mrb[0].mxu0 %v608
    %v4952 = vpop.f32.mrb[0].mxu0
    %v4953 = vadd.f32 0.0, %v4952
    %v4954 = vpop.f32.mrb[0].mxu0
    %v4955 = vadd.f32 0.0, %v4954
    %v4956 = vpop.f32.mrb[0].mxu0
    %v4957 = vadd.f32 0.0, %v4956
    %v4958 = vpop.f32.mrb[0].mxu0
    %v4959 = vadd.f32 0.0, %v4958
    %4960 = vmatprep.mubr.bf16.mxu0 %v617
    %4961 = vmatmul.mubr.bf16.gmra.mrb[0].mxu0 %v616
    %v4962 = vpop.f32.mrb[0].mxu0
    %v4963 = vadd.f32 0.0, %v4962
    %v4964 = vpop.f32.mrb[0].mxu0
    %v4965 = vadd.f32 0.0, %v4964
    %v4966 = vpop.f32.mrb[0].mxu0
    %v4967 = vadd.f32 0.0, %v4966
    %v4968 = vpop.f32.mrb[0].mxu0
    %v4969 = vadd.f32 0.0, %v4968
    %4970 = vmatprep.mubr.bf16.mxu0 %v625
    %4971 = vmatmul.mubr.bf16.gmra.mrb[0].mxu0 %v624
    %v4972 = vpop.f32.mrb[0].mxu0
    %v4973 = vadd.f32 0.0, %v4972
    %v4974 = vpop.f32.mrb[0].mxu0
    %v4975 = vadd.f32 0.0, %v4974
    %v4976 = vpop.f32.mrb[0].mxu0
    %v4977 = vadd.f32 0.0, %v4976
    %v4978 = vpop.f32.mrb[0].mxu0
    %v4979 = vadd.f32 0.0, %v4978
    %4980 = vdwg.mxu0
    %4981 = vmatprep.subr.bf16.mxu0 %v3971
    %4982 = vmatpush1.bf16.msra.mxu0 %v3970
    %4983 = vmatprep.subr.bf16.mxu0 %v3975
    %4984 = vmatpush1.bf16.msra.mxu0 %v3974
    %4985 = vmatprep.subr.bf16.mxu0 %v3979
    %4986 = vmatpush1.bf16.msra.mxu0 %v3978
    %4987 = vmatprep.subr.bf16.mxu0 %v3983
    %4988 = vmatpush1.bf16.msra.mxu0 %v3982
    %4989 = vmatprep.subr.bf16.mxu0 %v3987
    %4990 = vmatpush1.bf16.msra.mxu0 %v3986
    %4991 = vmatprep.subr.bf16.mxu0 %v3991
    %4992 = vmatpush1.bf16.msra.mxu0 %v3990
    %4993 = vmatprep.subr.bf16.mxu0 %v3995
    %4994 = vmatpush1.bf16.msra.mxu0 %v3994
    %4995 = vmatprep.subr.bf16.mxu0 %v3999
    %4996 = vmatpush1.bf16.msra.mxu0 %v3998
    %4997 = vmatprep.subr.bf16.mxu0 %v4003
    %4998 = vmatpush1.bf16.msra.mxu0 %v4002
    %4999 = vmatprep.subr.bf16.mxu0 %v4007
    %5000 = vmatpush1.bf16.msra.mxu0 %v4006
    %5001 = vmatprep.subr.bf16.mxu0 %v4011
    %5002 = vmatpush1.bf16.msra.mxu0 %v4010
    %5003 = vmatprep.subr.bf16.mxu0 %v4015
    %5004 = vmatpush1.bf16.msra.mxu0 %v4014
    %5005 = vmatprep.subr.bf16.mxu0 %v4019
    %5006 = vmatpush1.bf16.msra.mxu0 %v4018
    %5007 = vmatprep.subr.bf16.mxu0 %v4023
    %5008 = vmatpush1.bf16.msra.mxu0 %v4022
    %5009 = vmatprep.subr.bf16.mxu0 %v4027
    %5010 = vmatpush1.bf16.msra.mxu0 %v4026
    %5011 = vmatprep.subr.bf16.mxu0 %v4031
    %5012 = vmatpush1.bf16.msra.mxu0 %v4030
    %5013 = vmatprep.mubr.bf16.mxu0 %v571
    %5014 = vmatmul.mubr.bf16.gmra.mrb[0].mxu0 %v570
    %v5015 = vpop.f32.mrb[0].mxu0
    %v5016 = vadd.f32 %v4903, %v5015
    %v5017 = vpop.f32.mrb[0].mxu0
    %v5018 = vadd.f32 %v4905, %v5017
    %v5019 = vpop.f32.mrb[0].mxu0
    %v5020 = vadd.f32 %v4907, %v5019
    %v5021 = vpop.f32.mrb[0].mxu0
    %v5022 = vadd.f32 %v4909, %v5021
    %5023 = vmatprep.mubr.bf16.mxu0 %v579
    %5024 = vmatmul.mubr.bf16.gmra.mrb[0].mxu0 %v578
    %v5025 = vpop.f32.mrb[0].mxu0
    %v5026 = vadd.f32 %v4913, %v5025
    %v5027 = vpop.f32.mrb[0].mxu0
    %v5028 = vadd.f32 %v4915, %v5027
    %v5029 = vpop.f32.mrb[0].mxu0
    %v5030 = vadd.f32 %v4917, %v5029
    %v5031 = vpop.f32.mrb[0].mxu0
    %v5032 = vadd.f32 %v4919, %v5031
    %5033 = vmatprep.mubr.bf16.mxu0 %v587
    %5034 = vmatmul.mubr.bf16.gmra.mrb[0].mxu0 %v586
    %v5035 = vpop.f32.mrb[0].mxu0
    %v5036 = vadd.f32 %v4923, %v5035
    %v5037 = vpop.f32.mrb[0].mxu0
    %v5038 = vadd.f32 %v4925, %v5037
    %v5039 = vpop.f32.mrb[0].mxu0
    %v5040 = vadd.f32 %v4927, %v5039
    %v5041 = vpop.f32.mrb[0].mxu0
    %v5042 = vadd.f32 %v4929, %v5041
    %5043 = vmatprep.mubr.bf16.mxu0 %v595
    %5044 = vmatmul.mubr.bf16.gmra.mrb[0].mxu0 %v594
    %v5045 = vpop.f32.mrb[0].mxu0
    %v5046 = vadd.f32 %v4933, %v5045
    %v5047 = vpop.f32.mrb[0].mxu0
    %v5048 = vadd.f32 %v4935, %v5047
    %v5049 = vpop.f32.mrb[0].mxu0
    %v5050 = vadd.f32 %v4937, %v5049
    %v5051 = vpop.f32.mrb[0].mxu0
    %v5052 = vadd.f32 %v4939, %v5051
    %5053 = vmatprep.mubr.bf16.mxu0 %v603
    %5054 = vmatmul.mubr.bf16.gmra.mrb[0].mxu0 %v602
    %v5055 = vpop.f32.mrb[0].mxu0
    %v5056 = vadd.f32 %v4943, %v5055
    %v5057 = vpop.f32.mrb[0].mxu0
    %v5058 = vadd.f32 %v4945, %v5057
    %v5059 = vpop.f32.mrb[0].mxu0
    %v5060 = vadd.f32 %v4947, %v5059
    %v5061 = vpop.f32.mrb[0].mxu0
    %v5062 = vadd.f32 %v4949, %v5061
    %5063 = vmatprep.mubr.bf16.mxu0 %v611
    %5064 = vmatmul.mubr.bf16.gmra.mrb[0].mxu0 %v610
    %v5065 = vpop.f32.mrb[0].mxu0
    %v5066 = vadd.f32 %v4953, %v5065
    %v5067 = vpop.f32.mrb[0].mxu0
    %v5068 = vadd.f32 %v4955, %v5067
    %v5069 = vpop.f32.mrb[0].mxu0
    %v5070 = vadd.f32 %v4957, %v5069
    %v5071 = vpop.f32.mrb[0].mxu0
    %v5072 = vadd.f32 %v4959, %v5071
    %5073 = vmatprep.mubr.bf16.mxu0 %v619
    %5074 = vmatmul.mubr.bf16.gmra.mrb[0].mxu0 %v618
    %v5075 = vpop.f32.mrb[0].mxu0
    %v5076 = vadd.f32 %v4963, %v5075
    %v5077 = vpop.f32.mrb[0].mxu0
    %v5078 = vadd.f32 %v4965, %v5077
    %v5079 = vpop.f32.mrb[0].mxu0
    %v5080 = vadd.f32 %v4967, %v5079
    %v5081 = vpop.f32.mrb[0].mxu0
    %v5082 = vadd.f32 %v4969, %v5081
    %5083 = vmatprep.mubr.bf16.mxu0 %v627
    %5084 = vmatmul.mubr.bf16.gmra.mrb[0].mxu0 %v626
    %v5085 = vpop.f32.mrb[0].mxu0
    %v5086 = vadd.f32 %v4973, %v5085
    %v5087 = vpop.f32.mrb[0].mxu0
    %v5088 = vadd.f32 %v4975, %v5087
    %v5089 = vpop.f32.mrb[0].mxu0
    %v5090 = vadd.f32 %v4977, %v5089
    %v5091 = vpop.f32.mrb[0].mxu0
    %v5092 = vadd.f32 %v4979, %v5091
    %5093 = vdwg.mxu0
    %5094 = vmatprep.subr.bf16.mxu0 %v4035
    %5095 = vmatpush1.bf16.msra.mxu0 %v4034
    %5096 = vmatprep.subr.bf16.mxu0 %v4039
    %5097 = vmatpush1.bf16.msra.mxu0 %v4038
    %5098 = vmatprep.subr.bf16.mxu0 %v4043
    %5099 = vmatpush1.bf16.msra.mxu0 %v4042
    %5100 = vmatprep.subr.bf16.mxu0 %v4047
    %5101 = vmatpush1.bf16.msra.mxu0 %v4046
    %5102 = vmatprep.subr.bf16.mxu0 %v4051
    %5103 = vmatpush1.bf16.msra.mxu0 %v4050
    %5104 = vmatprep.subr.bf16.mxu0 %v4055
    %5105 = vmatpush1.bf16.msra.mxu0 %v4054
    %5106 = vmatprep.subr.bf16.mxu0 %v4059
    %5107 = vmatpush1.bf16.msra.mxu0 %v4058
    %5108 = vmatprep.subr.bf16.mxu0 %v4063
    %5109 = vmatpush1.bf16.msra.mxu0 %v4062
    %5110 = vmatprep.subr.bf16.mxu0 %v4067
    %5111 = vmatpush1.bf16.msra.mxu0 %v4066
    %5112 = vmatprep.subr.bf16.mxu0 %v4071
    %5113 = vmatpush1.bf16.msra.mxu0 %v4070
    %5114 = vmatprep.subr.bf16.mxu0 %v4075
    %5115 = vmatpush1.bf16.msra.mxu0 %v4074
    %5116 = vmatprep.subr.bf16.mxu0 %v4079
    %5117 = vmatpush1.bf16.msra.mxu0 %v4078
    %5118 = vmatprep.subr.bf16.mxu0 %v4083
    %5119 = vmatpush1.bf16.msra.mxu0 %v4082
    %5120 = vmatprep.subr.bf16.mxu0 %v4087
    %5121 = vmatpush1.bf16.msra.mxu0 %v4086
    %5122 = vmatprep.subr.bf16.mxu0 %v4091
    %5123 = vmatpush1.bf16.msra.mxu0 %v4090
    %5124 = vmatprep.subr.bf16.mxu0 %v4095
    %5125 = vmatpush1.bf16.msra.mxu0 %v4094
    %5126 = vmatprep.mubr.bf16.mxu0 %v573
    %5127 = vmatmul.mubr.bf16.gmra.mrb[0].mxu0 %v572
    %v5128 = vpop.f32.mrb[0].mxu0
    %v5129 = vadd.f32 %v5016, %v5128
    %v5130 = vpop.f32.mrb[0].mxu0
    %v5131 = vadd.f32 %v5018, %v5130
    %v5132 = vpop.f32.mrb[0].mxu0
    %v5133 = vadd.f32 %v5020, %v5132
    %v5134 = vpop.f32.mrb[0].mxu0
    %v5135 = vadd.f32 %v5022, %v5134
    %5136 = vmatprep.mubr.bf16.mxu0 %v581
    %5137 = vmatmul.mubr.bf16.gmra.mrb[0].mxu0 %v580
    %v5138 = vpop.f32.mrb[0].mxu0
    %v5139 = vadd.f32 %v5026, %v5138
    %v5140 = vpop.f32.mrb[0].mxu0
    %v5141 = vadd.f32 %v5028, %v5140
    %v5142 = vpop.f32.mrb[0].mxu0
    %v5143 = vadd.f32 %v5030, %v5142
    %v5144 = vpop.f32.mrb[0].mxu0
    %v5145 = vadd.f32 %v5032, %v5144
    %5146 = vmatprep.mubr.bf16.mxu0 %v589
    %5147 = vmatmul.mubr.bf16.gmra.mrb[0].mxu0 %v588
    %v5148 = vpop.f32.mrb[0].mxu0
    %v5149 = vadd.f32 %v5036, %v5148
    %v5150 = vpop.f32.mrb[0].mxu0
    %v5151 = vadd.f32 %v5038, %v5150
    %v5152 = vpop.f32.mrb[0].mxu0
    %v5153 = vadd.f32 %v5040, %v5152
    %v5154 = vpop.f32.mrb[0].mxu0
    %v5155 = vadd.f32 %v5042, %v5154
    %5156 = vmatprep.mubr.bf16.mxu0 %v597
    %5157 = vmatmul.mubr.bf16.gmra.mrb[0].mxu0 %v596
    %v5158 = vpop.f32.mrb[0].mxu0
    %v5159 = vadd.f32 %v5046, %v5158
    %v5160 = vpop.f32.mrb[0].mxu0
    %v5161 = vadd.f32 %v5048, %v5160
    %v5162 = vpop.f32.mrb[0].mxu0
    %v5163 = vadd.f32 %v5050, %v5162
    %v5164 = vpop.f32.mrb[0].mxu0
    %v5165 = vadd.f32 %v5052, %v5164
    %5166 = vmatprep.mubr.bf16.mxu0 %v605
    %5167 = vmatmul.mubr.bf16.gmra.mrb[0].mxu0 %v604
    %v5168 = vpop.f32.mrb[0].mxu0
    %v5169 = vadd.f32 %v5056, %v5168
    %v5170 = vpop.f32.mrb[0].mxu0
    %v5171 = vadd.f32 %v5058, %v5170
    %v5172 = vpop.f32.mrb[0].mxu0
    %v5173 = vadd.f32 %v5060, %v5172
    %v5174 = vpop.f32.mrb[0].mxu0
    %v5175 = vadd.f32 %v5062, %v5174
    %5176 = vmatprep.mubr.bf16.mxu0 %v613
    %5177 = vmatmul.mubr.bf16.gmra.mrb[0].mxu0 %v612
    %v5178 = vpop.f32.mrb[0].mxu0
    %v5179 = vadd.f32 %v5066, %v5178
    %v5180 = vpop.f32.mrb[0].mxu0
    %v5181 = vadd.f32 %v5068, %v5180
    %v5182 = vpop.f32.mrb[0].mxu0
    %v5183 = vadd.f32 %v5070, %v5182
    %v5184 = vpop.f32.mrb[0].mxu0
    %v5185 = vadd.f32 %v5072, %v5184
    %5186 = vmatprep.mubr.bf16.mxu0 %v621
    %5187 = vmatmul.mubr.bf16.gmra.mrb[0].mxu0 %v620
    %v5188 = vpop.f32.mrb[0].mxu0
    %v5189 = vadd.f32 %v5076, %v5188
    %v5190 = vpop.f32.mrb[0].mxu0
    %v5191 = vadd.f32 %v5078, %v5190
    %v5192 = vpop.f32.mrb[0].mxu0
    %v5193 = vadd.f32 %v5080, %v5192
    %v5194 = vpop.f32.mrb[0].mxu0
    %v5195 = vadd.f32 %v5082, %v5194
    %5196 = vmatprep.mubr.bf16.mxu0 %v629
    %5197 = vmatmul.mubr.bf16.gmra.mrb[0].mxu0 %v628
    %v5198 = vpop.f32.mrb[0].mxu0
    %v5199 = vadd.f32 %v5086, %v5198
    %v5200 = vpop.f32.mrb[0].mxu0
    %v5201 = vadd.f32 %v5088, %v5200
    %v5202 = vpop.f32.mrb[0].mxu0
    %v5203 = vadd.f32 %v5090, %v5202
    %v5204 = vpop.f32.mrb[0].mxu0
    %v5205 = vadd.f32 %v5092, %v5204
    %5206 = vdwg.mxu0
    %5207 = vmatprep.subr.bf16.mxu0 %v4099
    %5208 = vmatpush1.bf16.msra.mxu0 %v4098
    %5209 = vmatprep.subr.bf16.mxu0 %v4103
    %5210 = vmatpush1.bf16.msra.mxu0 %v4102
    %5211 = vmatprep.subr.bf16.mxu0 %v4107
    %5212 = vmatpush1.bf16.msra.mxu0 %v4106
    %5213 = vmatprep.subr.bf16.mxu0 %v4111
    %5214 = vmatpush1.bf16.msra.mxu0 %v4110
    %5215 = vmatprep.subr.bf16.mxu0 %v4115
    %5216 = vmatpush1.bf16.msra.mxu0 %v4114
    %5217 = vmatprep.subr.bf16.mxu0 %v4119
    %5218 = vmatpush1.bf16.msra.mxu0 %v4118
    %5219 = vmatprep.subr.bf16.mxu0 %v4123
    %5220 = vmatpush1.bf16.msra.mxu0 %v4122
    %5221 = vmatprep.subr.bf16.mxu0 %v4127
    %5222 = vmatpush1.bf16.msra.mxu0 %v4126
    %5223 = vmatprep.subr.bf16.mxu0 %v4131
    %5224 = vmatpush1.bf16.msra.mxu0 %v4130
    %5225 = vmatprep.subr.bf16.mxu0 %v4135
    %5226 = vmatpush1.bf16.msra.mxu0 %v4134
    %5227 = vmatprep.subr.bf16.mxu0 %v4139
    %5228 = vmatpush1.bf16.msra.mxu0 %v4138
    %5229 = vmatprep.subr.bf16.mxu0 %v4143
    %5230 = vmatpush1.bf16.msra.mxu0 %v4142
    %5231 = vmatprep.subr.bf16.mxu0 %v4147
    %5232 = vmatpush1.bf16.msra.mxu0 %v4146
    %5233 = vmatprep.subr.bf16.mxu0 %v4151
    %5234 = vmatpush1.bf16.msra.mxu0 %v4150
    %5235 = vmatprep.subr.bf16.mxu0 %v4155
    %5236 = vmatpush1.bf16.msra.mxu0 %v4154
    %5237 = vmatprep.subr.bf16.mxu0 %v4159
    %5238 = vmatpush1.bf16.msra.mxu0 %v4158
    %5239 = vmatprep.mubr.bf16.mxu0 %v575
    %5240 = vmatmul.mubr.bf16.gmra.mrb[0].mxu0 %v574
    %v5241 = vpop.f32.mrb[0].mxu0
    %v5242 = vadd.f32 %v5129, %v5241
    %v5243 = vpop.f32.mrb[0].mxu0
    %v5244 = vadd.f32 %v5131, %v5243
    %v5245 = vpop.f32.mrb[0].mxu0
    %v5246 = vadd.f32 %v5133, %v5245
    %v5247 = vpop.f32.mrb[0].mxu0
    %v5248 = vadd.f32 %v5135, %v5247
    %5249 = vmatprep.mubr.bf16.mxu0 %v583
    %5250 = vmatmul.mubr.bf16.gmra.mrb[0].mxu0 %v582
    %v5251 = vpop.f32.mrb[0].mxu0
    %v5252 = vadd.f32 %v5139, %v5251
    %v5253 = vpop.f32.mrb[0].mxu0
    %v5254 = vadd.f32 %v5141, %v5253
    %v5255 = vpop.f32.mrb[0].mxu0
    %v5256 = vadd.f32 %v5143, %v5255
    %v5257 = vpop.f32.mrb[0].mxu0
    %v5258 = vadd.f32 %v5145, %v5257
    %5259 = vmatprep.mubr.bf16.mxu0 %v591
    %5260 = vmatmul.mubr.bf16.gmra.mrb[0].mxu0 %v590
    %v5261 = vpop.f32.mrb[0].mxu0
    %v5262 = vadd.f32 %v5149, %v5261
    %v5263 = vpop.f32.mrb[0].mxu0
    %v5264 = vadd.f32 %v5151, %v5263
    %v5265 = vpop.f32.mrb[0].mxu0
    %v5266 = vadd.f32 %v5153, %v5265
    %v5267 = vpop.f32.mrb[0].mxu0
    %v5268 = vadd.f32 %v5155, %v5267
    %5269 = vmatprep.mubr.bf16.mxu0 %v599
    %5270 = vmatmul.mubr.bf16.gmra.mrb[0].mxu0 %v598
    %v5271 = vpop.f32.mrb[0].mxu0
    %v5272 = vadd.f32 %v5159, %v5271
    %v5273 = vpop.f32.mrb[0].mxu0
    %v5274 = vadd.f32 %v5161, %v5273
    %v5275 = vpop.f32.mrb[0].mxu0
    %v5276 = vadd.f32 %v5163, %v5275
    %v5277 = vpop.f32.mrb[0].mxu0
    %v5278 = vadd.f32 %v5165, %v5277
    %5279 = vmatprep.mubr.bf16.mxu0 %v607
    %5280 = vmatmul.mubr.bf16.gmra.mrb[0].mxu0 %v606
    %v5281 = vpop.f32.mrb[0].mxu0
    %v5282 = vadd.f32 %v5169, %v5281
    %v5283 = vpop.f32.mrb[0].mxu0
    %v5284 = vadd.f32 %v5171, %v5283
    %v5285 = vpop.f32.mrb[0].mxu0
    %v5286 = vadd.f32 %v5173, %v5285
    %v5287 = vpop.f32.mrb[0].mxu0
    %v5288 = vadd.f32 %v5175, %v5287
    %5289 = vmatprep.mubr.bf16.mxu0 %v615
    %5290 = vmatmul.mubr.bf16.gmra.mrb[0].mxu0 %v614
    %v5291 = vpop.f32.mrb[0].mxu0
    %v5292 = vadd.f32 %v5179, %v5291
    %v5293 = vpop.f32.mrb[0].mxu0
    %v5294 = vadd.f32 %v5181, %v5293
    %v5295 = vpop.f32.mrb[0].mxu0
    %v5296 = vadd.f32 %v5183, %v5295
    %v5297 = vpop.f32.mrb[0].mxu0
    %v5298 = vadd.f32 %v5185, %v5297
    %5299 = vmatprep.mubr.bf16.mxu0 %v623
    %5300 = vmatmul.mubr.bf16.gmra.mrb[0].mxu0 %v622
    %v5301 = vpop.f32.mrb[0].mxu0
    %v5302 = vadd.f32 %v5189, %v5301
    %v5303 = vpop.f32.mrb[0].mxu0
    %v5304 = vadd.f32 %v5191, %v5303
    %v5305 = vpop.f32.mrb[0].mxu0
    %v5306 = vadd.f32 %v5193, %v5305
    %v5307 = vpop.f32.mrb[0].mxu0
    %v5308 = vadd.f32 %v5195, %v5307
    %5309 = vmatprep.mubr.bf16.mxu0 %v631
    %5310 = vmatmul.mubr.bf16.gmra.mrb[0].mxu0 %v630
    %v5311 = vpop.f32.mrb[0].mxu0
    %v5312 = vadd.f32 %v5199, %v5311
    %v5313 = vpop.f32.mrb[0].mxu0
    %v5314 = vadd.f32 %v5201, %v5313
    %v5315 = vpop.f32.mrb[0].mxu0
    %v5316 = vadd.f32 %v5203, %v5315
    %v5317 = vpop.f32.mrb[0].mxu0
    %v5318 = vadd.f32 %v5205, %v5317
    %5319 = vdwg.mxu0
    %v5320 = vmul.f32 %v2350, %v2350
    %v5321 = vmul.f32 %v2352, %v2352
    %v5322 = vmul.f32 %v2802, %v2802
    %v5323 = vmul.f32 %v2804, %v2804
    %v5324 = vmul.f32 %v2354, %v2354
    %v5325 = vmul.f32 %v2356, %v2356
    %v5326 = vmul.f32 %v2806, %v2806
    %v5327 = vmul.f32 %v2808, %v2808
    %v5328 = vmul.f32 %v2360, %v2360
    %v5329 = vmul.f32 %v2362, %v2362
    %v5330 = vmul.f32 %v2812, %v2812
    %v5331 = vmul.f32 %v2814, %v2814
    %v5332 = vmul.f32 %v2364, %v2364
    %v5333 = vmul.f32 %v2366, %v2366
    %v5334 = vmul.f32 %v2816, %v2816
    %v5335 = vmul.f32 %v2818, %v2818
    %v5336 = vmul.f32 %v2370, %v2370
    %v5337 = vmul.f32 %v2372, %v2372
    %v5338 = vmul.f32 %v2822, %v2822
    %v5339 = vmul.f32 %v2824, %v2824
    %v5340 = vmul.f32 %v2374, %v2374
    %v5341 = vmul.f32 %v2376, %v2376
    %v5342 = vmul.f32 %v2826, %v2826
    %v5343 = vmul.f32 %v2828, %v2828
    %v5344 = vmul.f32 %v2380, %v2380
    %v5345 = vmul.f32 %v2382, %v2382
    %v5346 = vmul.f32 %v2832, %v2832
    %v5347 = vmul.f32 %v2834, %v2834
    %v5348 = vmul.f32 %v2384, %v2384
    %v5349 = vmul.f32 %v2386, %v2386
    %v5350 = vmul.f32 %v2836, %v2836
    %v5351 = vmul.f32 %v2838, %v2838
    %v5352 = vmul.f32 %v2390, %v2390
    %v5353 = vmul.f32 %v2392, %v2392
    %v5354 = vmul.f32 %v2842, %v2842
    %v5355 = vmul.f32 %v2844, %v2844
    %v5356 = vmul.f32 %v2394, %v2394
    %v5357 = vmul.f32 %v2396, %v2396
    %v5358 = vmul.f32 %v2846, %v2846
    %v5359 = vmul.f32 %v2848, %v2848
    %v5360 = vmul.f32 %v2400, %v2400
    %v5361 = vmul.f32 %v2402, %v2402
    %v5362 = vmul.f32 %v2852, %v2852
    %v5363 = vmul.f32 %v2854, %v2854
    %v5364 = vmul.f32 %v2404, %v2404
    %v5365 = vmul.f32 %v2406, %v2406
    %v5366 = vmul.f32 %v2856, %v2856
    %v5367 = vmul.f32 %v2858, %v2858
    %v5368 = vmul.f32 %v2410, %v2410
    %v5369 = vmul.f32 %v2412, %v2412
    %v5370 = vmul.f32 %v2862, %v2862
    %v5371 = vmul.f32 %v2864, %v2864
    %v5372 = vmul.f32 %v2414, %v2414
    %v5373 = vmul.f32 %v2416, %v2416
    %v5374 = vmul.f32 %v2866, %v2866
    %v5375 = vmul.f32 %v2868, %v2868
    %v5376 = vmul.f32 %v2420, %v2420
    %v5377 = vmul.f32 %v2422, %v2422
    %v5378 = vmul.f32 %v2872, %v2872
    %v5379 = vmul.f32 %v2874, %v2874
    %v5380 = vmul.f32 %v2424, %v2424
    %v5381 = vmul.f32 %v2426, %v2426
    %v5382 = vmul.f32 %v2876, %v2876
    %v5383 = vmul.f32 %v2878, %v2878
    %v5384 = vmul.f32 %v4790, %v4790
    %v5385 = vmul.f32 %v4792, %v4792
    %v5386 = vmul.f32 %v5242, %v5242
    %v5387 = vmul.f32 %v5244, %v5244
    %v5388 = vmul.f32 %v4794, %v4794
    %v5389 = vmul.f32 %v4796, %v4796
    %v5390 = vmul.f32 %v5246, %v5246
    %v5391 = vmul.f32 %v5248, %v5248
    %v5392 = vmul.f32 %v4800, %v4800
    %v5393 = vmul.f32 %v4802, %v4802
    %v5394 = vmul.f32 %v5252, %v5252
    %v5395 = vmul.f32 %v5254, %v5254
    %v5396 = vmul.f32 %v4804, %v4804
    %v5397 = vmul.f32 %v4806, %v4806
    %v5398 = vmul.f32 %v5256, %v5256
    %v5399 = vmul.f32 %v5258, %v5258
    %v5400 = vmul.f32 %v4810, %v4810
    %v5401 = vmul.f32 %v4812, %v4812
    %v5402 = vmul.f32 %v5262, %v5262
    %v5403 = vmul.f32 %v5264, %v5264
    %v5404 = vmul.f32 %v4814, %v4814
    %v5405 = vmul.f32 %v4816, %v4816
    %v5406 = vmul.f32 %v5266, %v5266
    %v5407 = vmul.f32 %v5268, %v5268
    %v5408 = vmul.f32 %v4820, %v4820
    %v5409 = vmul.f32 %v4822, %v4822
    %v5410 = vmul.f32 %v5272, %v5272
    %v5411 = vmul.f32 %v5274, %v5274
    %v5412 = vmul.f32 %v4824, %v4824
    %v5413 = vmul.f32 %v4826, %v4826
    %v5414 = vmul.f32 %v5276, %v5276
    %v5415 = vmul.f32 %v5278, %v5278
    %v5416 = vmul.f32 %v4830, %v4830
    %v5417 = vmul.f32 %v4832, %v4832
    %v5418 = vmul.f32 %v5282, %v5282
    %v5419 = vmul.f32 %v5284, %v5284
    %v5420 = vmul.f32 %v4834, %v4834
    %v5421 = vmul.f32 %v4836, %v4836
    %v5422 = vmul.f32 %v5286, %v5286
    %v5423 = vmul.f32 %v5288, %v5288
    %v5424 = vmul.f32 %v4840, %v4840
    %v5425 = vmul.f32 %v4842, %v4842
    %v5426 = vmul.f32 %v5292, %v5292
    %v5427 = vmul.f32 %v5294, %v5294
    %v5428 = vmul.f32 %v4844, %v4844
    %v5429 = vmul.f32 %v4846, %v4846
    %v5430 = vmul.f32 %v5296, %v5296
    %v5431 = vmul.f32 %v5298, %v5298
    %v5432 = vmul.f32 %v4850, %v4850
    %v5433 = vmul.f32 %v4852, %v4852
    %v5434 = vmul.f32 %v5302, %v5302
    %v5435 = vmul.f32 %v5304, %v5304
    %v5436 = vmul.f32 %v4854, %v4854
    %v5437 = vmul.f32 %v4856, %v4856
    %v5438 = vmul.f32 %v5306, %v5306
    %v5439 = vmul.f32 %v5308, %v5308
    %v5440 = vmul.f32 %v4860, %v4860
    %v5441 = vmul.f32 %v4862, %v4862
    %v5442 = vmul.f32 %v5312, %v5312
    %v5443 = vmul.f32 %v5314, %v5314
    %v5444 = vmul.f32 %v4864, %v4864
    %v5445 = vmul.f32 %v4866, %v4866
    %v5446 = vmul.f32 %v5316, %v5316
    %v5447 = vmul.f32 %v5318, %v5318
    %v5448 = vadd.f32 %v5320, %v5384
    %v5449 = vadd.f32 %v5321, %v5385
    %v5450 = vadd.f32 %v5322, %v5386
    %v5451 = vadd.f32 %v5323, %v5387
    %v5452 = vadd.f32 %v5324, %v5388
    %v5453 = vadd.f32 %v5325, %v5389
    %v5454 = vadd.f32 %v5326, %v5390
    %v5455 = vadd.f32 %v5327, %v5391
    %v5456 = vadd.f32 %v5328, %v5392
    %v5457 = vadd.f32 %v5329, %v5393
    %v5458 = vadd.f32 %v5330, %v5394
    %v5459 = vadd.f32 %v5331, %v5395
    %v5460 = vadd.f32 %v5332, %v5396
    %v5461 = vadd.f32 %v5333, %v5397
    %v5462 = vadd.f32 %v5334, %v5398
    %v5463 = vadd.f32 %v5335, %v5399
    %v5464 = vadd.f32 %v5336, %v5400
    %v5465 = vadd.f32 %v5337, %v5401
    %v5466 = vadd.f32 %v5338, %v5402
    %v5467 = vadd.f32 %v5339, %v5403
    %v5468 = vadd.f32 %v5340, %v5404
    %v5469 = vadd.f32 %v5341, %v5405
    %v5470 = vadd.f32 %v5342, %v5406
    %v5471 = vadd.f32 %v5343, %v5407
    %v5472 = vadd.f32 %v5344, %v5408
    %v5473 = vadd.f32 %v5345, %v5409
    %v5474 = vadd.f32 %v5346, %v5410
    %v5475 = vadd.f32 %v5347, %v5411
    %v5476 = vadd.f32 %v5348, %v5412
    %v5477 = vadd.f32 %v5349, %v5413
    %v5478 = vadd.f32 %v5350, %v5414
    %v5479 = vadd.f32 %v5351, %v5415
    %v5480 = vadd.f32 %v5352, %v5416
    %v5481 = vadd.f32 %v5353, %v5417
    %v5482 = vadd.f32 %v5354, %v5418
    %v5483 = vadd.f32 %v5355, %v5419
    %v5484 = vadd.f32 %v5356, %v5420
    %v5485 = vadd.f32 %v5357, %v5421
    %v5486 = vadd.f32 %v5358, %v5422
    %v5487 = vadd.f32 %v5359, %v5423
    %v5488 = vadd.f32 %v5360, %v5424
    %v5489 = vadd.f32 %v5361, %v5425
    %v5490 = vadd.f32 %v5362, %v5426
    %v5491 = vadd.f32 %v5363, %v5427
    %v5492 = vadd.f32 %v5364, %v5428
    %v5493 = vadd.f32 %v5365, %v5429
    %v5494 = vadd.f32 %v5366, %v5430
    %v5495 = vadd.f32 %v5367, %v5431
    %v5496 = vadd.f32 %v5368, %v5432
    %v5497 = vadd.f32 %v5369, %v5433
    %v5498 = vadd.f32 %v5370, %v5434
    %v5499 = vadd.f32 %v5371, %v5435
    %v5500 = vadd.f32 %v5372, %v5436
    %v5501 = vadd.f32 %v5373, %v5437
    %v5502 = vadd.f32 %v5374, %v5438
    %v5503 = vadd.f32 %v5375, %v5439
    %v5504 = vadd.f32 %v5376, %v5440
    %v5505 = vadd.f32 %v5377, %v5441
    %v5506 = vadd.f32 %v5378, %v5442
    %v5507 = vadd.f32 %v5379, %v5443
    %v5508 = vadd.f32 %v5380, %v5444
    %v5509 = vadd.f32 %v5381, %v5445
    %v5510 = vadd.f32 %v5382, %v5446
    %v5511 = vadd.f32 %v5383, %v5447
    %v5512 = vadd.f32 %v5448, 1e-12
    %v5513 = vadd.f32 %v5449, 1e-12
    %v5514 = vadd.f32 %v5450, 1e-12
    %v5515 = vadd.f32 %v5451, 1e-12
    %v5516 = vadd.f32 %v5452, 1e-12
    %v5517 = vadd.f32 %v5453, 1e-12
    %v5518 = vadd.f32 %v5454, 1e-12
    %v5519 = vadd.f32 %v5455, 1e-12
    %v5520 = vadd.f32 %v5456, 1e-12
    %v5521 = vadd.f32 %v5457, 1e-12
    %v5522 = vadd.f32 %v5458, 1e-12
    %v5523 = vadd.f32 %v5459, 1e-12
    %v5524 = vadd.f32 %v5460, 1e-12
    %v5525 = vadd.f32 %v5461, 1e-12
    %v5526 = vadd.f32 %v5462, 1e-12
    %v5527 = vadd.f32 %v5463, 1e-12
    %v5528 = vadd.f32 %v5464, 1e-12
    %v5529 = vadd.f32 %v5465, 1e-12
    %v5530 = vadd.f32 %v5466, 1e-12
    %v5531 = vadd.f32 %v5467, 1e-12
    %v5532 = vadd.f32 %v5468, 1e-12
    %v5533 = vadd.f32 %v5469, 1e-12
    %v5534 = vadd.f32 %v5470, 1e-12
    %v5535 = vadd.f32 %v5471, 1e-12
    %v5536 = vadd.f32 %v5472, 1e-12
    %v5537 = vadd.f32 %v5473, 1e-12
    %v5538 = vadd.f32 %v5474, 1e-12
    %v5539 = vadd.f32 %v5475, 1e-12
    %v5540 = vadd.f32 %v5476, 1e-12
    %v5541 = vadd.f32 %v5477, 1e-12
    %v5542 = vadd.f32 %v5478, 1e-12
    %v5543 = vadd.f32 %v5479, 1e-12
    %v5544 = vadd.f32 %v5480, 1e-12
    %v5545 = vadd.f32 %v5481, 1e-12
    %v5546 = vadd.f32 %v5482, 1e-12
    %v5547 = vadd.f32 %v5483, 1e-12
    %v5548 = vadd.f32 %v5484, 1e-12
    %v5549 = vadd.f32 %v5485, 1e-12
    %v5550 = vadd.f32 %v5486, 1e-12
    %v5551 = vadd.f32 %v5487, 1e-12
    %v5552 = vadd.f32 %v5488, 1e-12
    %v5553 = vadd.f32 %v5489, 1e-12
    %v5554 = vadd.f32 %v5490, 1e-12
    %v5555 = vadd.f32 %v5491, 1e-12
    %v5556 = vadd.f32 %v5492, 1e-12
    %v5557 = vadd.f32 %v5493, 1e-12
    %v5558 = vadd.f32 %v5494, 1e-12
    %v5559 = vadd.f32 %v5495, 1e-12
    %v5560 = vadd.f32 %v5496, 1e-12
    %v5561 = vadd.f32 %v5497, 1e-12
    %v5562 = vadd.f32 %v5498, 1e-12
    %v5563 = vadd.f32 %v5499, 1e-12
    %v5564 = vadd.f32 %v5500, 1e-12
    %v5565 = vadd.f32 %v5501, 1e-12
    %v5566 = vadd.f32 %v5502, 1e-12
    %v5567 = vadd.f32 %v5503, 1e-12
    %v5568 = vadd.f32 %v5504, 1e-12
    %v5569 = vadd.f32 %v5505, 1e-12
    %v5570 = vadd.f32 %v5506, 1e-12
    %v5571 = vadd.f32 %v5507, 1e-12
    %v5572 = vadd.f32 %v5508, 1e-12
    %v5573 = vadd.f32 %v5509, 1e-12
    %v5574 = vadd.f32 %v5510, 1e-12
    %v5575 = vadd.f32 %v5511, 1e-12
    %v5576 = vrsqrt.pop %v5512
    %v5577 = vmul.f32 %v5512, %v5576
    %vm5578 = vcmp.eq.f32.partialorder %v5512, inf
    %v5579 = vsel %vm5578, %v5512, %v5577
    %vm5580 = vcmp.eq.f32.partialorder %v5512, 0.0
    %v5581 = vand.u32 %v5512, 2147483648
    %v5582 = vsel %vm5580, %v5581, %v5579
    %v5583 = vrsqrt.pop %v5513
    %v5584 = vmul.f32 %v5513, %v5583
    %vm5585 = vcmp.eq.f32.partialorder %v5513, inf
    %v5586 = vsel %vm5585, %v5513, %v5584
    %vm5587 = vcmp.eq.f32.partialorder %v5513, 0.0
    %v5588 = vand.u32 %v5513, 2147483648
    %v5589 = vsel %vm5587, %v5588, %v5586
    %v5590 = vrsqrt.pop %v5514
    %v5591 = vmul.f32 %v5514, %v5590
    %vm5592 = vcmp.eq.f32.partialorder %v5514, inf
    %v5593 = vsel %vm5592, %v5514, %v5591
    %vm5594 = vcmp.eq.f32.partialorder %v5514, 0.0
    %v5595 = vand.u32 %v5514, 2147483648
    %v5596 = vsel %vm5594, %v5595, %v5593
    %v5597 = vrsqrt.pop %v5515
    %v5598 = vmul.f32 %v5515, %v5597
    %vm5599 = vcmp.eq.f32.partialorder %v5515, inf
    %v5600 = vsel %vm5599, %v5515, %v5598
    %vm5601 = vcmp.eq.f32.partialorder %v5515, 0.0
    %v5602 = vand.u32 %v5515, 2147483648
    %v5603 = vsel %vm5601, %v5602, %v5600
    %v5604 = vrsqrt.pop %v5516
    %v5605 = vmul.f32 %v5516, %v5604
    %vm5606 = vcmp.eq.f32.partialorder %v5516, inf
    %v5607 = vsel %vm5606, %v5516, %v5605
    %vm5608 = vcmp.eq.f32.partialorder %v5516, 0.0
    %v5609 = vand.u32 %v5516, 2147483648
    %v5610 = vsel %vm5608, %v5609, %v5607
    %v5611 = vrsqrt.pop %v5517
    %v5612 = vmul.f32 %v5517, %v5611
    %vm5613 = vcmp.eq.f32.partialorder %v5517, inf
    %v5614 = vsel %vm5613, %v5517, %v5612
    %vm5615 = vcmp.eq.f32.partialorder %v5517, 0.0
    %v5616 = vand.u32 %v5517, 2147483648
    %v5617 = vsel %vm5615, %v5616, %v5614
    %v5618 = vrsqrt.pop %v5518
    %v5619 = vmul.f32 %v5518, %v5618
    %vm5620 = vcmp.eq.f32.partialorder %v5518, inf
    %v5621 = vsel %vm5620, %v5518, %v5619
    %vm5622 = vcmp.eq.f32.partialorder %v5518, 0.0
    %v5623 = vand.u32 %v5518, 2147483648
    %v5624 = vsel %vm5622, %v5623, %v5621
    %v5625 = vrsqrt.pop %v5519
    %v5626 = vmul.f32 %v5519, %v5625
    %vm5627 = vcmp.eq.f32.partialorder %v5519, inf
    %v5628 = vsel %vm5627, %v5519, %v5626
    %vm5629 = vcmp.eq.f32.partialorder %v5519, 0.0
    %v5630 = vand.u32 %v5519, 2147483648
    %v5631 = vsel %vm5629, %v5630, %v5628
    %v5632 = vrsqrt.pop %v5520
    %v5633 = vmul.f32 %v5520, %v5632
    %vm5634 = vcmp.eq.f32.partialorder %v5520, inf
    %v5635 = vsel %vm5634, %v5520, %v5633
    %vm5636 = vcmp.eq.f32.partialorder %v5520, 0.0
    %v5637 = vand.u32 %v5520, 2147483648
    %v5638 = vsel %vm5636, %v5637, %v5635
    %v5639 = vrsqrt.pop %v5521
    %v5640 = vmul.f32 %v5521, %v5639
    %vm5641 = vcmp.eq.f32.partialorder %v5521, inf
    %v5642 = vsel %vm5641, %v5521, %v5640
    %vm5643 = vcmp.eq.f32.partialorder %v5521, 0.0
    %v5644 = vand.u32 %v5521, 2147483648
    %v5645 = vsel %vm5643, %v5644, %v5642
    %v5646 = vrsqrt.pop %v5522
    %v5647 = vmul.f32 %v5522, %v5646
    %vm5648 = vcmp.eq.f32.partialorder %v5522, inf
    %v5649 = vsel %vm5648, %v5522, %v5647
    %vm5650 = vcmp.eq.f32.partialorder %v5522, 0.0
    %v5651 = vand.u32 %v5522, 2147483648
    %v5652 = vsel %vm5650, %v5651, %v5649
    %v5653 = vrsqrt.pop %v5523
    %v5654 = vmul.f32 %v5523, %v5653
    %vm5655 = vcmp.eq.f32.partialorder %v5523, inf
    %v5656 = vsel %vm5655, %v5523, %v5654
    %vm5657 = vcmp.eq.f32.partialorder %v5523, 0.0
    %v5658 = vand.u32 %v5523, 2147483648
    %v5659 = vsel %vm5657, %v5658, %v5656
    %v5660 = vrsqrt.pop %v5524
    %v5661 = vmul.f32 %v5524, %v5660
    %vm5662 = vcmp.eq.f32.partialorder %v5524, inf
    %v5663 = vsel %vm5662, %v5524, %v5661
    %vm5664 = vcmp.eq.f32.partialorder %v5524, 0.0
    %v5665 = vand.u32 %v5524, 2147483648
    %v5666 = vsel %vm5664, %v5665, %v5663
    %v5667 = vrsqrt.pop %v5525
    %v5668 = vmul.f32 %v5525, %v5667
    %vm5669 = vcmp.eq.f32.partialorder %v5525, inf
    %v5670 = vsel %vm5669, %v5525, %v5668
    %vm5671 = vcmp.eq.f32.partialorder %v5525, 0.0
    %v5672 = vand.u32 %v5525, 2147483648
    %v5673 = vsel %vm5671, %v5672, %v5670
    %v5674 = vrsqrt.pop %v5526
    %v5675 = vmul.f32 %v5526, %v5674
    %vm5676 = vcmp.eq.f32.partialorder %v5526, inf
    %v5677 = vsel %vm5676, %v5526, %v5675
    %vm5678 = vcmp.eq.f32.partialorder %v5526, 0.0
    %v5679 = vand.u32 %v5526, 2147483648
    %v5680 = vsel %vm5678, %v5679, %v5677
    %v5681 = vrsqrt.pop %v5527
    %v5682 = vmul.f32 %v5527, %v5681
    %vm5683 = vcmp.eq.f32.partialorder %v5527, inf
    %v5684 = vsel %vm5683, %v5527, %v5682
    %vm5685 = vcmp.eq.f32.partialorder %v5527, 0.0
    %v5686 = vand.u32 %v5527, 2147483648
    %v5687 = vsel %vm5685, %v5686, %v5684
    %v5688 = vrsqrt.pop %v5528
    %v5689 = vmul.f32 %v5528, %v5688
    %vm5690 = vcmp.eq.f32.partialorder %v5528, inf
    %v5691 = vsel %vm5690, %v5528, %v5689
    %vm5692 = vcmp.eq.f32.partialorder %v5528, 0.0
    %v5693 = vand.u32 %v5528, 2147483648
    %v5694 = vsel %vm5692, %v5693, %v5691
    %v5695 = vrsqrt.pop %v5529
    %v5696 = vmul.f32 %v5529, %v5695
    %vm5697 = vcmp.eq.f32.partialorder %v5529, inf
    %v5698 = vsel %vm5697, %v5529, %v5696
    %vm5699 = vcmp.eq.f32.partialorder %v5529, 0.0
    %v5700 = vand.u32 %v5529, 2147483648
    %v5701 = vsel %vm5699, %v5700, %v5698
    %v5702 = vrsqrt.pop %v5530
    %v5703 = vmul.f32 %v5530, %v5702
    %vm5704 = vcmp.eq.f32.partialorder %v5530, inf
    %v5705 = vsel %vm5704, %v5530, %v5703
    %vm5706 = vcmp.eq.f32.partialorder %v5530, 0.0
    %v5707 = vand.u32 %v5530, 2147483648
    %v5708 = vsel %vm5706, %v5707, %v5705
    %v5709 = vrsqrt.pop %v5531
    %v5710 = vmul.f32 %v5531, %v5709
    %vm5711 = vcmp.eq.f32.partialorder %v5531, inf
    %v5712 = vsel %vm5711, %v5531, %v5710
    %vm5713 = vcmp.eq.f32.partialorder %v5531, 0.0
    %v5714 = vand.u32 %v5531, 2147483648
    %v5715 = vsel %vm5713, %v5714, %v5712
    %v5716 = vrsqrt.pop %v5532
    %v5717 = vmul.f32 %v5532, %v5716
    %vm5718 = vcmp.eq.f32.partialorder %v5532, inf
    %v5719 = vsel %vm5718, %v5532, %v5717
    %vm5720 = vcmp.eq.f32.partialorder %v5532, 0.0
    %v5721 = vand.u32 %v5532, 2147483648
    %v5722 = vsel %vm5720, %v5721, %v5719
    %v5723 = vrsqrt.pop %v5533
    %v5724 = vmul.f32 %v5533, %v5723
    %vm5725 = vcmp.eq.f32.partialorder %v5533, inf
    %v5726 = vsel %vm5725, %v5533, %v5724
    %vm5727 = vcmp.eq.f32.partialorder %v5533, 0.0
    %v5728 = vand.u32 %v5533, 2147483648
    %v5729 = vsel %vm5727, %v5728, %v5726
    %v5730 = vrsqrt.pop %v5534
    %v5731 = vmul.f32 %v5534, %v5730
    %vm5732 = vcmp.eq.f32.partialorder %v5534, inf
    %v5733 = vsel %vm5732, %v5534, %v5731
    %vm5734 = vcmp.eq.f32.partialorder %v5534, 0.0
    %v5735 = vand.u32 %v5534, 2147483648
    %v5736 = vsel %vm5734, %v5735, %v5733
    %v5737 = vrsqrt.pop %v5535
    %v5738 = vmul.f32 %v5535, %v5737
    %vm5739 = vcmp.eq.f32.partialorder %v5535, inf
    %v5740 = vsel %vm5739, %v5535, %v5738
    %vm5741 = vcmp.eq.f32.partialorder %v5535, 0.0
    %v5742 = vand.u32 %v5535, 2147483648
    %v5743 = vsel %vm5741, %v5742, %v5740
    %v5744 = vrsqrt.pop %v5536
    %v5745 = vmul.f32 %v5536, %v5744
    %vm5746 = vcmp.eq.f32.partialorder %v5536, inf
    %v5747 = vsel %vm5746, %v5536, %v5745
    %vm5748 = vcmp.eq.f32.partialorder %v5536, 0.0
    %v5749 = vand.u32 %v5536, 2147483648
    %v5750 = vsel %vm5748, %v5749, %v5747
    %v5751 = vrsqrt.pop %v5537
    %v5752 = vmul.f32 %v5537, %v5751
    %vm5753 = vcmp.eq.f32.partialorder %v5537, inf
    %v5754 = vsel %vm5753, %v5537, %v5752
    %vm5755 = vcmp.eq.f32.partialorder %v5537, 0.0
    %v5756 = vand.u32 %v5537, 2147483648
    %v5757 = vsel %vm5755, %v5756, %v5754
    %v5758 = vrsqrt.pop %v5538
    %v5759 = vmul.f32 %v5538, %v5758
    %vm5760 = vcmp.eq.f32.partialorder %v5538, inf
    %v5761 = vsel %vm5760, %v5538, %v5759
    %vm5762 = vcmp.eq.f32.partialorder %v5538, 0.0
    %v5763 = vand.u32 %v5538, 2147483648
    %v5764 = vsel %vm5762, %v5763, %v5761
    %v5765 = vrsqrt.pop %v5539
    %v5766 = vmul.f32 %v5539, %v5765
    %vm5767 = vcmp.eq.f32.partialorder %v5539, inf
    %v5768 = vsel %vm5767, %v5539, %v5766
    %vm5769 = vcmp.eq.f32.partialorder %v5539, 0.0
    %v5770 = vand.u32 %v5539, 2147483648
    %v5771 = vsel %vm5769, %v5770, %v5768
    %v5772 = vrsqrt.pop %v5540
    %v5773 = vmul.f32 %v5540, %v5772
    %vm5774 = vcmp.eq.f32.partialorder %v5540, inf
    %v5775 = vsel %vm5774, %v5540, %v5773
    %vm5776 = vcmp.eq.f32.partialorder %v5540, 0.0
    %v5777 = vand.u32 %v5540, 2147483648
    %v5778 = vsel %vm5776, %v5777, %v5775
    %v5779 = vrsqrt.pop %v5541
    %v5780 = vmul.f32 %v5541, %v5779
    %vm5781 = vcmp.eq.f32.partialorder %v5541, inf
    %v5782 = vsel %vm5781, %v5541, %v5780
    %vm5783 = vcmp.eq.f32.partialorder %v5541, 0.0
    %v5784 = vand.u32 %v5541, 2147483648
    %v5785 = vsel %vm5783, %v5784, %v5782
    %v5786 = vrsqrt.pop %v5542
    %v5787 = vmul.f32 %v5542, %v5786
    %vm5788 = vcmp.eq.f32.partialorder %v5542, inf
    %v5789 = vsel %vm5788, %v5542, %v5787
    %vm5790 = vcmp.eq.f32.partialorder %v5542, 0.0
    %v5791 = vand.u32 %v5542, 2147483648
    %v5792 = vsel %vm5790, %v5791, %v5789
    %v5793 = vrsqrt.pop %v5543
    %v5794 = vmul.f32 %v5543, %v5793
    %vm5795 = vcmp.eq.f32.partialorder %v5543, inf
    %v5796 = vsel %vm5795, %v5543, %v5794
    %vm5797 = vcmp.eq.f32.partialorder %v5543, 0.0
    %v5798 = vand.u32 %v5543, 2147483648
    %v5799 = vsel %vm5797, %v5798, %v5796
    %v5800 = vrsqrt.pop %v5544
    %v5801 = vmul.f32 %v5544, %v5800
    %vm5802 = vcmp.eq.f32.partialorder %v5544, inf
    %v5803 = vsel %vm5802, %v5544, %v5801
    %vm5804 = vcmp.eq.f32.partialorder %v5544, 0.0
    %v5805 = vand.u32 %v5544, 2147483648
    %v5806 = vsel %vm5804, %v5805, %v5803
    %v5807 = vrsqrt.pop %v5545
    %v5808 = vmul.f32 %v5545, %v5807
    %vm5809 = vcmp.eq.f32.partialorder %v5545, inf
    %v5810 = vsel %vm5809, %v5545, %v5808
    %vm5811 = vcmp.eq.f32.partialorder %v5545, 0.0
    %v5812 = vand.u32 %v5545, 2147483648
    %v5813 = vsel %vm5811, %v5812, %v5810
    %v5814 = vrsqrt.pop %v5546
    %v5815 = vmul.f32 %v5546, %v5814
    %vm5816 = vcmp.eq.f32.partialorder %v5546, inf
    %v5817 = vsel %vm5816, %v5546, %v5815
    %vm5818 = vcmp.eq.f32.partialorder %v5546, 0.0
    %v5819 = vand.u32 %v5546, 2147483648
    %v5820 = vsel %vm5818, %v5819, %v5817
    %v5821 = vrsqrt.pop %v5547
    %v5822 = vmul.f32 %v5547, %v5821
    %vm5823 = vcmp.eq.f32.partialorder %v5547, inf
    %v5824 = vsel %vm5823, %v5547, %v5822
    %vm5825 = vcmp.eq.f32.partialorder %v5547, 0.0
    %v5826 = vand.u32 %v5547, 2147483648
    %v5827 = vsel %vm5825, %v5826, %v5824
    %v5828 = vrsqrt.pop %v5548
    %v5829 = vmul.f32 %v5548, %v5828
    %vm5830 = vcmp.eq.f32.partialorder %v5548, inf
    %v5831 = vsel %vm5830, %v5548, %v5829
    %vm5832 = vcmp.eq.f32.partialorder %v5548, 0.0
    %v5833 = vand.u32 %v5548, 2147483648
    %v5834 = vsel %vm5832, %v5833, %v5831
    %v5835 = vrsqrt.pop %v5549
    %v5836 = vmul.f32 %v5549, %v5835
    %vm5837 = vcmp.eq.f32.partialorder %v5549, inf
    %v5838 = vsel %vm5837, %v5549, %v5836
    %vm5839 = vcmp.eq.f32.partialorder %v5549, 0.0
    %v5840 = vand.u32 %v5549, 2147483648
    %v5841 = vsel %vm5839, %v5840, %v5838
    %v5842 = vrsqrt.pop %v5550
    %v5843 = vmul.f32 %v5550, %v5842
    %vm5844 = vcmp.eq.f32.partialorder %v5550, inf
    %v5845 = vsel %vm5844, %v5550, %v5843
    %vm5846 = vcmp.eq.f32.partialorder %v5550, 0.0
    %v5847 = vand.u32 %v5550, 2147483648
    %v5848 = vsel %vm5846, %v5847, %v5845
    %v5849 = vrsqrt.pop %v5551
    %v5850 = vmul.f32 %v5551, %v5849
    %vm5851 = vcmp.eq.f32.partialorder %v5551, inf
    %v5852 = vsel %vm5851, %v5551, %v5850
    %vm5853 = vcmp.eq.f32.partialorder %v5551, 0.0
    %v5854 = vand.u32 %v5551, 2147483648
    %v5855 = vsel %vm5853, %v5854, %v5852
    %v5856 = vrsqrt.pop %v5552
    %v5857 = vmul.f32 %v5552, %v5856
    %vm5858 = vcmp.eq.f32.partialorder %v5552, inf
    %v5859 = vsel %vm5858, %v5552, %v5857
    %vm5860 = vcmp.eq.f32.partialorder %v5552, 0.0
    %v5861 = vand.u32 %v5552, 2147483648
    %v5862 = vsel %vm5860, %v5861, %v5859
    %v5863 = vrsqrt.pop %v5553
    %v5864 = vmul.f32 %v5553, %v5863
    %vm5865 = vcmp.eq.f32.partialorder %v5553, inf
    %v5866 = vsel %vm5865, %v5553, %v5864
    %vm5867 = vcmp.eq.f32.partialorder %v5553, 0.0
    %v5868 = vand.u32 %v5553, 2147483648
    %v5869 = vsel %vm5867, %v5868, %v5866
    %v5870 = vrsqrt.pop %v5554
    %v5871 = vmul.f32 %v5554, %v5870
    %vm5872 = vcmp.eq.f32.partialorder %v5554, inf
    %v5873 = vsel %vm5872, %v5554, %v5871
    %vm5874 = vcmp.eq.f32.partialorder %v5554, 0.0
    %v5875 = vand.u32 %v5554, 2147483648
    %v5876 = vsel %vm5874, %v5875, %v5873
    %v5877 = vrsqrt.pop %v5555
    %v5878 = vmul.f32 %v5555, %v5877
    %vm5879 = vcmp.eq.f32.partialorder %v5555, inf
    %v5880 = vsel %vm5879, %v5555, %v5878
    %vm5881 = vcmp.eq.f32.partialorder %v5555, 0.0
    %v5882 = vand.u32 %v5555, 2147483648
    %v5883 = vsel %vm5881, %v5882, %v5880
    %v5884 = vrsqrt.pop %v5556
    %v5885 = vmul.f32 %v5556, %v5884
    %vm5886 = vcmp.eq.f32.partialorder %v5556, inf
    %v5887 = vsel %vm5886, %v5556, %v5885
    %vm5888 = vcmp.eq.f32.partialorder %v5556, 0.0
    %v5889 = vand.u32 %v5556, 2147483648
    %v5890 = vsel %vm5888, %v5889, %v5887
    %v5891 = vrsqrt.pop %v5557
    %v5892 = vmul.f32 %v5557, %v5891
    %vm5893 = vcmp.eq.f32.partialorder %v5557, inf
    %v5894 = vsel %vm5893, %v5557, %v5892
    %vm5895 = vcmp.eq.f32.partialorder %v5557, 0.0
    %v5896 = vand.u32 %v5557, 2147483648
    %v5897 = vsel %vm5895, %v5896, %v5894
    %v5898 = vrsqrt.pop %v5558
    %v5899 = vmul.f32 %v5558, %v5898
    %vm5900 = vcmp.eq.f32.partialorder %v5558, inf
    %v5901 = vsel %vm5900, %v5558, %v5899
    %vm5902 = vcmp.eq.f32.partialorder %v5558, 0.0
    %v5903 = vand.u32 %v5558, 2147483648
    %v5904 = vsel %vm5902, %v5903, %v5901
    %v5905 = vrsqrt.pop %v5559
    %v5906 = vmul.f32 %v5559, %v5905
    %vm5907 = vcmp.eq.f32.partialorder %v5559, inf
    %v5908 = vsel %vm5907, %v5559, %v5906
    %vm5909 = vcmp.eq.f32.partialorder %v5559, 0.0
    %v5910 = vand.u32 %v5559, 2147483648
    %v5911 = vsel %vm5909, %v5910, %v5908
    %v5912 = vrsqrt.pop %v5560
    %v5913 = vmul.f32 %v5560, %v5912
    %vm5914 = vcmp.eq.f32.partialorder %v5560, inf
    %v5915 = vsel %vm5914, %v5560, %v5913
    %vm5916 = vcmp.eq.f32.partialorder %v5560, 0.0
    %v5917 = vand.u32 %v5560, 2147483648
    %v5918 = vsel %vm5916, %v5917, %v5915
    %v5919 = vrsqrt.pop %v5561
    %v5920 = vmul.f32 %v5561, %v5919
    %vm5921 = vcmp.eq.f32.partialorder %v5561, inf
    %v5922 = vsel %vm5921, %v5561, %v5920
    %vm5923 = vcmp.eq.f32.partialorder %v5561, 0.0
    %v5924 = vand.u32 %v5561, 2147483648
    %v5925 = vsel %vm5923, %v5924, %v5922
    %v5926 = vrsqrt.pop %v5562
    %v5927 = vmul.f32 %v5562, %v5926
    %vm5928 = vcmp.eq.f32.partialorder %v5562, inf
    %v5929 = vsel %vm5928, %v5562, %v5927
    %vm5930 = vcmp.eq.f32.partialorder %v5562, 0.0
    %v5931 = vand.u32 %v5562, 2147483648
    %v5932 = vsel %vm5930, %v5931, %v5929
    %v5933 = vrsqrt.pop %v5563
    %v5934 = vmul.f32 %v5563, %v5933
    %vm5935 = vcmp.eq.f32.partialorder %v5563, inf
    %v5936 = vsel %vm5935, %v5563, %v5934
    %vm5937 = vcmp.eq.f32.partialorder %v5563, 0.0
    %v5938 = vand.u32 %v5563, 2147483648
    %v5939 = vsel %vm5937, %v5938, %v5936
    %v5940 = vrsqrt.pop %v5564
    %v5941 = vmul.f32 %v5564, %v5940
    %vm5942 = vcmp.eq.f32.partialorder %v5564, inf
    %v5943 = vsel %vm5942, %v5564, %v5941
    %vm5944 = vcmp.eq.f32.partialorder %v5564, 0.0
    %v5945 = vand.u32 %v5564, 2147483648
    %v5946 = vsel %vm5944, %v5945, %v5943
    %v5947 = vrsqrt.pop %v5565
    %v5948 = vmul.f32 %v5565, %v5947
    %vm5949 = vcmp.eq.f32.partialorder %v5565, inf
    %v5950 = vsel %vm5949, %v5565, %v5948
    %vm5951 = vcmp.eq.f32.partialorder %v5565, 0.0
    %v5952 = vand.u32 %v5565, 2147483648
    %v5953 = vsel %vm5951, %v5952, %v5950
    %v5954 = vrsqrt.pop %v5566
    %v5955 = vmul.f32 %v5566, %v5954
    %vm5956 = vcmp.eq.f32.partialorder %v5566, inf
    %v5957 = vsel %vm5956, %v5566, %v5955
    %vm5958 = vcmp.eq.f32.partialorder %v5566, 0.0
    %v5959 = vand.u32 %v5566, 2147483648
    %v5960 = vsel %vm5958, %v5959, %v5957
    %v5961 = vrsqrt.pop %v5567
    %v5962 = vmul.f32 %v5567, %v5961
    %vm5963 = vcmp.eq.f32.partialorder %v5567, inf
    %v5964 = vsel %vm5963, %v5567, %v5962
    %vm5965 = vcmp.eq.f32.partialorder %v5567, 0.0
    %v5966 = vand.u32 %v5567, 2147483648
    %v5967 = vsel %vm5965, %v5966, %v5964
    %v5968 = vrsqrt.pop %v5568
    %v5969 = vmul.f32 %v5568, %v5968
    %vm5970 = vcmp.eq.f32.partialorder %v5568, inf
    %v5971 = vsel %vm5970, %v5568, %v5969
    %vm5972 = vcmp.eq.f32.partialorder %v5568, 0.0
    %v5973 = vand.u32 %v5568, 2147483648
    %v5974 = vsel %vm5972, %v5973, %v5971
    %v5975 = vrsqrt.pop %v5569
    %v5976 = vmul.f32 %v5569, %v5975
    %vm5977 = vcmp.eq.f32.partialorder %v5569, inf
    %v5978 = vsel %vm5977, %v5569, %v5976
    %vm5979 = vcmp.eq.f32.partialorder %v5569, 0.0
    %v5980 = vand.u32 %v5569, 2147483648
    %v5981 = vsel %vm5979, %v5980, %v5978
    %v5982 = vrsqrt.pop %v5570
    %v5983 = vmul.f32 %v5570, %v5982
    %vm5984 = vcmp.eq.f32.partialorder %v5570, inf
    %v5985 = vsel %vm5984, %v5570, %v5983
    %vm5986 = vcmp.eq.f32.partialorder %v5570, 0.0
    %v5987 = vand.u32 %v5570, 2147483648
    %v5988 = vsel %vm5986, %v5987, %v5985
    %v5989 = vrsqrt.pop %v5571
    %v5990 = vmul.f32 %v5571, %v5989
    %vm5991 = vcmp.eq.f32.partialorder %v5571, inf
    %v5992 = vsel %vm5991, %v5571, %v5990
    %vm5993 = vcmp.eq.f32.partialorder %v5571, 0.0
    %v5994 = vand.u32 %v5571, 2147483648
    %v5995 = vsel %vm5993, %v5994, %v5992
    %v5996 = vrsqrt.pop %v5572
    %v5997 = vmul.f32 %v5572, %v5996
    %vm5998 = vcmp.eq.f32.partialorder %v5572, inf
    %v5999 = vsel %vm5998, %v5572, %v5997
    %vm6000 = vcmp.eq.f32.partialorder %v5572, 0.0
    %v6001 = vand.u32 %v5572, 2147483648
    %v6002 = vsel %vm6000, %v6001, %v5999
    %v6003 = vrsqrt.pop %v5573
    %v6004 = vmul.f32 %v5573, %v6003
    %vm6005 = vcmp.eq.f32.partialorder %v5573, inf
    %v6006 = vsel %vm6005, %v5573, %v6004
    %vm6007 = vcmp.eq.f32.partialorder %v5573, 0.0
    %v6008 = vand.u32 %v5573, 2147483648
    %v6009 = vsel %vm6007, %v6008, %v6006
    %v6010 = vrsqrt.pop %v5574
    %v6011 = vmul.f32 %v5574, %v6010
    %vm6012 = vcmp.eq.f32.partialorder %v5574, inf
    %v6013 = vsel %vm6012, %v5574, %v6011
    %vm6014 = vcmp.eq.f32.partialorder %v5574, 0.0
    %v6015 = vand.u32 %v5574, 2147483648
    %v6016 = vsel %vm6014, %v6015, %v6013
    %v6017 = vrsqrt.pop %v5575
    %v6018 = vmul.f32 %v5575, %v6017
    %vm6019 = vcmp.eq.f32.partialorder %v5575, inf
    %v6020 = vsel %vm6019, %v5575, %v6018
    %vm6021 = vcmp.eq.f32.partialorder %v5575, 0.0
    %v6022 = vand.u32 %v5575, 2147483648
    %v6023 = vsel %vm6021, %v6022, %v6020
    %6024 = vadd.xlane.f32.xlu0 %v5582
    %v6025 = vpop.xlane.xlu0 %6024
    %6026 = vadd.xlane.f32.xlu0 %v5610
    %v6027 = vpop.xlane.xlu0 %6026
    %6028 = vadd.xlane.f32.xlu0 %v5638
    %v6029 = vpop.xlane.xlu0 %6028
    %6030 = vadd.xlane.f32.xlu0 %v5666
    %v6031 = vpop.xlane.xlu0 %6030
    %6032 = vadd.xlane.f32.xlu0 %v5694
    %v6033 = vpop.xlane.xlu0 %6032
    %6034 = vadd.xlane.f32.xlu0 %v5722
    %v6035 = vpop.xlane.xlu0 %6034
    %6036 = vadd.xlane.f32.xlu0 %v5750
    %v6037 = vpop.xlane.xlu0 %6036
    %6038 = vadd.xlane.f32.xlu0 %v5778
    %v6039 = vpop.xlane.xlu0 %6038
    %6040 = vadd.xlane.f32.xlu0 %v5806
    %v6041 = vpop.xlane.xlu0 %6040
    %6042 = vadd.xlane.f32.xlu0 %v5834
    %v6043 = vpop.xlane.xlu0 %6042
    %6044 = vadd.xlane.f32.xlu0 %v5862
    %v6045 = vpop.xlane.xlu0 %6044
    %6046 = vadd.xlane.f32.xlu0 %v5890
    %v6047 = vpop.xlane.xlu0 %6046
    %6048 = vadd.xlane.f32.xlu0 %v5918
    %v6049 = vpop.xlane.xlu0 %6048
    %6050 = vadd.xlane.f32.xlu0 %v5946
    %v6051 = vpop.xlane.xlu0 %6050
    %6052 = vadd.xlane.f32.xlu0 %v5974
    %v6053 = vpop.xlane.xlu0 %6052
    %6054 = vadd.xlane.f32.xlu0 %v6002
    %v6055 = vpop.xlane.xlu0 %6054
    %6056 = vadd.xlane.f32.xlu0 %v5589
    %v6057 = vpop.xlane.xlu0 %6056
    %6058 = vadd.xlane.f32.xlu0 %v5617
    %v6059 = vpop.xlane.xlu0 %6058
    %6060 = vadd.xlane.f32.xlu0 %v5645
    %v6061 = vpop.xlane.xlu0 %6060
    %6062 = vadd.xlane.f32.xlu0 %v5673
    %v6063 = vpop.xlane.xlu0 %6062
    %6064 = vadd.xlane.f32.xlu0 %v5701
    %v6065 = vpop.xlane.xlu0 %6064
    %6066 = vadd.xlane.f32.xlu0 %v5729
    %v6067 = vpop.xlane.xlu0 %6066
    %6068 = vadd.xlane.f32.xlu0 %v5757
    %v6069 = vpop.xlane.xlu0 %6068
    %6070 = vadd.xlane.f32.xlu0 %v5785
    %v6071 = vpop.xlane.xlu0 %6070
    %6072 = vadd.xlane.f32.xlu0 %v5813
    %v6073 = vpop.xlane.xlu0 %6072
    %6074 = vadd.xlane.f32.xlu0 %v5841
    %v6075 = vpop.xlane.xlu0 %6074
    %6076 = vadd.xlane.f32.xlu0 %v5869
    %v6077 = vpop.xlane.xlu0 %6076
    %6078 = vadd.xlane.f32.xlu0 %v5897
    %v6079 = vpop.xlane.xlu0 %6078
    %6080 = vadd.xlane.f32.xlu0 %v5925
    %v6081 = vpop.xlane.xlu0 %6080
    %6082 = vadd.xlane.f32.xlu0 %v5953
    %v6083 = vpop.xlane.xlu0 %6082
    %6084 = vadd.xlane.f32.xlu0 %v5981
    %v6085 = vpop.xlane.xlu0 %6084
    %6086 = vadd.xlane.f32.xlu0 %v6009
    %v6087 = vpop.xlane.xlu0 %6086
    %6088 = vadd.xlane.f32.xlu0 %v5596
    %v6089 = vpop.xlane.xlu0 %6088
    %6090 = vadd.xlane.f32.xlu0 %v5624
    %v6091 = vpop.xlane.xlu0 %6090
    %6092 = vadd.xlane.f32.xlu0 %v5652
    %v6093 = vpop.xlane.xlu0 %6092
    %6094 = vadd.xlane.f32.xlu0 %v5680
    %v6095 = vpop.xlane.xlu0 %6094
    %6096 = vadd.xlane.f32.xlu0 %v5708
    %v6097 = vpop.xlane.xlu0 %6096
    %6098 = vadd.xlane.f32.xlu0 %v5736
    %v6099 = vpop.xlane.xlu0 %6098
    %6100 = vadd.xlane.f32.xlu0 %v5764
    %v6101 = vpop.xlane.xlu0 %6100
    %6102 = vadd.xlane.f32.xlu0 %v5792
    %v6103 = vpop.xlane.xlu0 %6102
    %6104 = vadd.xlane.f32.xlu0 %v5820
    %v6105 = vpop.xlane.xlu0 %6104
    %6106 = vadd.xlane.f32.xlu0 %v5848
    %v6107 = vpop.xlane.xlu0 %6106
    %6108 = vadd.xlane.f32.xlu0 %v5876
    %v6109 = vpop.xlane.xlu0 %6108
    %6110 = vadd.xlane.f32.xlu0 %v5904
    %v6111 = vpop.xlane.xlu0 %6110
    %6112 = vadd.xlane.f32.xlu0 %v5932
    %v6113 = vpop.xlane.xlu0 %6112
    %6114 = vadd.xlane.f32.xlu0 %v5960
    %v6115 = vpop.xlane.xlu0 %6114
    %6116 = vadd.xlane.f32.xlu0 %v5988
    %v6117 = vpop.xlane.xlu0 %6116
    %6118 = vadd.xlane.f32.xlu0 %v6016
    %v6119 = vpop.xlane.xlu0 %6118
    %6120 = vadd.xlane.f32.xlu0 %v5603
    %v6121 = vpop.xlane.xlu0 %6120
    %6122 = vadd.xlane.f32.xlu0 %v5631
    %v6123 = vpop.xlane.xlu0 %6122
    %6124 = vadd.xlane.f32.xlu0 %v5659
    %v6125 = vpop.xlane.xlu0 %6124
    %6126 = vadd.xlane.f32.xlu0 %v5687
    %v6127 = vpop.xlane.xlu0 %6126
    %6128 = vadd.xlane.f32.xlu0 %v5715
    %v6129 = vpop.xlane.xlu0 %6128
    %6130 = vadd.xlane.f32.xlu0 %v5743
    %v6131 = vpop.xlane.xlu0 %6130
    %6132 = vadd.xlane.f32.xlu0 %v5771
    %v6133 = vpop.xlane.xlu0 %6132
    %6134 = vadd.xlane.f32.xlu0 %v5799
    %v6135 = vpop.xlane.xlu0 %6134
    %6136 = vadd.xlane.f32.xlu0 %v5827
    %v6137 = vpop.xlane.xlu0 %6136
    %6138 = vadd.xlane.f32.xlu0 %v5855
    %v6139 = vpop.xlane.xlu0 %6138
    %6140 = vadd.xlane.f32.xlu0 %v5883
    %v6141 = vpop.xlane.xlu0 %6140
    %6142 = vadd.xlane.f32.xlu0 %v5911
    %v6143 = vpop.xlane.xlu0 %6142
    %6144 = vadd.xlane.f32.xlu0 %v5939
    %v6145 = vpop.xlane.xlu0 %6144
    %6146 = vadd.xlane.f32.xlu0 %v5967
    %v6147 = vpop.xlane.xlu0 %6146
    %6148 = vadd.xlane.f32.xlu0 %v5995
    %v6149 = vpop.xlane.xlu0 %6148
    %6150 = vadd.xlane.f32.xlu0 %v6023
    %v6151 = vpop.xlane.xlu0 %6150
    %v6152 = vadd.f32 %v6025, %v6057
    %v6153 = vadd.f32 %v6027, %v6059
    %v6154 = vadd.f32 %v6029, %v6061
    %v6155 = vadd.f32 %v6031, %v6063
    %v6156 = vadd.f32 %v6033, %v6065
    %v6157 = vadd.f32 %v6035, %v6067
    %v6158 = vadd.f32 %v6037, %v6069
    %v6159 = vadd.f32 %v6039, %v6071
    %v6160 = vadd.f32 %v6041, %v6073
    %v6161 = vadd.f32 %v6043, %v6075
    %v6162 = vadd.f32 %v6045, %v6077
    %v6163 = vadd.f32 %v6047, %v6079
    %v6164 = vadd.f32 %v6049, %v6081
    %v6165 = vadd.f32 %v6051, %v6083
    %v6166 = vadd.f32 %v6053, %v6085
    %v6167 = vadd.f32 %v6055, %v6087
    %v6168 = vmul.f32 %v6152, 0.00390625
    %v6169 = vmul.f32 %v6153, 0.00390625
    %v6170 = vmul.f32 %v6154, 0.00390625
    %v6171 = vmul.f32 %v6155, 0.00390625
    %v6172 = vmul.f32 %v6156, 0.00390625
    %v6173 = vmul.f32 %v6157, 0.00390625
    %v6174 = vmul.f32 %v6158, 0.00390625
    %v6175 = vmul.f32 %v6159, 0.00390625
    %v6176 = vmul.f32 %v6160, 0.00390625
    %v6177 = vmul.f32 %v6161, 0.00390625
    %v6178 = vmul.f32 %v6162, 0.00390625
    %v6179 = vmul.f32 %v6163, 0.00390625
    %v6180 = vmul.f32 %v6164, 0.00390625
    %v6181 = vmul.f32 %v6165, 0.00390625
    %v6182 = vmul.f32 %v6166, 0.00390625
    %v6183 = vmul.f32 %v6167, 0.00390625
    %v6184 = vmul.f32 %v6168, 2.0
    %v6185 = vmul.f32 %v6169, 2.0
    %v6186 = vmul.f32 %v6170, 2.0
    %v6187 = vmul.f32 %v6171, 2.0
    %v6188 = vmul.f32 %v6172, 2.0
    %v6189 = vmul.f32 %v6173, 2.0
    %v6190 = vmul.f32 %v6174, 2.0
    %v6191 = vmul.f32 %v6175, 2.0
    %v6192 = vmul.f32 %v6184, %v6176
    %v6193 = vmul.f32 %v6185, %v6177
    %v6194 = vmul.f32 %v6186, %v6178
    %v6195 = vmul.f32 %v6187, %v6179
    %v6196 = vmul.f32 %v6188, %v6180
    %v6197 = vmul.f32 %v6189, %v6181
    %v6198 = vmul.f32 %v6190, %v6182
    %v6199 = vmul.f32 %v6191, %v6183
    %v6200 = vadd.f32 %v6192, 1e-08
    %v6201 = vadd.f32 %v6193, 1e-08
    %v6202 = vadd.f32 %v6194, 1e-08
    %v6203 = vadd.f32 %v6195, 1e-08
    %v6204 = vadd.f32 %v6196, 1e-08
    %v6205 = vadd.f32 %v6197, 1e-08
    %v6206 = vadd.f32 %v6198, 1e-08
    %v6207 = vadd.f32 %v6199, 1e-08
    %v6208 = vmul.f32 %v6168, %v6168
    %v6209 = vmul.f32 %v6169, %v6169
    %v6210 = vmul.f32 %v6170, %v6170
    %v6211 = vmul.f32 %v6171, %v6171
    %v6212 = vmul.f32 %v6172, %v6172
    %v6213 = vmul.f32 %v6173, %v6173
    %v6214 = vmul.f32 %v6174, %v6174
    %v6215 = vmul.f32 %v6175, %v6175
    %v6216 = vmul.f32 %v6176, %v6176
    %v6217 = vmul.f32 %v6177, %v6177
    %v6218 = vmul.f32 %v6178, %v6178
    %v6219 = vmul.f32 %v6179, %v6179
    %v6220 = vmul.f32 %v6180, %v6180
    %v6221 = vmul.f32 %v6181, %v6181
    %v6222 = vmul.f32 %v6182, %v6182
    %v6223 = vmul.f32 %v6183, %v6183
    %v6224 = vadd.f32 %v6208, %v6216
    %v6225 = vadd.f32 %v6209, %v6217
    %v6226 = vadd.f32 %v6210, %v6218
    %v6227 = vadd.f32 %v6211, %v6219
    %v6228 = vadd.f32 %v6212, %v6220
    %v6229 = vadd.f32 %v6213, %v6221
    %v6230 = vadd.f32 %v6214, %v6222
    %v6231 = vadd.f32 %v6215, %v6223
    %v6232 = vadd.f32 %v6224, 1e-08
    %v6233 = vadd.f32 %v6225, 1e-08
    %v6234 = vadd.f32 %v6226, 1e-08
    %v6235 = vadd.f32 %v6227, 1e-08
    %v6236 = vadd.f32 %v6228, 1e-08
    %v6237 = vadd.f32 %v6229, 1e-08
    %v6238 = vadd.f32 %v6230, 1e-08
    %v6239 = vadd.f32 %v6231, 1e-08
    %v6240 = vrcp.pop %v6232
    %v6241 = vmul.f32 %v6200, %v6240
    %v6242 = vrcp.pop %v6233
    %v6243 = vmul.f32 %v6201, %v6242
    %v6244 = vrcp.pop %v6234
    %v6245 = vmul.f32 %v6202, %v6244
    %v6246 = vrcp.pop %v6235
    %v6247 = vmul.f32 %v6203, %v6246
    %v6248 = vrcp.pop %v6236
    %v6249 = vmul.f32 %v6204, %v6248
    %v6250 = vrcp.pop %v6237
    %v6251 = vmul.f32 %v6205, %v6250
    %v6252 = vrcp.pop %v6238
    %v6253 = vmul.f32 %v6206, %v6252
    %v6254 = vrcp.pop %v6239
    %v6255 = vmul.f32 %v6207, %v6254
    %vm6256 = vcmask 7168
    %v6257 = vsel %vm6256, %v6241, 0.0
    %v6258 = vsel %vm6256, %v6243, 0.0
    %v6259 = vadd.f32 %v6257, %v6258
    %v6260 = vsel %vm6256, %v6245, 0.0
    %v6261 = vadd.f32 %v6259, %v6260
    %v6262 = vsel %vm6256, %v6247, 0.0
    %v6263 = vadd.f32 %v6261, %v6262
    %v6264 = vsel %vm6256, %v6249, 0.0
    %v6265 = vadd.f32 %v6263, %v6264
    %v6266 = vsel %vm6256, %v6251, 0.0
    %v6267 = vadd.f32 %v6265, %v6266
    %v6268 = vsel %vm6256, %v6253, 0.0
    %v6269 = vadd.f32 %v6267, %v6268
    %v6270 = vsel %vm6256, %v6255, 0.0
    %v6271 = vadd.f32 %v6269, %v6270
    %6272 = vadd.xlane.f32.xlu0 %v6271
    %v6273 = vpop.xlane.xlu0 %6272
    %v6274 = vrot.slane %v6273, 4
    %v6275 = vadd.f32 %v6273, %v6274
    %v6276 = vrot.slane %v6275, 2
    %v6277 = vadd.f32 %v6275, %v6276
    %v6278 = vrot.slane %v6277, 1
    %v6279 = vadd.f32 %v6277, %v6278
    %s6280 = vtos %v6279
    %v6281 = vstv %s6280
    %v6282 = vadd.f32 %v6281, 0.0
    %v6283 = vadd.f32 %v6057, %v6089
    %v6284 = vadd.f32 %v6059, %v6091
    %v6285 = vadd.f32 %v6061, %v6093
    %v6286 = vadd.f32 %v6063, %v6095
    %v6287 = vadd.f32 %v6065, %v6097
    %v6288 = vadd.f32 %v6067, %v6099
    %v6289 = vadd.f32 %v6069, %v6101
    %v6290 = vadd.f32 %v6071, %v6103
    %v6291 = vadd.f32 %v6073, %v6105
    %v6292 = vadd.f32 %v6075, %v6107
    %v6293 = vadd.f32 %v6077, %v6109
    %v6294 = vadd.f32 %v6079, %v6111
    %v6295 = vadd.f32 %v6081, %v6113
    %v6296 = vadd.f32 %v6083, %v6115
    %v6297 = vadd.f32 %v6085, %v6117
    %v6298 = vadd.f32 %v6087, %v6119
    %v6299 = vmul.f32 %v6283, 0.00390625
    %v6300 = vmul.f32 %v6284, 0.00390625
    %v6301 = vmul.f32 %v6285, 0.00390625
    %v6302 = vmul.f32 %v6286, 0.00390625
    %v6303 = vmul.f32 %v6287, 0.00390625
    %v6304 = vmul.f32 %v6288, 0.00390625
    %v6305 = vmul.f32 %v6289, 0.00390625
    %v6306 = vmul.f32 %v6290, 0.00390625
    %v6307 = vmul.f32 %v6291, 0.00390625
    %v6308 = vmul.f32 %v6292, 0.00390625
    %v6309 = vmul.f32 %v6293, 0.00390625
    %v6310 = vmul.f32 %v6294, 0.00390625
    %v6311 = vmul.f32 %v6295, 0.00390625
    %v6312 = vmul.f32 %v6296, 0.00390625
    %v6313 = vmul.f32 %v6297, 0.00390625
    %v6314 = vmul.f32 %v6298, 0.00390625
    %v6315 = vmul.f32 %v6299, 2.0
    %v6316 = vmul.f32 %v6300, 2.0
    %v6317 = vmul.f32 %v6301, 2.0
    %v6318 = vmul.f32 %v6302, 2.0
    %v6319 = vmul.f32 %v6303, 2.0
    %v6320 = vmul.f32 %v6304, 2.0
    %v6321 = vmul.f32 %v6305, 2.0
    %v6322 = vmul.f32 %v6306, 2.0
    %v6323 = vmul.f32 %v6315, %v6307
    %v6324 = vmul.f32 %v6316, %v6308
    %v6325 = vmul.f32 %v6317, %v6309
    %v6326 = vmul.f32 %v6318, %v6310
    %v6327 = vmul.f32 %v6319, %v6311
    %v6328 = vmul.f32 %v6320, %v6312
    %v6329 = vmul.f32 %v6321, %v6313
    %v6330 = vmul.f32 %v6322, %v6314
    %v6331 = vadd.f32 %v6323, 1e-08
    %v6332 = vadd.f32 %v6324, 1e-08
    %v6333 = vadd.f32 %v6325, 1e-08
    %v6334 = vadd.f32 %v6326, 1e-08
    %v6335 = vadd.f32 %v6327, 1e-08
    %v6336 = vadd.f32 %v6328, 1e-08
    %v6337 = vadd.f32 %v6329, 1e-08
    %v6338 = vadd.f32 %v6330, 1e-08
    %v6339 = vmul.f32 %v6299, %v6299
    %v6340 = vmul.f32 %v6300, %v6300
    %v6341 = vmul.f32 %v6301, %v6301
    %v6342 = vmul.f32 %v6302, %v6302
    %v6343 = vmul.f32 %v6303, %v6303
    %v6344 = vmul.f32 %v6304, %v6304
    %v6345 = vmul.f32 %v6305, %v6305
    %v6346 = vmul.f32 %v6306, %v6306
    %v6347 = vmul.f32 %v6307, %v6307
    %v6348 = vmul.f32 %v6308, %v6308
    %v6349 = vmul.f32 %v6309, %v6309
    %v6350 = vmul.f32 %v6310, %v6310
    %v6351 = vmul.f32 %v6311, %v6311
    %v6352 = vmul.f32 %v6312, %v6312
    %v6353 = vmul.f32 %v6313, %v6313
    %v6354 = vmul.f32 %v6314, %v6314
    %v6355 = vadd.f32 %v6339, %v6347
    %v6356 = vadd.f32 %v6340, %v6348
    %v6357 = vadd.f32 %v6341, %v6349
    %v6358 = vadd.f32 %v6342, %v6350
    %v6359 = vadd.f32 %v6343, %v6351
    %v6360 = vadd.f32 %v6344, %v6352
    %v6361 = vadd.f32 %v6345, %v6353
    %v6362 = vadd.f32 %v6346, %v6354
    %v6363 = vadd.f32 %v6355, 1e-08
    %v6364 = vadd.f32 %v6356, 1e-08
    %v6365 = vadd.f32 %v6357, 1e-08
    %v6366 = vadd.f32 %v6358, 1e-08
    %v6367 = vadd.f32 %v6359, 1e-08
    %v6368 = vadd.f32 %v6360, 1e-08
    %v6369 = vadd.f32 %v6361, 1e-08
    %v6370 = vadd.f32 %v6362, 1e-08
    %v6371 = vrcp.pop %v6363
    %v6372 = vmul.f32 %v6331, %v6371
    %v6373 = vrcp.pop %v6364
    %v6374 = vmul.f32 %v6332, %v6373
    %v6375 = vrcp.pop %v6365
    %v6376 = vmul.f32 %v6333, %v6375
    %v6377 = vrcp.pop %v6366
    %v6378 = vmul.f32 %v6334, %v6377
    %v6379 = vrcp.pop %v6367
    %v6380 = vmul.f32 %v6335, %v6379
    %v6381 = vrcp.pop %v6368
    %v6382 = vmul.f32 %v6336, %v6381
    %v6383 = vrcp.pop %v6369
    %v6384 = vmul.f32 %v6337, %v6383
    %v6385 = vrcp.pop %v6370
    %v6386 = vmul.f32 %v6338, %v6385
    %v6387 = vsel %vm6256, %v6372, 0.0
    %v6388 = vsel %vm6256, %v6374, 0.0
    %v6389 = vadd.f32 %v6387, %v6388
    %v6390 = vsel %vm6256, %v6376, 0.0
    %v6391 = vadd.f32 %v6389, %v6390
    %v6392 = vsel %vm6256, %v6378, 0.0
    %v6393 = vadd.f32 %v6391, %v6392
    %v6394 = vsel %vm6256, %v6380, 0.0
    %v6395 = vadd.f32 %v6393, %v6394
    %v6396 = vsel %vm6256, %v6382, 0.0
    %v6397 = vadd.f32 %v6395, %v6396
    %v6398 = vsel %vm6256, %v6384, 0.0
    %v6399 = vadd.f32 %v6397, %v6398
    %v6400 = vsel %vm6256, %v6386, 0.0
    %v6401 = vadd.f32 %v6399, %v6400
    %6402 = vadd.xlane.f32.xlu0 %v6401
    %v6403 = vpop.xlane.xlu0 %6402
    %v6404 = vrot.slane %v6403, 4
    %v6405 = vadd.f32 %v6403, %v6404
    %v6406 = vrot.slane %v6405, 2
    %v6407 = vadd.f32 %v6405, %v6406
    %v6408 = vrot.slane %v6407, 1
    %v6409 = vadd.f32 %v6407, %v6408
    %s6410 = vtos %v6409
    %v6411 = vstv %s6410
    %v6412 = vadd.f32 %v6282, %v6411
    %v6413 = vadd.f32 %v6089, %v6121
    %v6414 = vadd.f32 %v6091, %v6123
    %v6415 = vadd.f32 %v6093, %v6125
    %v6416 = vadd.f32 %v6095, %v6127
    %v6417 = vadd.f32 %v6097, %v6129
    %v6418 = vadd.f32 %v6099, %v6131
    %v6419 = vadd.f32 %v6101, %v6133
    %v6420 = vadd.f32 %v6103, %v6135
    %v6421 = vadd.f32 %v6105, %v6137
    %v6422 = vadd.f32 %v6107, %v6139
    %v6423 = vadd.f32 %v6109, %v6141
    %v6424 = vadd.f32 %v6111, %v6143
    %v6425 = vadd.f32 %v6113, %v6145
    %v6426 = vadd.f32 %v6115, %v6147
    %v6427 = vadd.f32 %v6117, %v6149
    %v6428 = vadd.f32 %v6119, %v6151
    %v6429 = vmul.f32 %v6413, 0.00390625
    %v6430 = vmul.f32 %v6414, 0.00390625
    %v6431 = vmul.f32 %v6415, 0.00390625
    %v6432 = vmul.f32 %v6416, 0.00390625
    %v6433 = vmul.f32 %v6417, 0.00390625
    %v6434 = vmul.f32 %v6418, 0.00390625
    %v6435 = vmul.f32 %v6419, 0.00390625
    %v6436 = vmul.f32 %v6420, 0.00390625
    %v6437 = vmul.f32 %v6421, 0.00390625
    %v6438 = vmul.f32 %v6422, 0.00390625
    %v6439 = vmul.f32 %v6423, 0.00390625
    %v6440 = vmul.f32 %v6424, 0.00390625
    %v6441 = vmul.f32 %v6425, 0.00390625
    %v6442 = vmul.f32 %v6426, 0.00390625
    %v6443 = vmul.f32 %v6427, 0.00390625
    %v6444 = vmul.f32 %v6428, 0.00390625
    %v6445 = vmul.f32 %v6429, 2.0
    %v6446 = vmul.f32 %v6430, 2.0
    %v6447 = vmul.f32 %v6431, 2.0
    %v6448 = vmul.f32 %v6432, 2.0
    %v6449 = vmul.f32 %v6433, 2.0
    %v6450 = vmul.f32 %v6434, 2.0
    %v6451 = vmul.f32 %v6435, 2.0
    %v6452 = vmul.f32 %v6436, 2.0
    %v6453 = vmul.f32 %v6445, %v6437
    %v6454 = vmul.f32 %v6446, %v6438
    %v6455 = vmul.f32 %v6447, %v6439
    %v6456 = vmul.f32 %v6448, %v6440
    %v6457 = vmul.f32 %v6449, %v6441
    %v6458 = vmul.f32 %v6450, %v6442
    %v6459 = vmul.f32 %v6451, %v6443
    %v6460 = vmul.f32 %v6452, %v6444
    %v6461 = vadd.f32 %v6453, 1e-08
    %v6462 = vadd.f32 %v6454, 1e-08
    %v6463 = vadd.f32 %v6455, 1e-08
    %v6464 = vadd.f32 %v6456, 1e-08
    %v6465 = vadd.f32 %v6457, 1e-08
    %v6466 = vadd.f32 %v6458, 1e-08
    %v6467 = vadd.f32 %v6459, 1e-08
    %v6468 = vadd.f32 %v6460, 1e-08
    %v6469 = vmul.f32 %v6429, %v6429
    %v6470 = vmul.f32 %v6430, %v6430
    %v6471 = vmul.f32 %v6431, %v6431
    %v6472 = vmul.f32 %v6432, %v6432
    %v6473 = vmul.f32 %v6433, %v6433
    %v6474 = vmul.f32 %v6434, %v6434
    %v6475 = vmul.f32 %v6435, %v6435
    %v6476 = vmul.f32 %v6436, %v6436
    %v6477 = vmul.f32 %v6437, %v6437
    %v6478 = vmul.f32 %v6438, %v6438
    %v6479 = vmul.f32 %v6439, %v6439
    %v6480 = vmul.f32 %v6440, %v6440
    %v6481 = vmul.f32 %v6441, %v6441
    %v6482 = vmul.f32 %v6442, %v6442
    %v6483 = vmul.f32 %v6443, %v6443
    %v6484 = vmul.f32 %v6444, %v6444
    %v6485 = vadd.f32 %v6469, %v6477
    %v6486 = vadd.f32 %v6470, %v6478
    %v6487 = vadd.f32 %v6471, %v6479
    %v6488 = vadd.f32 %v6472, %v6480
    %v6489 = vadd.f32 %v6473, %v6481
    %v6490 = vadd.f32 %v6474, %v6482
    %v6491 = vadd.f32 %v6475, %v6483
    %v6492 = vadd.f32 %v6476, %v6484
    %v6493 = vadd.f32 %v6485, 1e-08
    %v6494 = vadd.f32 %v6486, 1e-08
    %v6495 = vadd.f32 %v6487, 1e-08
    %v6496 = vadd.f32 %v6488, 1e-08
    %v6497 = vadd.f32 %v6489, 1e-08
    %v6498 = vadd.f32 %v6490, 1e-08
    %v6499 = vadd.f32 %v6491, 1e-08
    %v6500 = vadd.f32 %v6492, 1e-08
    %v6501 = vrcp.pop %v6493
    %v6502 = vmul.f32 %v6461, %v6501
    %v6503 = vrcp.pop %v6494
    %v6504 = vmul.f32 %v6462, %v6503
    %v6505 = vrcp.pop %v6495
    %v6506 = vmul.f32 %v6463, %v6505
    %v6507 = vrcp.pop %v6496
    %v6508 = vmul.f32 %v6464, %v6507
    %v6509 = vrcp.pop %v6497
    %v6510 = vmul.f32 %v6465, %v6509
    %v6511 = vrcp.pop %v6498
    %v6512 = vmul.f32 %v6466, %v6511
    %v6513 = vrcp.pop %v6499
    %v6514 = vmul.f32 %v6467, %v6513
    %v6515 = vrcp.pop %v6500
    %v6516 = vmul.f32 %v6468, %v6515
    %v6517 = vsel %vm6256, %v6502, 0.0
    %v6518 = vsel %vm6256, %v6504, 0.0
    %v6519 = vadd.f32 %v6517, %v6518
    %v6520 = vsel %vm6256, %v6506, 0.0
    %v6521 = vadd.f32 %v6519, %v6520
    %v6522 = vsel %vm6256, %v6508, 0.0
    %v6523 = vadd.f32 %v6521, %v6522
    %v6524 = vsel %vm6256, %v6510, 0.0
    %v6525 = vadd.f32 %v6523, %v6524
    %v6526 = vsel %vm6256, %v6512, 0.0
    %v6527 = vadd.f32 %v6525, %v6526
    %v6528 = vsel %vm6256, %v6514, 0.0
    %v6529 = vadd.f32 %v6527, %v6528
    %v6530 = vsel %vm6256, %v6516, 0.0
    %v6531 = vadd.f32 %v6529, %v6530
    %6532 = vadd.xlane.f32.xlu0 %v6531
    %v6533 = vpop.xlane.xlu0 %6532
    %v6534 = vrot.slane %v6533, 4
    %v6535 = vadd.f32 %v6533, %v6534
    %v6536 = vrot.slane %v6535, 2
    %v6537 = vadd.f32 %v6535, %v6536
    %v6538 = vrot.slane %v6537, 1
    %v6539 = vadd.f32 %v6537, %v6538
    %s6540 = vtos %v6539
    %v6541 = vstv %s6540
    %v6542 = vadd.f32 %v6412, %v6541
    %v6543 = vmul.f32 %v6542, 0.0052083335
    %vm6544 = vcmask 0
    %6545 = vst.msk [vmem:[#allocation8] sm:$0x1] %vm6544, %v6543
    // Predicated region
    $region26: #{tpu_custom_call.1} parent=1 // pred_check
      _
    $region27: #{tpu_custom_call.1} parent=1 // pred_check_branch
      %6547 = sbr.rel (0) target = $region29
    $region28: #{tpu_custom_call.1} parent=1 // pred_region
      %s6549 = ssub.s32 16, 16
      %6550 = vsyncadd [#allocation4], %s6549
      %s6552 = sshll.u32 [#allocation8], 4
      %s6553 = int_to_ptr.vmem [resolvable:$true] %s6552
      %6555 = dma.vmem_to_hbm [thread:$0]  %s6553, 16, %s3, [#allocation4]
    $region29: #{tpu_custom_call.1} parent=1 // pred_fallthru
      _
    // Predicated region
    $region30: #{tpu_custom_call.1} parent=1 // pred_check
      _
    $region31: #{tpu_custom_call.1} parent=1 // pred_check_branch
      %6557 = sbr.rel (0) target = $region33
    $region32: #{tpu_custom_call.1} parent=1 // pred_region
      %6558 = dma.done [#allocation4], 16
    $region33: #{tpu_custom_call.1} parent=1 // pred_fallthru
      _
    %6559 = vsyncpa [#allocation3], 1
    %6560 = vsyncpa [#allocation6], 1
    %6561 = vsyncpa [#allocation4], 1

</llo_original>
